<compile_context>
chip_gen: v6e
topology: v6e:2x2x1
jax: 0.10.0
libtpu: 0.0.40
codegen_flags: <defaults>
</compile_context>

<pallas_src>
import jax
import jax.numpy as jnp
from jax.experimental import pallas as pl
from jax.experimental.pallas import tpu as pltpu

HIDDEN_SIZE = 64
NUM_LAYERS = 2          # hard-wired: two stacked LSTM cells


def weather_lstm_kernel(x_ref,       # (T*Bp, I)  time-major, batch-padded, flattened
                        wih0_ref,    # (I, 4H)    gate cols [i, f, o, g]
                        whh0_ref,    # (H, 4H)
                        b0_ref,      # (1, 4H)    b_ih0 + b_hh0
                        wih1_ref,    # (H, 4H)
                        whh1_ref,    # (H, 4H)
                        b1_ref,      # (1, 4H)    b_ih1 + b_hh1
                        wfc_ref,     # (O, H)
                        bfc_ref,     # (1, O)
                        out_ref):    # (Bp, O)
    Bp = out_ref.shape[0]
    T = x_ref.shape[0] // Bp
    H = whh0_ref.shape[0]
    O = wfc_ref.shape[0]

    # ---- layer-0 input projections for ALL time steps in one matmul (off the
    #      serial critical path), bias fused in.
    xp = (jnp.dot(x_ref[...], wih0_ref[...], preferred_element_type=jnp.float32)
          + b0_ref[...])                                        # (T*Bp, 4H)

    whh0 = whh0_ref[...]
    wih1 = wih1_ref[...]
    whh1 = whh1_ref[...]
    b1 = b1_ref[...]

    # Static lane mask for the [o | g] tile: lanes [0, H) -> sigmoid (o gate),
    # lanes [H, 2H) -> tanh (g candidate).
    og_mask = jax.lax.broadcasted_iota(jnp.int32, (Bp, 2 * H), 1) < H

    def gates(g):
        # g: (Bp, 4H), gate column order [i, f, o, g]; 4H = two 128-lane tiles.
        sif = jax.nn.sigmoid(g[:, :2 * H])          # tile 0: [i | f], lane-aligned
        tail = g[:, 2 * H:]                          # tile 1: [o | g], lane-aligned
        og = jnp.where(og_mask, jax.nn.sigmoid(tail), jnp.tanh(tail))
        return sif[:, :H], sif[:, H:], og[:, :H], og[:, H:]

    h0 = c0 = h1 = c1 = jnp.zeros((Bp, H), jnp.float32)

    # ---- statically unrolled recurrence (T is a compile-time constant)
    for t in range(T):
        # layer-1 recurrent half first: depends only on h1_{t-1}, so it can
        # overlap with the layer-0 cell of step t.
        r1 = jnp.dot(h1, whh1, preferred_element_type=jnp.float32)

        # layer 0: input projection precomputed; only the recurrent matmul here
        g0 = xp[t * Bp:(t + 1) * Bp, :] + jnp.dot(
            h0, whh0, preferred_element_type=jnp.float32)
        i0, f0, o0, gg0 = gates(g0)
        c0 = f0 * c0 + i0 * gg0
        h0 = o0 * jnp.tanh(c0)

        # layer 1: two split dots, no per-step lane concat
        g1 = jnp.dot(h0, wih1, preferred_element_type=jnp.float32) + r1 + b1
        i1, f1, o1, gg1 = gates(g1)
        c1 = f1 * c1 + i1 * gg1
        h1 = o1 * jnp.tanh(c1)

    # ---- final fc on the last top-layer hidden state
    if O == 1:
        # N=1 output: VPU multiply + lane reduction beats a masked MXU pass
        out_ref[...] = (jnp.sum(h1 * wfc_ref[...], axis=-1, keepdims=True)
                        + bfc_ref[...])
    else:
        out_ref[...] = (jnp.dot(h1, wfc_ref[...].T,
                                preferred_element_type=jnp.float32)
                        + bfc_ref[...])


def init_params(key, input_size, hidden_size, output_size):
    """Deterministic params with PyTorch-style shapes, uniform(-k, k), k=1/sqrt(H)."""
    k = 1.0 / jnp.sqrt(jnp.float32(hidden_size))
    ks = jax.random.split(key, 10)
    u = lambda kk, shape: jax.random.uniform(kk, shape, jnp.float32, -k, k)
    return {
        # layer 0
        "w_ih0": u(ks[0], (4 * hidden_size, input_size)),
        "w_hh0": u(ks[1], (4 * hidden_size, hidden_size)),
        "b_ih0": u(ks[2], (4 * hidden_size,)),
        "b_hh0": u(ks[3], (4 * hidden_size,)),
        # layer 1
        "w_ih1": u(ks[4], (4 * hidden_size, hidden_size)),
        "w_hh1": u(ks[5], (4 * hidden_size, hidden_size)),
        "b_ih1": u(ks[6], (4 * hidden_size,)),
        "b_hh1": u(ks[7], (4 * hidden_size,)),
        # fc
        "w_fc": u(ks[8], (output_size, hidden_size)),
        "b_fc": u(ks[9], (output_size,)),
    }


def _reorder_gates(w):
    """Permute torch gate blocks [i, f, g, o] -> [i, f, o, g] along axis 0."""
    h = w.shape[0] // 4
    return jnp.concatenate([w[:2 * h], w[3 * h:], w[2 * h:3 * h]], axis=0)


def prepare_params(params):
    """One-time layout plumbing: gate permutation, transposes, bias fusion.

    Call once and reuse across forward calls so this never sits on the per-call
    path as separate XLA ops.
    """
    H = params["w_hh0"].shape[1]
    O = params["w_fc"].shape[0]
    f32 = lambda a: jnp.asarray(a, jnp.float32)
    return {
        "wih0": f32(_reorder_gates(params["w_ih0"]).T),                       # (I, 4H)
        "whh0": f32(_reorder_gates(params["w_hh0"]).T),                       # (H, 4H)
        "b0":   f32(_reorder_gates(params["b_ih0"] + params["b_hh0"]).reshape(1, 4 * H)),
        "wih1": f32(_reorder_gates(params["w_ih1"]).T),                       # (H, 4H)
        "whh1": f32(_reorder_gates(params["w_hh1"]).T),                       # (H, 4H)
        "b1":   f32(_reorder_gates(params["b_ih1"] + params["b_hh1"]).reshape(1, 4 * H)),
        "wfc":  f32(params["w_fc"]),                                          # (O, H)
        "bfc":  f32(params["b_fc"].reshape(1, O)),                            # (1, O)
    }


def weather_lstm_forward(x, prepped):
    """x: (batch, seq, input_size) float32 -> (batch, output_size)."""
    B, T, I = x.shape
    O = prepped["wfc"].shape[0]
    Bp = ((B + 7) // 8) * 8                     # pad batch to a full sublane tile

    # Layout plumbing only (input-dependent part): time-major, batch-padded,
    # flattened input for the big upfront layer-0 projection.
    x_tm = jnp.transpose(x, (1, 0, 2)).astype(jnp.float32)       # (T, B, I)
    if Bp != B:
        x_tm = jnp.pad(x_tm, ((0, 0), (0, Bp - B), (0, 0)))      # zero rows
    x_flat = x_tm.reshape(T * Bp, I)

    vmem = pl.BlockSpec(memory_space=pltpu.MemorySpace.VMEM)
    out = pl.pallas_call(
        weather_lstm_kernel,
        out_shape=jax.ShapeDtypeStruct((Bp, O), jnp.float32),
        in_specs=[vmem] * 9,
        out_specs=vmem,
    )(x_flat, prepped["wih0"], prepped["whh0"], prepped["b0"],
      prepped["wih1"], prepped["whh1"], prepped["b1"],
      prepped["wfc"], prepped["bfc"])
    return out[:B]                              # drop padded batch rows


def weather_lstm_reference(x, params):
    """Pure-JAX reference mirroring torch.nn.LSTM (gate order i,f,g,o) + Linear."""
    B, T, I = x.shape
    H = params["w_hh0"].shape[1]

    def cell(x_t, h, c, w_ih, w_hh, b_ih, b_hh):
        g = x_t @ w_ih.T + b_ih + h @ w_hh.T + b_hh
        i, f, gg, o = jnp.split(g, 4, axis=-1)
        c_new = jax.nn.sigmoid(f) * c + jax.nn.sigmoid(i) * jnp.tanh(gg)
        h_new = jax.nn.sigmoid(o) * jnp.tanh(c_new)
        return h_new, c_new

    h0 = c0 = h1 = c1 = jnp.zeros((B, H), jnp.float32)
    for t in range(T):
        h0, c0 = cell(x[:, t, :], h0, c0, params["w_ih0"], params["w_hh0"],
                      params["b_ih0"], params["b_hh0"])
        h1, c1 = cell(h0, h1, c1, params["w_ih1"], params["w_hh1"],
                      params["b_ih1"], params["b_hh1"])
    return h1 @ params["w_fc"].T + params["b_fc"]


if __name__ == "__main__":
    batch, seq, input_size, output_size = 2, 8, 4, 1

    key = jax.random.PRNGKey(0)
    k_x, k_p = jax.random.split(key)
    x = jax.random.normal(k_x, (batch, seq, input_size), jnp.float32)
    params = init_params(k_p, input_size, HIDDEN_SIZE, output_size)

    prepped = prepare_params(params)            # one-time weight layout plumbing
    fwd = jax.jit(weather_lstm_forward)

    out = jax.block_until_ready(fwd(x, prepped))
    ref = weather_lstm_reference(x, params)

    assert out.shape == (batch, output_size)
    # MXU default precision does single-pass bf16 accumulation; 1e-4 is a
    # realistic bound for this depth while still catching real bugs.
    assert jnp.allclose(out, ref, atol=1e-4, rtol=1e-4), (out, ref)
    print("KERNEL_OK")
</pallas_src>

<mosaic_0001>
module attributes {stable_mosaic.version = 11 : i64} {
  func.func @weather_lstm_kernel(%arg0: memref<64x4xf32, #tpu.memory_space<vmem>>, %arg1: memref<4x256xf32, #tpu.memory_space<vmem>>, %arg2: memref<64x256xf32, #tpu.memory_space<vmem>>, %arg3: memref<1x256xf32, #tpu.memory_space<vmem>>, %arg4: memref<64x256xf32, #tpu.memory_space<vmem>>, %arg5: memref<64x256xf32, #tpu.memory_space<vmem>>, %arg6: memref<1x256xf32, #tpu.memory_space<vmem>>, %arg7: memref<1x64xf32, #tpu.memory_space<vmem>>, %arg8: memref<1x1xf32, #tpu.memory_space<vmem>>, %arg9: memref<8x1xf32, #tpu.memory_space<vmem>>) attributes {dimension_semantics = [], scalar_prefetch = 0 : i64, scratch_operands = 0 : i64, tpu.core_type = #tpu.core_type<tc>} {
    %c0 = arith.constant 0 : index
    %c0_0 = arith.constant 0 : index
    %0 = vector.load %arg0[%c0, %c0_0] : memref<64x4xf32, #tpu.memory_space<vmem>>, vector<64x4xf32>
    %c0_1 = arith.constant 0 : index
    %c0_2 = arith.constant 0 : index
    %1 = vector.load %arg1[%c0_1, %c0_2] : memref<4x256xf32, #tpu.memory_space<vmem>>, vector<4x256xf32>
    %cst = arith.constant dense<0.000000e+00> : vector<64x256xf32>
    %2 = tpu.matmul %0, %1, %cst {dimension_numbers = #tpu.dot_dimension_numbers<[1], [0], [0], [1], [0, 0, 1, 1], [], []>} : vector<64x4xf32>, vector<4x256xf32>, vector<64x256xf32> -> vector<64x256xf32>
    %c0_3 = arith.constant 0 : index
    %c0_4 = arith.constant 0 : index
    %3 = vector.load %arg3[%c0_3, %c0_4] : memref<1x256xf32, #tpu.memory_space<vmem>>, vector<1x256xf32>
    %4 = vector.broadcast %3 : vector<1x256xf32> to vector<64x256xf32>
    %5 = arith.addf %2, %4 : vector<64x256xf32>
    %c0_5 = arith.constant 0 : index
    %c0_6 = arith.constant 0 : index
    %6 = vector.load %arg2[%c0_5, %c0_6] : memref<64x256xf32, #tpu.memory_space<vmem>>, vector<64x256xf32>
    %c0_7 = arith.constant 0 : index
    %c0_8 = arith.constant 0 : index
    %7 = vector.load %arg4[%c0_7, %c0_8] : memref<64x256xf32, #tpu.memory_space<vmem>>, vector<64x256xf32>
    %c0_9 = arith.constant 0 : index
    %c0_10 = arith.constant 0 : index
    %8 = vector.load %arg5[%c0_9, %c0_10] : memref<64x256xf32, #tpu.memory_space<vmem>>, vector<64x256xf32>
    %c0_11 = arith.constant 0 : index
    %c0_12 = arith.constant 0 : index
    %9 = vector.load %arg6[%c0_11, %c0_12] : memref<1x256xf32, #tpu.memory_space<vmem>>, vector<1x256xf32>
    %10 = tpu.iota {dimensions = array<i32: 1>} : vector<8x128xi32>
    %c64_i32 = arith.constant 64 : i32
    %11 = vector.broadcast %c64_i32 : i32 to vector<8x128xi32>
    %12 = arith.cmpi slt, %10, %11 : vector<8x128xi32>
    %cst_13 = arith.constant 0.000000e+00 : f32
    %13 = vector.broadcast %cst_13 : f32 to vector<8x64xf32>
    %cst_14 = arith.constant dense<0.000000e+00> : vector<8x256xf32>
    %14 = tpu.matmul %13, %8, %cst_14 {dimension_numbers = #tpu.dot_dimension_numbers<[1], [0], [0], [1], [0, 0, 1, 1], [], []>} : vector<8x64xf32>, vector<64x256xf32>, vector<8x256xf32> -> vector<8x256xf32>
    %15 = vector.extract_strided_slice %5 {offsets = [0, 0], sizes = [8, 256], strides = [1, 1]} : vector<64x256xf32> to vector<8x256xf32>
    %cst_15 = arith.constant dense<0.000000e+00> : vector<8x256xf32>
    %16 = tpu.matmul %13, %6, %cst_15 {dimension_numbers = #tpu.dot_dimension_numbers<[1], [0], [0], [1], [0, 0, 1, 1], [], []>} : vector<8x64xf32>, vector<64x256xf32>, vector<8x256xf32> -> vector<8x256xf32>
    %17 = arith.addf %15, %16 : vector<8x256xf32>
    %18 = vector.extract_strided_slice %17 {offsets = [0, 0], sizes = [8, 128], strides = [1, 1]} : vector<8x256xf32> to vector<8x128xf32>
    %19 = arith.negf %18 : vector<8x128xf32>
    %20 = math.exp %19 : vector<8x128xf32>
    %cst_16 = arith.constant 1.000000e+00 : f32
    %21 = vector.broadcast %cst_16 : f32 to vector<8x128xf32>
    %22 = arith.addf %21, %20 : vector<8x128xf32>
    %23 = arith.divf %21, %22 : vector<8x128xf32>
    %24 = vector.extract_strided_slice %17 {offsets = [0, 128], sizes = [8, 128], strides = [1, 1]} : vector<8x256xf32> to vector<8x128xf32>
    %25 = arith.negf %24 : vector<8x128xf32>
    %26 = math.exp %25 : vector<8x128xf32>
    %cst_17 = arith.constant 1.000000e+00 : f32
    %27 = vector.broadcast %cst_17 : f32 to vector<8x128xf32>
    %28 = arith.addf %27, %26 : vector<8x128xf32>
    %29 = arith.divf %27, %28 : vector<8x128xf32>
    %30 = math.tanh %24 : vector<8x128xf32>
    %31 = arith.select %12, %29, %30 : vector<8x128xi1>, vector<8x128xf32>
    %32 = vector.extract_strided_slice %23 {offsets = [0, 0], sizes = [8, 64], strides = [1, 1]} : vector<8x128xf32> to vector<8x64xf32>
    %33 = vector.extract_strided_slice %23 {offsets = [0, 64], sizes = [8, 64], strides = [1, 1]} : vector<8x128xf32> to vector<8x64xf32>
    %34 = vector.extract_strided_slice %31 {offsets = [0, 0], sizes = [8, 64], strides = [1, 1]} : vector<8x128xf32> to vector<8x64xf32>
    %35 = vector.extract_strided_slice %31 {offsets = [0, 64], sizes = [8, 64], strides = [1, 1]} : vector<8x128xf32> to vector<8x64xf32>
    %36 = arith.mulf %33, %13 : vector<8x64xf32>
    %37 = arith.mulf %32, %35 : vector<8x64xf32>
    %38 = arith.addf %36, %37 : vector<8x64xf32>
    %39 = math.tanh %38 : vector<8x64xf32>
    %40 = arith.mulf %34, %39 : vector<8x64xf32>
    %cst_18 = arith.constant dense<0.000000e+00> : vector<8x256xf32>
    %41 = tpu.matmul %40, %7, %cst_18 {dimension_numbers = #tpu.dot_dimension_numbers<[1], [0], [0], [1], [0, 0, 1, 1], [], []>} : vector<8x64xf32>, vector<64x256xf32>, vector<8x256xf32> -> vector<8x256xf32>
    %42 = arith.addf %41, %14 : vector<8x256xf32>
    %43 = vector.broadcast %9 : vector<1x256xf32> to vector<8x256xf32>
    %44 = arith.addf %42, %43 : vector<8x256xf32>
    %45 = vector.extract_strided_slice %44 {offsets = [0, 0], sizes = [8, 128], strides = [1, 1]} : vector<8x256xf32> to vector<8x128xf32>
    %46 = arith.negf %45 : vector<8x128xf32>
    %47 = math.exp %46 : vector<8x128xf32>
    %cst_19 = arith.constant 1.000000e+00 : f32
    %48 = vector.broadcast %cst_19 : f32 to vector<8x128xf32>
    %49 = arith.addf %48, %47 : vector<8x128xf32>
    %50 = arith.divf %48, %49 : vector<8x128xf32>
    %51 = vector.extract_strided_slice %44 {offsets = [0, 128], sizes = [8, 128], strides = [1, 1]} : vector<8x256xf32> to vector<8x128xf32>
    %52 = arith.negf %51 : vector<8x128xf32>
    %53 = math.exp %52 : vector<8x128xf32>
    %cst_20 = arith.constant 1.000000e+00 : f32
    %54 = vector.broadcast %cst_20 : f32 to vector<8x128xf32>
    %55 = arith.addf %54, %53 : vector<8x128xf32>
    %56 = arith.divf %54, %55 : vector<8x128xf32>
    %57 = math.tanh %51 : vector<8x128xf32>
    %58 = arith.select %12, %56, %57 : vector<8x128xi1>, vector<8x128xf32>
    %59 = vector.extract_strided_slice %50 {offsets = [0, 0], sizes = [8, 64], strides = [1, 1]} : vector<8x128xf32> to vector<8x64xf32>
    %60 = vector.extract_strided_slice %50 {offsets = [0, 64], sizes = [8, 64], strides = [1, 1]} : vector<8x128xf32> to vector<8x64xf32>
    %61 = vector.extract_strided_slice %58 {offsets = [0, 0], sizes = [8, 64], strides = [1, 1]} : vector<8x128xf32> to vector<8x64xf32>
    %62 = vector.extract_strided_slice %58 {offsets = [0, 64], sizes = [8, 64], strides = [1, 1]} : vector<8x128xf32> to vector<8x64xf32>
    %63 = arith.mulf %60, %13 : vector<8x64xf32>
    %64 = arith.mulf %59, %62 : vector<8x64xf32>
    %65 = arith.addf %63, %64 : vector<8x64xf32>
    %66 = math.tanh %65 : vector<8x64xf32>
    %67 = arith.mulf %61, %66 : vector<8x64xf32>
    %cst_21 = arith.constant dense<0.000000e+00> : vector<8x256xf32>
    %68 = tpu.matmul %67, %8, %cst_21 {dimension_numbers = #tpu.dot_dimension_numbers<[1], [0], [0], [1], [0, 0, 1, 1], [], []>} : vector<8x64xf32>, vector<64x256xf32>, vector<8x256xf32> -> vector<8x256xf32>
    %69 = vector.extract_strided_slice %5 {offsets = [8, 0], sizes = [8, 256], strides = [1, 1]} : vector<64x256xf32> to vector<8x256xf32>
    %cst_22 = arith.constant dense<0.000000e+00> : vector<8x256xf32>
    %70 = tpu.matmul %40, %6, %cst_22 {dimension_numbers = #tpu.dot_dimension_numbers<[1], [0], [0], [1], [0, 0, 1, 1], [], []>} : vector<8x64xf32>, vector<64x256xf32>, vector<8x256xf32> -> vector<8x256xf32>
    %71 = arith.addf %69, %70 : vector<8x256xf32>
    %72 = vector.extract_strided_slice %71 {offsets = [0, 0], sizes = [8, 128], strides = [1, 1]} : vector<8x256xf32> to vector<8x128xf32>
    %73 = arith.negf %72 : vector<8x128xf32>
    %74 = math.exp %73 : vector<8x128xf32>
    %cst_23 = arith.constant 1.000000e+00 : f32
    %75 = vector.broadcast %cst_23 : f32 to vector<8x128xf32>
    %76 = arith.addf %75, %74 : vector<8x128xf32>
    %77 = arith.divf %75, %76 : vector<8x128xf32>
    %78 = vector.extract_strided_slice %71 {offsets = [0, 128], sizes = [8, 128], strides = [1, 1]} : vector<8x256xf32> to vector<8x128xf32>
    %79 = arith.negf %78 : vector<8x128xf32>
    %80 = math.exp %79 : vector<8x128xf32>
    %cst_24 = arith.constant 1.000000e+00 : f32
    %81 = vector.broadcast %cst_24 : f32 to vector<8x128xf32>
    %82 = arith.addf %81, %80 : vector<8x128xf32>
    %83 = arith.divf %81, %82 : vector<8x128xf32>
    %84 = math.tanh %78 : vector<8x128xf32>
    %85 = arith.select %12, %83, %84 : vector<8x128xi1>, vector<8x128xf32>
    %86 = vector.extract_strided_slice %77 {offsets = [0, 0], sizes = [8, 64], strides = [1, 1]} : vector<8x128xf32> to vector<8x64xf32>
    %87 = vector.extract_strided_slice %77 {offsets = [0, 64], sizes = [8, 64], strides = [1, 1]} : vector<8x128xf32> to vector<8x64xf32>
    %88 = vector.extract_strided_slice %85 {offsets = [0, 0], sizes = [8, 64], strides = [1, 1]} : vector<8x128xf32> to vector<8x64xf32>
    %89 = vector.extract_strided_slice %85 {offsets = [0, 64], sizes = [8, 64], strides = [1, 1]} : vector<8x128xf32> to vector<8x64xf32>
    %90 = arith.mulf %87, %38 : vector<8x64xf32>
    %91 = arith.mulf %86, %89 : vector<8x64xf32>
    %92 = arith.addf %90, %91 : vector<8x64xf32>
    %93 = math.tanh %92 : vector<8x64xf32>
    %94 = arith.mulf %88, %93 : vector<8x64xf32>
    %cst_25 = arith.constant dense<0.000000e+00> : vector<8x256xf32>
    %95 = tpu.matmul %94, %7, %cst_25 {dimension_numbers = #tpu.dot_dimension_numbers<[1], [0], [0], [1], [0, 0, 1, 1], [], []>} : vector<8x64xf32>, vector<64x256xf32>, vector<8x256xf32> -> vector<8x256xf32>
    %96 = arith.addf %95, %68 : vector<8x256xf32>
    %97 = vector.broadcast %9 : vector<1x256xf32> to vector<8x256xf32>
    %98 = arith.addf %96, %97 : vector<8x256xf32>
    %99 = vector.extract_strided_slice %98 {offsets = [0, 0], sizes = [8, 128], strides = [1, 1]} : vector<8x256xf32> to vector<8x128xf32>
    %100 = arith.negf %99 : vector<8x128xf32>
    %101 = math.exp %100 : vector<8x128xf32>
    %cst_26 = arith.constant 1.000000e+00 : f32
    %102 = vector.broadcast %cst_26 : f32 to vector<8x128xf32>
    %103 = arith.addf %102, %101 : vector<8x128xf32>
    %104 = arith.divf %102, %103 : vector<8x128xf32>
    %105 = vector.extract_strided_slice %98 {offsets = [0, 128], sizes = [8, 128], strides = [1, 1]} : vector<8x256xf32> to vector<8x128xf32>
    %106 = arith.negf %105 : vector<8x128xf32>
    %107 = math.exp %106 : vector<8x128xf32>
    %cst_27 = arith.constant 1.000000e+00 : f32
    %108 = vector.broadcast %cst_27 : f32 to vector<8x128xf32>
    %109 = arith.addf %108, %107 : vector<8x128xf32>
    %110 = arith.divf %108, %109 : vector<8x128xf32>
    %111 = math.tanh %105 : vector<8x128xf32>
    %112 = arith.select %12, %110, %111 : vector<8x128xi1>, vector<8x128xf32>
    %113 = vector.extract_strided_slice %104 {offsets = [0, 0], sizes = [8, 64], strides = [1, 1]} : vector<8x128xf32> to vector<8x64xf32>
    %114 = vector.extract_strided_slice %104 {offsets = [0, 64], sizes = [8, 64], strides = [1, 1]} : vector<8x128xf32> to vector<8x64xf32>
    %115 = vector.extract_strided_slice %112 {offsets = [0, 0], sizes = [8, 64], strides = [1, 1]} : vector<8x128xf32> to vector<8x64xf32>
    %116 = vector.extract_strided_slice %112 {offsets = [0, 64], sizes = [8, 64], strides = [1, 1]} : vector<8x128xf32> to vector<8x64xf32>
    %117 = arith.mulf %114, %65 : vector<8x64xf32>
    %118 = arith.mulf %113, %116 : vector<8x64xf32>
    %119 = arith.addf %117, %118 : vector<8x64xf32>
    %120 = math.tanh %119 : vector<8x64xf32>
    %121 = arith.mulf %115, %120 : vector<8x64xf32>
    %cst_28 = arith.constant dense<0.000000e+00> : vector<8x256xf32>
    %122 = tpu.matmul %121, %8, %cst_28 {dimension_numbers = #tpu.dot_dimension_numbers<[1], [0], [0], [1], [0, 0, 1, 1], [], []>} : vector<8x64xf32>, vector<64x256xf32>, vector<8x256xf32> -> vector<8x256xf32>
    %123 = vector.extract_strided_slice %5 {offsets = [16, 0], sizes = [8, 256], strides = [1, 1]} : vector<64x256xf32> to vector<8x256xf32>
    %cst_29 = arith.constant dense<0.000000e+00> : vector<8x256xf32>
    %124 = tpu.matmul %94, %6, %cst_29 {dimension_numbers = #tpu.dot_dimension_numbers<[1], [0], [0], [1], [0, 0, 1, 1], [], []>} : vector<8x64xf32>, vector<64x256xf32>, vector<8x256xf32> -> vector<8x256xf32>
    %125 = arith.addf %123, %124 : vector<8x256xf32>
    %126 = vector.extract_strided_slice %125 {offsets = [0, 0], sizes = [8, 128], strides = [1, 1]} : vector<8x256xf32> to vector<8x128xf32>
    %127 = arith.negf %126 : vector<8x128xf32>
    %128 = math.exp %127 : vector<8x128xf32>
    %cst_30 = arith.constant 1.000000e+00 : f32
    %129 = vector.broadcast %cst_30 : f32 to vector<8x128xf32>
    %130 = arith.addf %129, %128 : vector<8x128xf32>
    %131 = arith.divf %129, %130 : vector<8x128xf32>
    %132 = vector.extract_strided_slice %125 {offsets = [0, 128], sizes = [8, 128], strides = [1, 1]} : vector<8x256xf32> to vector<8x128xf32>
    %133 = arith.negf %132 : vector<8x128xf32>
    %134 = math.exp %133 : vector<8x128xf32>
    %cst_31 = arith.constant 1.000000e+00 : f32
    %135 = vector.broadcast %cst_31 : f32 to vector<8x128xf32>
    %136 = arith.addf %135, %134 : vector<8x128xf32>
    %137 = arith.divf %135, %136 : vector<8x128xf32>
    %138 = math.tanh %132 : vector<8x128xf32>
    %139 = arith.select %12, %137, %138 : vector<8x128xi1>, vector<8x128xf32>
    %140 = vector.extract_strided_slice %131 {offsets = [0, 0], sizes = [8, 64], strides = [1, 1]} : vector<8x128xf32> to vector<8x64xf32>
    %141 = vector.extract_strided_slice %131 {offsets = [0, 64], sizes = [8, 64], strides = [1, 1]} : vector<8x128xf32> to vector<8x64xf32>
    %142 = vector.extract_strided_slice %139 {offsets = [0, 0], sizes = [8, 64], strides = [1, 1]} : vector<8x128xf32> to vector<8x64xf32>
    %143 = vector.extract_strided_slice %139 {offsets = [0, 64], sizes = [8, 64], strides = [1, 1]} : vector<8x128xf32> to vector<8x64xf32>
    %144 = arith.mulf %141, %92 : vector<8x64xf32>
    %145 = arith.mulf %140, %143 : vector<8x64xf32>
    %146 = arith.addf %144, %145 : vector<8x64xf32>
    %147 = math.tanh %146 : vector<8x64xf32>
    %148 = arith.mulf %142, %147 : vector<8x64xf32>
    %cst_32 = arith.constant dense<0.000000e+00> : vector<8x256xf32>
    %149 = tpu.matmul %148, %7, %cst_32 {dimension_numbers = #tpu.dot_dimension_numbers<[1], [0], [0], [1], [0, 0, 1, 1], [], []>} : vector<8x64xf32>, vector<64x256xf32>, vector<8x256xf32> -> vector<8x256xf32>
    %150 = arith.addf %149, %122 : vector<8x256xf32>
    %151 = vector.broadcast %9 : vector<1x256xf32> to vector<8x256xf32>
    %152 = arith.addf %150, %151 : vector<8x256xf32>
    %153 = vector.extract_strided_slice %152 {offsets = [0, 0], sizes = [8, 128], strides = [1, 1]} : vector<8x256xf32> to vector<8x128xf32>
    %154 = arith.negf %153 : vector<8x128xf32>
    %155 = math.exp %154 : vector<8x128xf32>
    %cst_33 = arith.constant 1.000000e+00 : f32
    %156 = vector.broadcast %cst_33 : f32 to vector<8x128xf32>
    %157 = arith.addf %156, %155 : vector<8x128xf32>
    %158 = arith.divf %156, %157 : vector<8x128xf32>
    %159 = vector.extract_strided_slice %152 {offsets = [0, 128], sizes = [8, 128], strides = [1, 1]} : vector<8x256xf32> to vector<8x128xf32>
    %160 = arith.negf %159 : vector<8x128xf32>
    %161 = math.exp %160 : vector<8x128xf32>
    %cst_34 = arith.constant 1.000000e+00 : f32
    %162 = vector.broadcast %cst_34 : f32 to vector<8x128xf32>
    %163 = arith.addf %162, %161 : vector<8x128xf32>
    %164 = arith.divf %162, %163 : vector<8x128xf32>
    %165 = math.tanh %159 : vector<8x128xf32>
    %166 = arith.select %12, %164, %165 : vector<8x128xi1>, vector<8x128xf32>
    %167 = vector.extract_strided_slice %158 {offsets = [0, 0], sizes = [8, 64], strides = [1, 1]} : vector<8x128xf32> to vector<8x64xf32>
    %168 = vector.extract_strided_slice %158 {offsets = [0, 64], sizes = [8, 64], strides = [1, 1]} : vector<8x128xf32> to vector<8x64xf32>
    %169 = vector.extract_strided_slice %166 {offsets = [0, 0], sizes = [8, 64], strides = [1, 1]} : vector<8x128xf32> to vector<8x64xf32>
    %170 = vector.extract_strided_slice %166 {offsets = [0, 64], sizes = [8, 64], strides = [1, 1]} : vector<8x128xf32> to vector<8x64xf32>
    %171 = arith.mulf %168, %119 : vector<8x64xf32>
    %172 = arith.mulf %167, %170 : vector<8x64xf32>
    %173 = arith.addf %171, %172 : vector<8x64xf32>
    %174 = math.tanh %173 : vector<8x64xf32>
    %175 = arith.mulf %169, %174 : vector<8x64xf32>
    %cst_35 = arith.constant dense<0.000000e+00> : vector<8x256xf32>
    %176 = tpu.matmul %175, %8, %cst_35 {dimension_numbers = #tpu.dot_dimension_numbers<[1], [0], [0], [1], [0, 0, 1, 1], [], []>} : vector<8x64xf32>, vector<64x256xf32>, vector<8x256xf32> -> vector<8x256xf32>
    %177 = vector.extract_strided_slice %5 {offsets = [24, 0], sizes = [8, 256], strides = [1, 1]} : vector<64x256xf32> to vector<8x256xf32>
    %cst_36 = arith.constant dense<0.000000e+00> : vector<8x256xf32>
    %178 = tpu.matmul %148, %6, %cst_36 {dimension_numbers = #tpu.dot_dimension_numbers<[1], [0], [0], [1], [0, 0, 1, 1], [], []>} : vector<8x64xf32>, vector<64x256xf32>, vector<8x256xf32> -> vector<8x256xf32>
    %179 = arith.addf %177, %178 : vector<8x256xf32>
    %180 = vector.extract_strided_slice %179 {offsets = [0, 0], sizes = [8, 128], strides = [1, 1]} : vector<8x256xf32> to vector<8x128xf32>
    %181 = arith.negf %180 : vector<8x128xf32>
    %182 = math.exp %181 : vector<8x128xf32>
    %cst_37 = arith.constant 1.000000e+00 : f32
    %183 = vector.broadcast %cst_37 : f32 to vector<8x128xf32>
    %184 = arith.addf %183, %182 : vector<8x128xf32>
    %185 = arith.divf %183, %184 : vector<8x128xf32>
    %186 = vector.extract_strided_slice %179 {offsets = [0, 128], sizes = [8, 128], strides = [1, 1]} : vector<8x256xf32> to vector<8x128xf32>
    %187 = arith.negf %186 : vector<8x128xf32>
    %188 = math.exp %187 : vector<8x128xf32>
    %cst_38 = arith.constant 1.000000e+00 : f32
    %189 = vector.broadcast %cst_38 : f32 to vector<8x128xf32>
    %190 = arith.addf %189, %188 : vector<8x128xf32>
    %191 = arith.divf %189, %190 : vector<8x128xf32>
    %192 = math.tanh %186 : vector<8x128xf32>
    %193 = arith.select %12, %191, %192 : vector<8x128xi1>, vector<8x128xf32>
    %194 = vector.extract_strided_slice %185 {offsets = [0, 0], sizes = [8, 64], strides = [1, 1]} : vector<8x128xf32> to vector<8x64xf32>
    %195 = vector.extract_strided_slice %185 {offsets = [0, 64], sizes = [8, 64], strides = [1, 1]} : vector<8x128xf32> to vector<8x64xf32>
    %196 = vector.extract_strided_slice %193 {offsets = [0, 0], sizes = [8, 64], strides = [1, 1]} : vector<8x128xf32> to vector<8x64xf32>
    %197 = vector.extract_strided_slice %193 {offsets = [0, 64], sizes = [8, 64], strides = [1, 1]} : vector<8x128xf32> to vector<8x64xf32>
    %198 = arith.mulf %195, %146 : vector<8x64xf32>
    %199 = arith.mulf %194, %197 : vector<8x64xf32>
    %200 = arith.addf %198, %199 : vector<8x64xf32>
    %201 = math.tanh %200 : vector<8x64xf32>
    %202 = arith.mulf %196, %201 : vector<8x64xf32>
    %cst_39 = arith.constant dense<0.000000e+00> : vector<8x256xf32>
    %203 = tpu.matmul %202, %7, %cst_39 {dimension_numbers = #tpu.dot_dimension_numbers<[1], [0], [0], [1], [0, 0, 1, 1], [], []>} : vector<8x64xf32>, vector<64x256xf32>, vector<8x256xf32> -> vector<8x256xf32>
    %204 = arith.addf %203, %176 : vector<8x256xf32>
    %205 = vector.broadcast %9 : vector<1x256xf32> to vector<8x256xf32>
    %206 = arith.addf %204, %205 : vector<8x256xf32>
    %207 = vector.extract_strided_slice %206 {offsets = [0, 0], sizes = [8, 128], strides = [1, 1]} : vector<8x256xf32> to vector<8x128xf32>
    %208 = arith.negf %207 : vector<8x128xf32>
    %209 = math.exp %208 : vector<8x128xf32>
    %cst_40 = arith.constant 1.000000e+00 : f32
    %210 = vector.broadcast %cst_40 : f32 to vector<8x128xf32>
    %211 = arith.addf %210, %209 : vector<8x128xf32>
    %212 = arith.divf %210, %211 : vector<8x128xf32>
    %213 = vector.extract_strided_slice %206 {offsets = [0, 128], sizes = [8, 128], strides = [1, 1]} : vector<8x256xf32> to vector<8x128xf32>
    %214 = arith.negf %213 : vector<8x128xf32>
    %215 = math.exp %214 : vector<8x128xf32>
    %cst_41 = arith.constant 1.000000e+00 : f32
    %216 = vector.broadcast %cst_41 : f32 to vector<8x128xf32>
    %217 = arith.addf %216, %215 : vector<8x128xf32>
    %218 = arith.divf %216, %217 : vector<8x128xf32>
    %219 = math.tanh %213 : vector<8x128xf32>
    %220 = arith.select %12, %218, %219 : vector<8x128xi1>, vector<8x128xf32>
    %221 = vector.extract_strided_slice %212 {offsets = [0, 0], sizes = [8, 64], strides = [1, 1]} : vector<8x128xf32> to vector<8x64xf32>
    %222 = vector.extract_strided_slice %212 {offsets = [0, 64], sizes = [8, 64], strides = [1, 1]} : vector<8x128xf32> to vector<8x64xf32>
    %223 = vector.extract_strided_slice %220 {offsets = [0, 0], sizes = [8, 64], strides = [1, 1]} : vector<8x128xf32> to vector<8x64xf32>
    %224 = vector.extract_strided_slice %220 {offsets = [0, 64], sizes = [8, 64], strides = [1, 1]} : vector<8x128xf32> to vector<8x64xf32>
    %225 = arith.mulf %222, %173 : vector<8x64xf32>
    %226 = arith.mulf %221, %224 : vector<8x64xf32>
    %227 = arith.addf %225, %226 : vector<8x64xf32>
    %228 = math.tanh %227 : vector<8x64xf32>
    %229 = arith.mulf %223, %228 : vector<8x64xf32>
    %cst_42 = arith.constant dense<0.000000e+00> : vector<8x256xf32>
    %230 = tpu.matmul %229, %8, %cst_42 {dimension_numbers = #tpu.dot_dimension_numbers<[1], [0], [0], [1], [0, 0, 1, 1], [], []>} : vector<8x64xf32>, vector<64x256xf32>, vector<8x256xf32> -> vector<8x256xf32>
    %231 = vector.extract_strided_slice %5 {offsets = [32, 0], sizes = [8, 256], strides = [1, 1]} : vector<64x256xf32> to vector<8x256xf32>
    %cst_43 = arith.constant dense<0.000000e+00> : vector<8x256xf32>
    %232 = tpu.matmul %202, %6, %cst_43 {dimension_numbers = #tpu.dot_dimension_numbers<[1], [0], [0], [1], [0, 0, 1, 1], [], []>} : vector<8x64xf32>, vector<64x256xf32>, vector<8x256xf32> -> vector<8x256xf32>
    %233 = arith.addf %231, %232 : vector<8x256xf32>
    %234 = vector.extract_strided_slice %233 {offsets = [0, 0], sizes = [8, 128], strides = [1, 1]} : vector<8x256xf32> to vector<8x128xf32>
    %235 = arith.negf %234 : vector<8x128xf32>
    %236 = math.exp %235 : vector<8x128xf32>
    %cst_44 = arith.constant 1.000000e+00 : f32
    %237 = vector.broadcast %cst_44 : f32 to vector<8x128xf32>
    %238 = arith.addf %237, %236 : vector<8x128xf32>
    %239 = arith.divf %237, %238 : vector<8x128xf32>
    %240 = vector.extract_strided_slice %233 {offsets = [0, 128], sizes = [8, 128], strides = [1, 1]} : vector<8x256xf32> to vector<8x128xf32>
    %241 = arith.negf %240 : vector<8x128xf32>
    %242 = math.exp %241 : vector<8x128xf32>
    %cst_45 = arith.constant 1.000000e+00 : f32
    %243 = vector.broadcast %cst_45 : f32 to vector<8x128xf32>
    %244 = arith.addf %243, %242 : vector<8x128xf32>
    %245 = arith.divf %243, %244 : vector<8x128xf32>
    %246 = math.tanh %240 : vector<8x128xf32>
    %247 = arith.select %12, %245, %246 : vector<8x128xi1>, vector<8x128xf32>
    %248 = vector.extract_strided_slice %239 {offsets = [0, 0], sizes = [8, 64], strides = [1, 1]} : vector<8x128xf32> to vector<8x64xf32>
    %249 = vector.extract_strided_slice %239 {offsets = [0, 64], sizes = [8, 64], strides = [1, 1]} : vector<8x128xf32> to vector<8x64xf32>
    %250 = vector.extract_strided_slice %247 {offsets = [0, 0], sizes = [8, 64], strides = [1, 1]} : vector<8x128xf32> to vector<8x64xf32>
    %251 = vector.extract_strided_slice %247 {offsets = [0, 64], sizes = [8, 64], strides = [1, 1]} : vector<8x128xf32> to vector<8x64xf32>
    %252 = arith.mulf %249, %200 : vector<8x64xf32>
    %253 = arith.mulf %248, %251 : vector<8x64xf32>
    %254 = arith.addf %252, %253 : vector<8x64xf32>
    %255 = math.tanh %254 : vector<8x64xf32>
    %256 = arith.mulf %250, %255 : vector<8x64xf32>
    %cst_46 = arith.constant dense<0.000000e+00> : vector<8x256xf32>
    %257 = tpu.matmul %256, %7, %cst_46 {dimension_numbers = #tpu.dot_dimension_numbers<[1], [0], [0], [1], [0, 0, 1, 1], [], []>} : vector<8x64xf32>, vector<64x256xf32>, vector<8x256xf32> -> vector<8x256xf32>
    %258 = arith.addf %257, %230 : vector<8x256xf32>
    %259 = vector.broadcast %9 : vector<1x256xf32> to vector<8x256xf32>
    %260 = arith.addf %258, %259 : vector<8x256xf32>
    %261 = vector.extract_strided_slice %260 {offsets = [0, 0], sizes = [8, 128], strides = [1, 1]} : vector<8x256xf32> to vector<8x128xf32>
    %262 = arith.negf %261 : vector<8x128xf32>
    %263 = math.exp %262 : vector<8x128xf32>
    %cst_47 = arith.constant 1.000000e+00 : f32
    %264 = vector.broadcast %cst_47 : f32 to vector<8x128xf32>
    %265 = arith.addf %264, %263 : vector<8x128xf32>
    %266 = arith.divf %264, %265 : vector<8x128xf32>
    %267 = vector.extract_strided_slice %260 {offsets = [0, 128], sizes = [8, 128], strides = [1, 1]} : vector<8x256xf32> to vector<8x128xf32>
    %268 = arith.negf %267 : vector<8x128xf32>
    %269 = math.exp %268 : vector<8x128xf32>
    %cst_48 = arith.constant 1.000000e+00 : f32
    %270 = vector.broadcast %cst_48 : f32 to vector<8x128xf32>
    %271 = arith.addf %270, %269 : vector<8x128xf32>
    %272 = arith.divf %270, %271 : vector<8x128xf32>
    %273 = math.tanh %267 : vector<8x128xf32>
    %274 = arith.select %12, %272, %273 : vector<8x128xi1>, vector<8x128xf32>
    %275 = vector.extract_strided_slice %266 {offsets = [0, 0], sizes = [8, 64], strides = [1, 1]} : vector<8x128xf32> to vector<8x64xf32>
    %276 = vector.extract_strided_slice %266 {offsets = [0, 64], sizes = [8, 64], strides = [1, 1]} : vector<8x128xf32> to vector<8x64xf32>
    %277 = vector.extract_strided_slice %274 {offsets = [0, 0], sizes = [8, 64], strides = [1, 1]} : vector<8x128xf32> to vector<8x64xf32>
    %278 = vector.extract_strided_slice %274 {offsets = [0, 64], sizes = [8, 64], strides = [1, 1]} : vector<8x128xf32> to vector<8x64xf32>
    %279 = arith.mulf %276, %227 : vector<8x64xf32>
    %280 = arith.mulf %275, %278 : vector<8x64xf32>
    %281 = arith.addf %279, %280 : vector<8x64xf32>
    %282 = math.tanh %281 : vector<8x64xf32>
    %283 = arith.mulf %277, %282 : vector<8x64xf32>
    %cst_49 = arith.constant dense<0.000000e+00> : vector<8x256xf32>
    %284 = tpu.matmul %283, %8, %cst_49 {dimension_numbers = #tpu.dot_dimension_numbers<[1], [0], [0], [1], [0, 0, 1, 1], [], []>} : vector<8x64xf32>, vector<64x256xf32>, vector<8x256xf32> -> vector<8x256xf32>
    %285 = vector.extract_strided_slice %5 {offsets = [40, 0], sizes = [8, 256], strides = [1, 1]} : vector<64x256xf32> to vector<8x256xf32>
    %cst_50 = arith.constant dense<0.000000e+00> : vector<8x256xf32>
    %286 = tpu.matmul %256, %6, %cst_50 {dimension_numbers = #tpu.dot_dimension_numbers<[1], [0], [0], [1], [0, 0, 1, 1], [], []>} : vector<8x64xf32>, vector<64x256xf32>, vector<8x256xf32> -> vector<8x256xf32>
    %287 = arith.addf %285, %286 : vector<8x256xf32>
    %288 = vector.extract_strided_slice %287 {offsets = [0, 0], sizes = [8, 128], strides = [1, 1]} : vector<8x256xf32> to vector<8x128xf32>
    %289 = arith.negf %288 : vector<8x128xf32>
    %290 = math.exp %289 : vector<8x128xf32>
    %cst_51 = arith.constant 1.000000e+00 : f32
    %291 = vector.broadcast %cst_51 : f32 to vector<8x128xf32>
    %292 = arith.addf %291, %290 : vector<8x128xf32>
    %293 = arith.divf %291, %292 : vector<8x128xf32>
    %294 = vector.extract_strided_slice %287 {offsets = [0, 128], sizes = [8, 128], strides = [1, 1]} : vector<8x256xf32> to vector<8x128xf32>
    %295 = arith.negf %294 : vector<8x128xf32>
    %296 = math.exp %295 : vector<8x128xf32>
    %cst_52 = arith.constant 1.000000e+00 : f32
    %297 = vector.broadcast %cst_52 : f32 to vector<8x128xf32>
    %298 = arith.addf %297, %296 : vector<8x128xf32>
    %299 = arith.divf %297, %298 : vector<8x128xf32>
    %300 = math.tanh %294 : vector<8x128xf32>
    %301 = arith.select %12, %299, %300 : vector<8x128xi1>, vector<8x128xf32>
    %302 = vector.extract_strided_slice %293 {offsets = [0, 0], sizes = [8, 64], strides = [1, 1]} : vector<8x128xf32> to vector<8x64xf32>
    %303 = vector.extract_strided_slice %293 {offsets = [0, 64], sizes = [8, 64], strides = [1, 1]} : vector<8x128xf32> to vector<8x64xf32>
    %304 = vector.extract_strided_slice %301 {offsets = [0, 0], sizes = [8, 64], strides = [1, 1]} : vector<8x128xf32> to vector<8x64xf32>
    %305 = vector.extract_strided_slice %301 {offsets = [0, 64], sizes = [8, 64], strides = [1, 1]} : vector<8x128xf32> to vector<8x64xf32>
    %306 = arith.mulf %303, %254 : vector<8x64xf32>
    %307 = arith.mulf %302, %305 : vector<8x64xf32>
    %308 = arith.addf %306, %307 : vector<8x64xf32>
    %309 = math.tanh %308 : vector<8x64xf32>
    %310 = arith.mulf %304, %309 : vector<8x64xf32>
    %cst_53 = arith.constant dense<0.000000e+00> : vector<8x256xf32>
    %311 = tpu.matmul %310, %7, %cst_53 {dimension_numbers = #tpu.dot_dimension_numbers<[1], [0], [0], [1], [0, 0, 1, 1], [], []>} : vector<8x64xf32>, vector<64x256xf32>, vector<8x256xf32> -> vector<8x256xf32>
    %312 = arith.addf %311, %284 : vector<8x256xf32>
    %313 = vector.broadcast %9 : vector<1x256xf32> to vector<8x256xf32>
    %314 = arith.addf %312, %313 : vector<8x256xf32>
    %315 = vector.extract_strided_slice %314 {offsets = [0, 0], sizes = [8, 128], strides = [1, 1]} : vector<8x256xf32> to vector<8x128xf32>
    %316 = arith.negf %315 : vector<8x128xf32>
    %317 = math.exp %316 : vector<8x128xf32>
    %cst_54 = arith.constant 1.000000e+00 : f32
    %318 = vector.broadcast %cst_54 : f32 to vector<8x128xf32>
    %319 = arith.addf %318, %317 : vector<8x128xf32>
    %320 = arith.divf %318, %319 : vector<8x128xf32>
    %321 = vector.extract_strided_slice %314 {offsets = [0, 128], sizes = [8, 128], strides = [1, 1]} : vector<8x256xf32> to vector<8x128xf32>
    %322 = arith.negf %321 : vector<8x128xf32>
    %323 = math.exp %322 : vector<8x128xf32>
    %cst_55 = arith.constant 1.000000e+00 : f32
    %324 = vector.broadcast %cst_55 : f32 to vector<8x128xf32>
    %325 = arith.addf %324, %323 : vector<8x128xf32>
    %326 = arith.divf %324, %325 : vector<8x128xf32>
    %327 = math.tanh %321 : vector<8x128xf32>
    %328 = arith.select %12, %326, %327 : vector<8x128xi1>, vector<8x128xf32>
    %329 = vector.extract_strided_slice %320 {offsets = [0, 0], sizes = [8, 64], strides = [1, 1]} : vector<8x128xf32> to vector<8x64xf32>
    %330 = vector.extract_strided_slice %320 {offsets = [0, 64], sizes = [8, 64], strides = [1, 1]} : vector<8x128xf32> to vector<8x64xf32>
    %331 = vector.extract_strided_slice %328 {offsets = [0, 0], sizes = [8, 64], strides = [1, 1]} : vector<8x128xf32> to vector<8x64xf32>
    %332 = vector.extract_strided_slice %328 {offsets = [0, 64], sizes = [8, 64], strides = [1, 1]} : vector<8x128xf32> to vector<8x64xf32>
    %333 = arith.mulf %330, %281 : vector<8x64xf32>
    %334 = arith.mulf %329, %332 : vector<8x64xf32>
    %335 = arith.addf %333, %334 : vector<8x64xf32>
    %336 = math.tanh %335 : vector<8x64xf32>
    %337 = arith.mulf %331, %336 : vector<8x64xf32>
    %cst_56 = arith.constant dense<0.000000e+00> : vector<8x256xf32>
    %338 = tpu.matmul %337, %8, %cst_56 {dimension_numbers = #tpu.dot_dimension_numbers<[1], [0], [0], [1], [0, 0, 1, 1], [], []>} : vector<8x64xf32>, vector<64x256xf32>, vector<8x256xf32> -> vector<8x256xf32>
    %339 = vector.extract_strided_slice %5 {offsets = [48, 0], sizes = [8, 256], strides = [1, 1]} : vector<64x256xf32> to vector<8x256xf32>
    %cst_57 = arith.constant dense<0.000000e+00> : vector<8x256xf32>
    %340 = tpu.matmul %310, %6, %cst_57 {dimension_numbers = #tpu.dot_dimension_numbers<[1], [0], [0], [1], [0, 0, 1, 1], [], []>} : vector<8x64xf32>, vector<64x256xf32>, vector<8x256xf32> -> vector<8x256xf32>
    %341 = arith.addf %339, %340 : vector<8x256xf32>
    %342 = vector.extract_strided_slice %341 {offsets = [0, 0], sizes = [8, 128], strides = [1, 1]} : vector<8x256xf32> to vector<8x128xf32>
    %343 = arith.negf %342 : vector<8x128xf32>
    %344 = math.exp %343 : vector<8x128xf32>
    %cst_58 = arith.constant 1.000000e+00 : f32
    %345 = vector.broadcast %cst_58 : f32 to vector<8x128xf32>
    %346 = arith.addf %345, %344 : vector<8x128xf32>
    %347 = arith.divf %345, %346 : vector<8x128xf32>
    %348 = vector.extract_strided_slice %341 {offsets = [0, 128], sizes = [8, 128], strides = [1, 1]} : vector<8x256xf32> to vector<8x128xf32>
    %349 = arith.negf %348 : vector<8x128xf32>
    %350 = math.exp %349 : vector<8x128xf32>
    %cst_59 = arith.constant 1.000000e+00 : f32
    %351 = vector.broadcast %cst_59 : f32 to vector<8x128xf32>
    %352 = arith.addf %351, %350 : vector<8x128xf32>
    %353 = arith.divf %351, %352 : vector<8x128xf32>
    %354 = math.tanh %348 : vector<8x128xf32>
    %355 = arith.select %12, %353, %354 : vector<8x128xi1>, vector<8x128xf32>
    %356 = vector.extract_strided_slice %347 {offsets = [0, 0], sizes = [8, 64], strides = [1, 1]} : vector<8x128xf32> to vector<8x64xf32>
    %357 = vector.extract_strided_slice %347 {offsets = [0, 64], sizes = [8, 64], strides = [1, 1]} : vector<8x128xf32> to vector<8x64xf32>
    %358 = vector.extract_strided_slice %355 {offsets = [0, 0], sizes = [8, 64], strides = [1, 1]} : vector<8x128xf32> to vector<8x64xf32>
    %359 = vector.extract_strided_slice %355 {offsets = [0, 64], sizes = [8, 64], strides = [1, 1]} : vector<8x128xf32> to vector<8x64xf32>
    %360 = arith.mulf %357, %308 : vector<8x64xf32>
    %361 = arith.mulf %356, %359 : vector<8x64xf32>
    %362 = arith.addf %360, %361 : vector<8x64xf32>
    %363 = math.tanh %362 : vector<8x64xf32>
    %364 = arith.mulf %358, %363 : vector<8x64xf32>
    %cst_60 = arith.constant dense<0.000000e+00> : vector<8x256xf32>
    %365 = tpu.matmul %364, %7, %cst_60 {dimension_numbers = #tpu.dot_dimension_numbers<[1], [0], [0], [1], [0, 0, 1, 1], [], []>} : vector<8x64xf32>, vector<64x256xf32>, vector<8x256xf32> -> vector<8x256xf32>
    %366 = arith.addf %365, %338 : vector<8x256xf32>
    %367 = vector.broadcast %9 : vector<1x256xf32> to vector<8x256xf32>
    %368 = arith.addf %366, %367 : vector<8x256xf32>
    %369 = vector.extract_strided_slice %368 {offsets = [0, 0], sizes = [8, 128], strides = [1, 1]} : vector<8x256xf32> to vector<8x128xf32>
    %370 = arith.negf %369 : vector<8x128xf32>
    %371 = math.exp %370 : vector<8x128xf32>
    %cst_61 = arith.constant 1.000000e+00 : f32
    %372 = vector.broadcast %cst_61 : f32 to vector<8x128xf32>
    %373 = arith.addf %372, %371 : vector<8x128xf32>
    %374 = arith.divf %372, %373 : vector<8x128xf32>
    %375 = vector.extract_strided_slice %368 {offsets = [0, 128], sizes = [8, 128], strides = [1, 1]} : vector<8x256xf32> to vector<8x128xf32>
    %376 = arith.negf %375 : vector<8x128xf32>
    %377 = math.exp %376 : vector<8x128xf32>
    %cst_62 = arith.constant 1.000000e+00 : f32
    %378 = vector.broadcast %cst_62 : f32 to vector<8x128xf32>
    %379 = arith.addf %378, %377 : vector<8x128xf32>
    %380 = arith.divf %378, %379 : vector<8x128xf32>
    %381 = math.tanh %375 : vector<8x128xf32>
    %382 = arith.select %12, %380, %381 : vector<8x128xi1>, vector<8x128xf32>
    %383 = vector.extract_strided_slice %374 {offsets = [0, 0], sizes = [8, 64], strides = [1, 1]} : vector<8x128xf32> to vector<8x64xf32>
    %384 = vector.extract_strided_slice %374 {offsets = [0, 64], sizes = [8, 64], strides = [1, 1]} : vector<8x128xf32> to vector<8x64xf32>
    %385 = vector.extract_strided_slice %382 {offsets = [0, 0], sizes = [8, 64], strides = [1, 1]} : vector<8x128xf32> to vector<8x64xf32>
    %386 = vector.extract_strided_slice %382 {offsets = [0, 64], sizes = [8, 64], strides = [1, 1]} : vector<8x128xf32> to vector<8x64xf32>
    %387 = arith.mulf %384, %335 : vector<8x64xf32>
    %388 = arith.mulf %383, %386 : vector<8x64xf32>
    %389 = arith.addf %387, %388 : vector<8x64xf32>
    %390 = math.tanh %389 : vector<8x64xf32>
    %391 = arith.mulf %385, %390 : vector<8x64xf32>
    %cst_63 = arith.constant dense<0.000000e+00> : vector<8x256xf32>
    %392 = tpu.matmul %391, %8, %cst_63 {dimension_numbers = #tpu.dot_dimension_numbers<[1], [0], [0], [1], [0, 0, 1, 1], [], []>} : vector<8x64xf32>, vector<64x256xf32>, vector<8x256xf32> -> vector<8x256xf32>
    %393 = vector.extract_strided_slice %5 {offsets = [56, 0], sizes = [8, 256], strides = [1, 1]} : vector<64x256xf32> to vector<8x256xf32>
    %cst_64 = arith.constant dense<0.000000e+00> : vector<8x256xf32>
    %394 = tpu.matmul %364, %6, %cst_64 {dimension_numbers = #tpu.dot_dimension_numbers<[1], [0], [0], [1], [0, 0, 1, 1], [], []>} : vector<8x64xf32>, vector<64x256xf32>, vector<8x256xf32> -> vector<8x256xf32>
    %395 = arith.addf %393, %394 : vector<8x256xf32>
    %396 = vector.extract_strided_slice %395 {offsets = [0, 0], sizes = [8, 128], strides = [1, 1]} : vector<8x256xf32> to vector<8x128xf32>
    %397 = arith.negf %396 : vector<8x128xf32>
    %398 = math.exp %397 : vector<8x128xf32>
    %cst_65 = arith.constant 1.000000e+00 : f32
    %399 = vector.broadcast %cst_65 : f32 to vector<8x128xf32>
    %400 = arith.addf %399, %398 : vector<8x128xf32>
    %401 = arith.divf %399, %400 : vector<8x128xf32>
    %402 = vector.extract_strided_slice %395 {offsets = [0, 128], sizes = [8, 128], strides = [1, 1]} : vector<8x256xf32> to vector<8x128xf32>
    %403 = arith.negf %402 : vector<8x128xf32>
    %404 = math.exp %403 : vector<8x128xf32>
    %cst_66 = arith.constant 1.000000e+00 : f32
    %405 = vector.broadcast %cst_66 : f32 to vector<8x128xf32>
    %406 = arith.addf %405, %404 : vector<8x128xf32>
    %407 = arith.divf %405, %406 : vector<8x128xf32>
    %408 = math.tanh %402 : vector<8x128xf32>
    %409 = arith.select %12, %407, %408 : vector<8x128xi1>, vector<8x128xf32>
    %410 = vector.extract_strided_slice %401 {offsets = [0, 0], sizes = [8, 64], strides = [1, 1]} : vector<8x128xf32> to vector<8x64xf32>
    %411 = vector.extract_strided_slice %401 {offsets = [0, 64], sizes = [8, 64], strides = [1, 1]} : vector<8x128xf32> to vector<8x64xf32>
    %412 = vector.extract_strided_slice %409 {offsets = [0, 0], sizes = [8, 64], strides = [1, 1]} : vector<8x128xf32> to vector<8x64xf32>
    %413 = vector.extract_strided_slice %409 {offsets = [0, 64], sizes = [8, 64], strides = [1, 1]} : vector<8x128xf32> to vector<8x64xf32>
    %414 = arith.mulf %411, %362 : vector<8x64xf32>
    %415 = arith.mulf %410, %413 : vector<8x64xf32>
    %416 = arith.addf %414, %415 : vector<8x64xf32>
    %417 = math.tanh %416 : vector<8x64xf32>
    %418 = arith.mulf %412, %417 : vector<8x64xf32>
    %cst_67 = arith.constant dense<0.000000e+00> : vector<8x256xf32>
    %419 = tpu.matmul %418, %7, %cst_67 {dimension_numbers = #tpu.dot_dimension_numbers<[1], [0], [0], [1], [0, 0, 1, 1], [], []>} : vector<8x64xf32>, vector<64x256xf32>, vector<8x256xf32> -> vector<8x256xf32>
    %420 = arith.addf %419, %392 : vector<8x256xf32>
    %421 = vector.broadcast %9 : vector<1x256xf32> to vector<8x256xf32>
    %422 = arith.addf %420, %421 : vector<8x256xf32>
    %423 = vector.extract_strided_slice %422 {offsets = [0, 0], sizes = [8, 128], strides = [1, 1]} : vector<8x256xf32> to vector<8x128xf32>
    %424 = arith.negf %423 : vector<8x128xf32>
    %425 = math.exp %424 : vector<8x128xf32>
    %cst_68 = arith.constant 1.000000e+00 : f32
    %426 = vector.broadcast %cst_68 : f32 to vector<8x128xf32>
    %427 = arith.addf %426, %425 : vector<8x128xf32>
    %428 = arith.divf %426, %427 : vector<8x128xf32>
    %429 = vector.extract_strided_slice %422 {offsets = [0, 128], sizes = [8, 128], strides = [1, 1]} : vector<8x256xf32> to vector<8x128xf32>
    %430 = arith.negf %429 : vector<8x128xf32>
    %431 = math.exp %430 : vector<8x128xf32>
    %cst_69 = arith.constant 1.000000e+00 : f32
    %432 = vector.broadcast %cst_69 : f32 to vector<8x128xf32>
    %433 = arith.addf %432, %431 : vector<8x128xf32>
    %434 = arith.divf %432, %433 : vector<8x128xf32>
    %435 = math.tanh %429 : vector<8x128xf32>
    %436 = arith.select %12, %434, %435 : vector<8x128xi1>, vector<8x128xf32>
    %437 = vector.extract_strided_slice %428 {offsets = [0, 0], sizes = [8, 64], strides = [1, 1]} : vector<8x128xf32> to vector<8x64xf32>
    %438 = vector.extract_strided_slice %428 {offsets = [0, 64], sizes = [8, 64], strides = [1, 1]} : vector<8x128xf32> to vector<8x64xf32>
    %439 = vector.extract_strided_slice %436 {offsets = [0, 0], sizes = [8, 64], strides = [1, 1]} : vector<8x128xf32> to vector<8x64xf32>
    %440 = vector.extract_strided_slice %436 {offsets = [0, 64], sizes = [8, 64], strides = [1, 1]} : vector<8x128xf32> to vector<8x64xf32>
    %441 = arith.mulf %438, %389 : vector<8x64xf32>
    %442 = arith.mulf %437, %440 : vector<8x64xf32>
    %443 = arith.addf %441, %442 : vector<8x64xf32>
    %444 = math.tanh %443 : vector<8x64xf32>
    %445 = arith.mulf %439, %444 : vector<8x64xf32>
    %c0_70 = arith.constant 0 : index
    %c0_71 = arith.constant 0 : index
    %446 = vector.load %arg7[%c0_70, %c0_71] : memref<1x64xf32, #tpu.memory_space<vmem>>, vector<1x64xf32>
    %447 = vector.broadcast %446 : vector<1x64xf32> to vector<8x64xf32>
    %448 = arith.mulf %445, %447 : vector<8x64xf32>
    %cst_72 = arith.constant dense<0.000000e+00> : vector<8xf32>
    %449 = vector.multi_reduction <add>, %448, %cst_72 [1] : vector<8x64xf32> to vector<8xf32>
    %450 = vector.shape_cast %449 : vector<8xf32> to vector<8x1xf32>
    %c0_73 = arith.constant 0 : index
    %c0_74 = arith.constant 0 : index
    %451 = vector.load %arg8[%c0_73, %c0_74] : memref<1x1xf32, #tpu.memory_space<vmem>>, vector<1x1xf32>
    %452 = vector.broadcast %451 : vector<1x1xf32> to vector<8x1xf32>
    %453 = arith.addf %450, %452 : vector<8x1xf32>
    %c0_75 = arith.constant 0 : index
    %c0_76 = arith.constant 0 : index
    %454 = vector.load %arg9[%c0_75, %c0_76] : memref<8x1xf32, #tpu.memory_space<vmem>>, vector<8x1xf32>
    tpu.vector_store %arg9[%c0_75, %c0_76], %453 {strides = array<i32>} : memref<8x1xf32, #tpu.memory_space<vmem>>, vector<8x1xf32>,
    return
  }
}

</mosaic_0001>

<llo_original>
// kernel: weather_lstm_forward.1
$region0: #{weather_lstm_forward.1}
  #allocation0 [shape = 'u32[]', space=smem, size = 0x4, offset = 0x4, fixed_abs, tag = 'smem constant byte address 0x4 - core index']
  #allocation1 [shape = 'u32[144,128]{1,0:T(1,128)}', space=vmem, size = 0x12000, scoped, tag = 'internal scratch']
  #allocation2 [shape = 'f32[1,1]{1,0:T(1,128)S(1)}', space=vmem, size = 0x200, scoped, tag = 'scoped memory for weather_lstm_forward.1']
  %s0 = inlined_call_operand.vmem [shape: f32[64,4], index: 0, kind: input, shape index: {}]
  %s1 = inlined_call_operand.vmem [shape: f32[4,256], index: 1, kind: input, shape index: {}]
  %s2 = inlined_call_operand.hbm [shape: f32[64,256], index: 2, kind: input, shape index: {}]
  %s3 = inlined_call_operand.vmem [shape: f32[1,256], index: 3, kind: input, shape index: {}]
  %s4 = inlined_call_operand.hbm [shape: f32[64,256], index: 4, kind: input, shape index: {}]
  %s5 = inlined_call_operand.hbm [shape: f32[64,256], index: 5, kind: input, shape index: {}]
  %s6 = inlined_call_operand.vmem [shape: f32[1,256], index: 6, kind: input, shape index: {}]
  %s7 = inlined_call_operand.vmem [shape: f32[1,64], index: 7, kind: input, shape index: {}]
  %s8 = inlined_call_operand.<no memory space> [shape: f32[1,1], index: 8, kind: input, shape index: {}]
  %s9 = inlined_call_operand.vmem [shape: f32[8,1], index: 9, kind: output, shape index: {}]
  %s10 = sld [smem:[#allocation0]]
  $region58: #{weather_lstm_forward.1} parent=0
    _
  %s12 = ssub.s32 1, %s10
  %s13 = scalar_select 0, %s12, %s10
  %v14 = vstv %s8
  %15 = vst [vmem:[#allocation2] sm:$0x1] %v14
  $region1: #{weather_lstm_forward.1} parent=0
    #allocation3 [shape = 'u8[65536]{0}', space=vmem, size = 0x10000, scoped, tag = 'input window, operand 2, single buffered']
    #allocation4 [shape = 's32[1]{0}', space=sflag, size = 0x4, scoped, tag = 'scoped memory for weather_lstm_forward.1']
    #allocation5 [shape = 'u8[65536]{0}', space=vmem, size = 0x10000, scoped, tag = 'input window, operand 4, single buffered']
    #allocation6 [shape = 's32[1]{0}', space=sflag, size = 0x4, scoped, tag = 'scoped memory for weather_lstm_forward.1']
    #allocation7 [shape = 'u8[65536]{0}', space=vmem, size = 0x10000, scoped, tag = 'input window, operand 5, single buffered']
    %16 = vsyncpa [#allocation4], 0
    %17 = vsyncpa [#allocation6], 0
    // Predicated region
    $region2: #{weather_lstm_forward.1} parent=1 // pred_check
      _
    $region3: #{weather_lstm_forward.1} parent=1 // pred_check_branch
      %19 = sbr.rel (0) target = $region5
    $region4: #{weather_lstm_forward.1} parent=1 // pred_region
      _
    $region5: #{weather_lstm_forward.1} parent=1 // pred_fallthru
      _
    // Predicated region
    $region6: #{weather_lstm_forward.1} parent=1 // pred_check
      _
    $region7: #{weather_lstm_forward.1} parent=1 // pred_check_branch
      %21 = sbr.rel (0) target = $region9
    $region8: #{weather_lstm_forward.1} parent=1 // pred_region
      _
    $region9: #{weather_lstm_forward.1} parent=1 // pred_fallthru
      _
    // Predicated region
    $region10: #{weather_lstm_forward.1} parent=1 // pred_check
      _
    $region11: #{weather_lstm_forward.1} parent=1 // pred_check_branch
      %23 = sbr.rel (0) target = $region13
    $region12: #{weather_lstm_forward.1} parent=1 // pred_region
      %s25 = ssub.s32 2048, 2048
      %26 = vsyncadd [#allocation4], %s25
      %s27 = sshll.u32 [#allocation3], 4
      %s28 = int_to_ptr.vmem [resolvable:$true] %s27
      %33 = dma.hbm_to_vmem [thread:$0]  %s2, 2048, %s28, [#allocation4], 256, 256, 16
    $region13: #{weather_lstm_forward.1} parent=1 // pred_fallthru
      _
    // Predicated region
    $region14: #{weather_lstm_forward.1} parent=1 // pred_check
      _
    $region15: #{weather_lstm_forward.1} parent=1 // pred_check_branch
      %35 = sbr.rel (0) target = $region17
    $region16: #{weather_lstm_forward.1} parent=1 // pred_region
      _
    $region17: #{weather_lstm_forward.1} parent=1 // pred_fallthru
      _
    // Predicated region
    $region18: #{weather_lstm_forward.1} parent=1 // pred_check
      _
    $region19: #{weather_lstm_forward.1} parent=1 // pred_check_branch
      %37 = sbr.rel (0) target = $region21
    $region20: #{weather_lstm_forward.1} parent=1 // pred_region
      %s39 = ssub.s32 2048, 2048
      %40 = vsyncadd [#allocation6], %s39
      %s41 = sshll.u32 [#allocation5], 4
      %s42 = int_to_ptr.vmem [resolvable:$true] %s41
      %47 = dma.hbm_to_vmem [thread:$0]  %s4, 2048, %s42, [#allocation6], 256, 256, 16
    $region21: #{weather_lstm_forward.1} parent=1 // pred_fallthru
      _
    // Predicated region
    $region22: #{weather_lstm_forward.1} parent=1 // pred_check
      _
    $region23: #{weather_lstm_forward.1} parent=1 // pred_check_branch
      %49 = sbr.rel (0) target = $region25
    $region24: #{weather_lstm_forward.1} parent=1 // pred_region
      %s51 = ssub.s32 2048, 2048
      %52 = vsyncadd [#allocation6], %s51
      %s53 = sshll.u32 [#allocation7], 4
      %s54 = int_to_ptr.vmem [resolvable:$true] %s53
      %59 = dma.hbm_to_vmem [thread:$0]  %s5, 2048, %s54, [#allocation6], 256, 256, 16
    $region25: #{weather_lstm_forward.1} parent=1 // pred_fallthru
      _
    // Predicated region
    $region26: #{weather_lstm_forward.1} parent=1 // pred_check
      _
    $region27: #{weather_lstm_forward.1} parent=1 // pred_check_branch
      %61 = sbr.rel (0) target = $region29
    $region28: #{weather_lstm_forward.1} parent=1 // pred_region
      _
    $region29: #{weather_lstm_forward.1} parent=1 // pred_fallthru
      _
    // Predicated region
    $region30: #{weather_lstm_forward.1} parent=1 // pred_check
      _
    $region31: #{weather_lstm_forward.1} parent=1 // pred_check_branch
      %63 = sbr.rel (0) target = $region33
    $region32: #{weather_lstm_forward.1} parent=1 // pred_region
      _
    $region33: #{weather_lstm_forward.1} parent=1 // pred_fallthru
      _
    // Predicated region
    $region34: #{weather_lstm_forward.1} parent=1 // pred_check
      _
    $region35: #{weather_lstm_forward.1} parent=1 // pred_check_branch
      %65 = sbr.rel (0) target = $region37
    $region36: #{weather_lstm_forward.1} parent=1 // pred_region
      _
    $region37: #{weather_lstm_forward.1} parent=1 // pred_fallthru
      _
    // Predicated region
    $region38: #{weather_lstm_forward.1} parent=1 // pred_check
      _
    $region39: #{weather_lstm_forward.1} parent=1 // pred_check_branch
      %67 = sbr.rel (0) target = $region41
    $region40: #{weather_lstm_forward.1} parent=1 // pred_region
      %68 = dma.done [#allocation4], 2048
    $region41: #{weather_lstm_forward.1} parent=1 // pred_fallthru
      _
    // Predicated region
    $region42: #{weather_lstm_forward.1} parent=1 // pred_check
      _
    $region43: #{weather_lstm_forward.1} parent=1 // pred_check_branch
      %70 = sbr.rel (0) target = $region45
    $region44: #{weather_lstm_forward.1} parent=1 // pred_region
      %71 = dma.done [#allocation6], 2048
    $region45: #{weather_lstm_forward.1} parent=1 // pred_fallthru
      _
    // Predicated region
    $region46: #{weather_lstm_forward.1} parent=1 // pred_check
      _
    $region47: #{weather_lstm_forward.1} parent=1 // pred_check_branch
      %73 = sbr.rel (0) target = $region49
    $region48: #{weather_lstm_forward.1} parent=1 // pred_region
      %74 = dma.done [#allocation6], 2048
    $region49: #{weather_lstm_forward.1} parent=1 // pred_fallthru
      _
    %v75 = vld [vmem:[%s0] sm:$0xff]
    %v76 = vld [vmem:[%s0 + $0x8] sm:$0xff]
    %v77 = vld [vmem:[%s0 + $0x10] sm:$0xff]
    %v78 = vld [vmem:[%s0 + $0x18] sm:$0xff]
    %v79 = vld [vmem:[%s0 + $0x20] sm:$0xff]
    %v80 = vld [vmem:[%s0 + $0x28] sm:$0xff]
    %v81 = vld [vmem:[%s0 + $0x30] sm:$0xff]
    %v82 = vld [vmem:[%s0 + $0x38] sm:$0xff]
    %v83 = vld [vmem:[%s1] sm:$0xff]
    %v84 = vld [vmem:[%s3] sm:$0x3]
    %v86 = vlaneseq
    %v87 = vshrl.u32 %v86, 7
    %v88 = vsub.s32 0, %v87
    %v89 = vrot.slane %v84, %v88
    %v90 = vlaneseq
    %v91 = vshrl.u32 %v90, 7
    %v92 = vsub.s32 1, %v91
    %v93 = vrot.slane %v84, %v92
    %v97 = vcombine.high %v83, %v83
    %vm98 = vcmask 31744
    %v100 = vsel %vm98, %v75, 0
    %v103 = vsel %vm98, %v76, 0
    %v106 = vsel %vm98, %v77, 0
    %v109 = vsel %vm98, %v78, 0
    %v112 = vsel %vm98, %v79, 0
    %v115 = vsel %vm98, %v80, 0
    %v118 = vsel %vm98, %v81, 0
    %v121 = vsel %vm98, %v82, 0
    %vm123 = vcmask 1043456
    %v124 = vsel %vm123, %v83, 0
    %v126 = vsel %vm123, %v97, 0
    %128 = vmatprep.subr.mxu0 0.0
    %129 = vmatpush1.msra.mxu0 0.0
    %130 = vmatprep.subr.mxu0 0.0
    %131 = vmatpush1.msra.mxu0 0.0
    %132 = vmatprep.subr.mxu0 0.0
    %133 = vmatpush1.msra.mxu0 0.0
    %134 = vmatprep.subr.mxu0 0.0
    %135 = vmatpush1.msra.mxu0 0.0
    %136 = vmatprep.subr.mxu0 0.0
    %137 = vmatpush1.msra.mxu0 0.0
    %138 = vmatprep.subr.mxu0 0.0
    %139 = vmatpush1.msra.mxu0 0.0
    %140 = vmatprep.subr.mxu0 0.0
    %141 = vmatpush1.msra.mxu0 0.0
    %142 = vmatprep.subr.mxu0 0.0
    %143 = vmatpush1.msra.mxu0 0.0
    %144 = vmatprep.subr.mxu0 0.0
    %145 = vmatpush1.msra.mxu0 0.0
    %146 = vmatprep.subr.mxu0 0.0
    %147 = vmatpush1.msra.mxu0 0.0
    %148 = vmatprep.subr.mxu0 0.0
    %149 = vmatpush1.msra.mxu0 0.0
    %150 = vmatprep.subr.mxu0 0.0
    %151 = vmatpush1.msra.mxu0 0.0
    %152 = vmatprep.subr.mxu0 0.0
    %153 = vmatpush1.msra.mxu0 0.0
    %154 = vmatprep.subr.mxu0 0.0
    %155 = vmatpush1.msra.mxu0 0.0
    %156 = vmatprep.subr.mxu0 0.0
    %157 = vmatpush1.msra.mxu0 0.0
    %158 = vmatprep.subr.mxu0 %v126
    %159 = vmatpush1.msra.mxu0 %v124
    %160 = vmatprep.subr.mxu0 0.0
    %161 = vmatpush2.msra.mxu0 0.0
    %162 = vmatprep.subr.mxu0 0.0
    %163 = vmatpush2.msra.mxu0 0.0
    %164 = vmatprep.subr.mxu0 0.0
    %165 = vmatpush2.msra.mxu0 0.0
    %166 = vmatprep.subr.mxu0 0.0
    %167 = vmatpush2.msra.mxu0 0.0
    %168 = vmatprep.subr.mxu0 0.0
    %169 = vmatpush2.msra.mxu0 0.0
    %170 = vmatprep.subr.mxu0 0.0
    %171 = vmatpush2.msra.mxu0 0.0
    %172 = vmatprep.subr.mxu0 0.0
    %173 = vmatpush2.msra.mxu0 0.0
    %174 = vmatprep.subr.mxu0 0.0
    %175 = vmatpush2.msra.mxu0 0.0
    %176 = vmatprep.subr.mxu0 0.0
    %177 = vmatpush2.msra.mxu0 0.0
    %178 = vmatprep.subr.mxu0 0.0
    %179 = vmatpush2.msra.mxu0 0.0
    %180 = vmatprep.subr.mxu0 0.0
    %181 = vmatpush2.msra.mxu0 0.0
    %182 = vmatprep.subr.mxu0 0.0
    %183 = vmatpush2.msra.mxu0 0.0
    %184 = vmatprep.subr.mxu0 0.0
    %185 = vmatpush2.msra.mxu0 0.0
    %186 = vmatprep.subr.mxu0 0.0
    %187 = vmatpush2.msra.mxu0 0.0
    %188 = vmatprep.subr.mxu0 0.0
    %189 = vmatpush2.msra.mxu0 0.0
    %190 = vmatprep.subr.mxu0 0.0
    %191 = vmatpush2.msra.mxu0 0.0
    %192 = vmatprep.mubr.f32.mxu0 0.0
    %193 = vmatmul.mubr.f32.gmra.mxu0 %v100
    %v194 = vpop.f32.mrf.mxu0
    %v195 = vadd.f32 %v89, %v194
    %v196 = vpop.f32.mrf.mxu0
    %v197 = vadd.f32 %v93, %v196
    %198 = vmatprep.mubr.f32.mxu0 0.0
    %199 = vmatmul.mubr.f32.gmra.mxu0 %v103
    %v200 = vpop.f32.mrf.mxu0
    %v201 = vadd.f32 %v89, %v200
    %v202 = vpop.f32.mrf.mxu0
    %v203 = vadd.f32 %v93, %v202
    %204 = vmatprep.mubr.f32.mxu0 0.0
    %205 = vmatmul.mubr.f32.gmra.mxu0 %v106
    %v206 = vpop.f32.mrf.mxu0
    %v207 = vadd.f32 %v89, %v206
    %v208 = vpop.f32.mrf.mxu0
    %v209 = vadd.f32 %v93, %v208
    %210 = vmatprep.mubr.f32.mxu0 0.0
    %211 = vmatmul.mubr.f32.gmra.mxu0 %v109
    %v212 = vpop.f32.mrf.mxu0
    %v213 = vadd.f32 %v89, %v212
    %v214 = vpop.f32.mrf.mxu0
    %v215 = vadd.f32 %v93, %v214
    %216 = vmatprep.mubr.f32.mxu0 0.0
    %217 = vmatmul.mubr.f32.gmra.mxu0 %v112
    %v218 = vpop.f32.mrf.mxu0
    %v219 = vadd.f32 %v89, %v218
    %v220 = vpop.f32.mrf.mxu0
    %v221 = vadd.f32 %v93, %v220
    %222 = vmatprep.mubr.f32.mxu0 0.0
    %223 = vmatmul.mubr.f32.gmra.mxu0 %v115
    %v224 = vpop.f32.mrf.mxu0
    %v225 = vadd.f32 %v89, %v224
    %v226 = vpop.f32.mrf.mxu0
    %v227 = vadd.f32 %v93, %v226
    %228 = vmatprep.mubr.f32.mxu0 0.0
    %229 = vmatmul.mubr.f32.gmra.mxu0 %v118
    %v230 = vpop.f32.mrf.mxu0
    %v231 = vadd.f32 %v89, %v230
    %v232 = vpop.f32.mrf.mxu0
    %v233 = vadd.f32 %v93, %v232
    %234 = vmatprep.mubr.f32.mxu0 0.0
    %235 = vmatmul.mubr.f32.gmra.mxu0 %v121
    %v236 = vpop.f32.mrf.mxu0
    %v237 = vadd.f32 %v89, %v236
    %v238 = vpop.f32.mrf.mxu0
    %v239 = vadd.f32 %v93, %v238
    %240 = vdwg.mxu0
    %v241 = vld [vmem:[#allocation3] sm:$0xff]
    %v242 = vld [vmem:[#allocation3 + $0x8] sm:$0xff]
    %v243 = vld [vmem:[#allocation3 + $0x10] sm:$0xff]
    %v244 = vld [vmem:[#allocation3 + $0x18] sm:$0xff]
    %v245 = vld [vmem:[#allocation3 + $0x20] sm:$0xff]
    %v246 = vld [vmem:[#allocation3 + $0x28] sm:$0xff]
    %v247 = vld [vmem:[#allocation3 + $0x30] sm:$0xff]
    %v248 = vld [vmem:[#allocation3 + $0x38] sm:$0xff]
    %v249 = vld [vmem:[#allocation3 + $0x40] sm:$0xff]
    %v250 = vld [vmem:[#allocation3 + $0x48] sm:$0xff]
    %v251 = vld [vmem:[#allocation3 + $0x50] sm:$0xff]
    %v252 = vld [vmem:[#allocation3 + $0x58] sm:$0xff]
    %v253 = vld [vmem:[#allocation3 + $0x60] sm:$0xff]
    %v254 = vld [vmem:[#allocation3 + $0x68] sm:$0xff]
    %v255 = vld [vmem:[#allocation3 + $0x70] sm:$0xff]
    %v256 = vld [vmem:[#allocation3 + $0x78] sm:$0xff]
    %v257 = vld [vmem:[#allocation5] sm:$0xff]
    %v258 = vld [vmem:[#allocation5 + $0x8] sm:$0xff]
    %v259 = vld [vmem:[#allocation5 + $0x10] sm:$0xff]
    %v260 = vld [vmem:[#allocation5 + $0x18] sm:$0xff]
    %v261 = vld [vmem:[#allocation5 + $0x20] sm:$0xff]
    %v262 = vld [vmem:[#allocation5 + $0x28] sm:$0xff]
    %v263 = vld [vmem:[#allocation5 + $0x30] sm:$0xff]
    %v264 = vld [vmem:[#allocation5 + $0x38] sm:$0xff]
    %v265 = vld [vmem:[#allocation5 + $0x40] sm:$0xff]
    %v266 = vld [vmem:[#allocation5 + $0x48] sm:$0xff]
    %v267 = vld [vmem:[#allocation5 + $0x50] sm:$0xff]
    %v268 = vld [vmem:[#allocation5 + $0x58] sm:$0xff]
    %v269 = vld [vmem:[#allocation5 + $0x60] sm:$0xff]
    %v270 = vld [vmem:[#allocation5 + $0x68] sm:$0xff]
    %v271 = vld [vmem:[#allocation5 + $0x70] sm:$0xff]
    %v272 = vld [vmem:[#allocation5 + $0x78] sm:$0xff]
    %v273 = vld [vmem:[#allocation7] sm:$0xff]
    %v274 = vld [vmem:[#allocation7 + $0x8] sm:$0xff]
    %v275 = vld [vmem:[#allocation7 + $0x10] sm:$0xff]
    %v276 = vld [vmem:[#allocation7 + $0x18] sm:$0xff]
    %v277 = vld [vmem:[#allocation7 + $0x20] sm:$0xff]
    %v278 = vld [vmem:[#allocation7 + $0x28] sm:$0xff]
    %v279 = vld [vmem:[#allocation7 + $0x30] sm:$0xff]
    %v280 = vld [vmem:[#allocation7 + $0x38] sm:$0xff]
    %v281 = vld [vmem:[#allocation7 + $0x40] sm:$0xff]
    %v282 = vld [vmem:[#allocation7 + $0x48] sm:$0xff]
    %v283 = vld [vmem:[#allocation7 + $0x50] sm:$0xff]
    %v284 = vld [vmem:[#allocation7 + $0x58] sm:$0xff]
    %v285 = vld [vmem:[#allocation7 + $0x60] sm:$0xff]
    %v286 = vld [vmem:[#allocation7 + $0x68] sm:$0xff]
    %v287 = vld [vmem:[#allocation7 + $0x70] sm:$0xff]
    %v288 = vld [vmem:[#allocation7 + $0x78] sm:$0xff]
    %v289 = vld [vmem:[%s6] sm:$0x3]
    %v290 = vlaneseq
    %v291 = vand.u32 %v290, 127
    %vm292 = vcmp.lt.s32.totalorder %v291, 64
    %vm293 = vcmask 523264
    %v295 = vsel %vm293, 0.0, 0
    %297 = vmatprep.subr.mxu0 0.0
    %298 = vmatpush1.msra.mxu0 0.0
    %299 = vmatprep.subr.mxu0 0.0
    %300 = vmatpush1.msra.mxu0 0.0
    %301 = vmatprep.subr.mxu0 0.0
    %302 = vmatpush1.msra.mxu0 0.0
    %303 = vmatprep.subr.mxu0 0.0
    %304 = vmatpush1.msra.mxu0 0.0
    %305 = vmatprep.subr.mxu0 0.0
    %306 = vmatpush1.msra.mxu0 0.0
    %307 = vmatprep.subr.mxu0 0.0
    %308 = vmatpush1.msra.mxu0 0.0
    %309 = vmatprep.subr.mxu0 0.0
    %310 = vmatpush1.msra.mxu0 0.0
    %311 = vmatprep.subr.mxu0 0.0
    %312 = vmatpush1.msra.mxu0 0.0
    %313 = vmatprep.subr.mxu0 %v288
    %314 = vmatpush1.msra.mxu0 %v287
    %315 = vmatprep.subr.mxu0 %v286
    %316 = vmatpush1.msra.mxu0 %v285
    %317 = vmatprep.subr.mxu0 %v284
    %318 = vmatpush1.msra.mxu0 %v283
    %319 = vmatprep.subr.mxu0 %v282
    %320 = vmatpush1.msra.mxu0 %v281
    %321 = vmatprep.subr.mxu0 %v280
    %322 = vmatpush1.msra.mxu0 %v279
    %323 = vmatprep.subr.mxu0 %v278
    %324 = vmatpush1.msra.mxu0 %v277
    %325 = vmatprep.subr.mxu0 %v276
    %326 = vmatpush1.msra.mxu0 %v275
    %327 = vmatprep.subr.mxu0 %v274
    %328 = vmatpush1.msra.mxu0 %v273
    %329 = vmatprep.subr.mxu0 0.0
    %330 = vmatpush2.msra.mxu0 0.0
    %331 = vmatprep.subr.mxu0 0.0
    %332 = vmatpush2.msra.mxu0 0.0
    %333 = vmatprep.subr.mxu0 0.0
    %334 = vmatpush2.msra.mxu0 0.0
    %335 = vmatprep.subr.mxu0 0.0
    %336 = vmatpush2.msra.mxu0 0.0
    %337 = vmatprep.subr.mxu0 0.0
    %338 = vmatpush2.msra.mxu0 0.0
    %339 = vmatprep.subr.mxu0 0.0
    %340 = vmatpush2.msra.mxu0 0.0
    %341 = vmatprep.subr.mxu0 0.0
    %342 = vmatpush2.msra.mxu0 0.0
    %343 = vmatprep.subr.mxu0 0.0
    %344 = vmatpush2.msra.mxu0 0.0
    %345 = vmatprep.subr.mxu0 0.0
    %346 = vmatpush2.msra.mxu0 0.0
    %347 = vmatprep.subr.mxu0 0.0
    %348 = vmatpush2.msra.mxu0 0.0
    %349 = vmatprep.subr.mxu0 0.0
    %350 = vmatpush2.msra.mxu0 0.0
    %351 = vmatprep.subr.mxu0 0.0
    %352 = vmatpush2.msra.mxu0 0.0
    %353 = vmatprep.subr.mxu0 0.0
    %354 = vmatpush2.msra.mxu0 0.0
    %355 = vmatprep.subr.mxu0 0.0
    %356 = vmatpush2.msra.mxu0 0.0
    %357 = vmatprep.subr.mxu0 0.0
    %358 = vmatpush2.msra.mxu0 0.0
    %359 = vmatprep.subr.mxu0 0.0
    %360 = vmatpush2.msra.mxu0 0.0
    %361 = vmatprep.mubr.f32.mxu0 0.0
    %362 = vmatmul.mubr.f32.gmra.mxu0 %v295
    %v363 = vpop.f32.mrf.mxu0
    %v364 = vadd.f32 0.0, %v363
    %v365 = vpop.f32.mrf.mxu0
    %v366 = vadd.f32 0.0, %v365
    %367 = vdwg.mxu0
    %368 = vmatprep.subr.mxu0 0.0
    %369 = vmatpush1.msra.mxu0 0.0
    %370 = vmatprep.subr.mxu0 0.0
    %371 = vmatpush1.msra.mxu0 0.0
    %372 = vmatprep.subr.mxu0 0.0
    %373 = vmatpush1.msra.mxu0 0.0
    %374 = vmatprep.subr.mxu0 0.0
    %375 = vmatpush1.msra.mxu0 0.0
    %376 = vmatprep.subr.mxu0 0.0
    %377 = vmatpush1.msra.mxu0 0.0
    %378 = vmatprep.subr.mxu0 0.0
    %379 = vmatpush1.msra.mxu0 0.0
    %380 = vmatprep.subr.mxu0 0.0
    %381 = vmatpush1.msra.mxu0 0.0
    %382 = vmatprep.subr.mxu0 0.0
    %383 = vmatpush1.msra.mxu0 0.0
    %384 = vmatprep.subr.mxu0 %v256
    %385 = vmatpush1.msra.mxu0 %v255
    %386 = vmatprep.subr.mxu0 %v254
    %387 = vmatpush1.msra.mxu0 %v253
    %388 = vmatprep.subr.mxu0 %v252
    %389 = vmatpush1.msra.mxu0 %v251
    %390 = vmatprep.subr.mxu0 %v250
    %391 = vmatpush1.msra.mxu0 %v249
    %392 = vmatprep.subr.mxu0 %v248
    %393 = vmatpush1.msra.mxu0 %v247
    %394 = vmatprep.subr.mxu0 %v246
    %395 = vmatpush1.msra.mxu0 %v245
    %396 = vmatprep.subr.mxu0 %v244
    %397 = vmatpush1.msra.mxu0 %v243
    %398 = vmatprep.subr.mxu0 %v242
    %399 = vmatpush1.msra.mxu0 %v241
    %400 = vmatprep.subr.mxu0 0.0
    %401 = vmatpush2.msra.mxu0 0.0
    %402 = vmatprep.subr.mxu0 0.0
    %403 = vmatpush2.msra.mxu0 0.0
    %404 = vmatprep.subr.mxu0 0.0
    %405 = vmatpush2.msra.mxu0 0.0
    %406 = vmatprep.subr.mxu0 0.0
    %407 = vmatpush2.msra.mxu0 0.0
    %408 = vmatprep.subr.mxu0 0.0
    %409 = vmatpush2.msra.mxu0 0.0
    %410 = vmatprep.subr.mxu0 0.0
    %411 = vmatpush2.msra.mxu0 0.0
    %412 = vmatprep.subr.mxu0 0.0
    %413 = vmatpush2.msra.mxu0 0.0
    %414 = vmatprep.subr.mxu0 0.0
    %415 = vmatpush2.msra.mxu0 0.0
    %416 = vmatprep.subr.mxu0 0.0
    %417 = vmatpush2.msra.mxu0 0.0
    %418 = vmatprep.subr.mxu0 0.0
    %419 = vmatpush2.msra.mxu0 0.0
    %420 = vmatprep.subr.mxu0 0.0
    %421 = vmatpush2.msra.mxu0 0.0
    %422 = vmatprep.subr.mxu0 0.0
    %423 = vmatpush2.msra.mxu0 0.0
    %424 = vmatprep.subr.mxu0 0.0
    %425 = vmatpush2.msra.mxu0 0.0
    %426 = vmatprep.subr.mxu0 0.0
    %427 = vmatpush2.msra.mxu0 0.0
    %428 = vmatprep.subr.mxu0 0.0
    %429 = vmatpush2.msra.mxu0 0.0
    %430 = vmatprep.subr.mxu0 0.0
    %431 = vmatpush2.msra.mxu0 0.0
    %432 = vmatprep.mubr.f32.mxu0 0.0
    %433 = vmatmul.mubr.f32.gmra.mxu0 %v295
    %v434 = vpop.f32.mrf.mxu0
    %v435 = vadd.f32 0.0, %v434
    %v436 = vpop.f32.mrf.mxu0
    %v437 = vadd.f32 0.0, %v436
    %438 = vdwg.mxu0
    %v439 = vadd.f32 %v195, %v435
    %v440 = vadd.f32 %v197, %v437
    %v441 = vxor.u32 %v439, 2147483648
    %v442 = vmul.f32 %v441, 1.442695
    %v443 = vpow.pop %v442
    %v444 = vadd.f32 %v443, 1.0
    %v445 = vrcp.pop %v444
    %v446 = vmul.f32 1.0, %v445
    %v447 = vxor.u32 %v440, 2147483648
    %v448 = vmul.f32 %v447, 1.442695
    %v449 = vpow.pop %v448
    %v450 = vadd.f32 %v449, 1.0
    %v451 = vrcp.pop %v450
    %v452 = vmul.f32 1.0, %v451
    %v453 = vtanh.pop %v440
    %v454 = vsel %vm292, %v452, %v453
    %v455 = vmul.f32 %v446, 0.0
    %457 = vrot.lane.b32.xlu0 %v454, 64
    %v458 = vpop.permute.xlu0 %457
    %v460 = vmul.f32 %v446, %v458
    %462 = vrot.lane.b32.xlu0 %v460, 64
    %v463 = vpop.permute.xlu0 %462
    %v465 = vadd.f32 %v455, %v463
    %v466 = vtanh.pop %v465
    %468 = vrot.lane.b32.xlu0 %v466, 64
    %v469 = vpop.permute.xlu0 %468
    %v471 = vmul.f32 %v454, %v469
    %v473 = vsel %vm293, %v471, 0
    %475 = vmatprep.subr.mxu0 0.0
    %476 = vmatpush1.msra.mxu0 0.0
    %477 = vmatprep.subr.mxu0 0.0
    %478 = vmatpush1.msra.mxu0 0.0
    %479 = vmatprep.subr.mxu0 0.0
    %480 = vmatpush1.msra.mxu0 0.0
    %481 = vmatprep.subr.mxu0 0.0
    %482 = vmatpush1.msra.mxu0 0.0
    %483 = vmatprep.subr.mxu0 0.0
    %484 = vmatpush1.msra.mxu0 0.0
    %485 = vmatprep.subr.mxu0 0.0
    %486 = vmatpush1.msra.mxu0 0.0
    %487 = vmatprep.subr.mxu0 0.0
    %488 = vmatpush1.msra.mxu0 0.0
    %489 = vmatprep.subr.mxu0 0.0
    %490 = vmatpush1.msra.mxu0 0.0
    %491 = vmatprep.subr.mxu0 %v272
    %492 = vmatpush1.msra.mxu0 %v271
    %493 = vmatprep.subr.mxu0 %v270
    %494 = vmatpush1.msra.mxu0 %v269
    %495 = vmatprep.subr.mxu0 %v268
    %496 = vmatpush1.msra.mxu0 %v267
    %497 = vmatprep.subr.mxu0 %v266
    %498 = vmatpush1.msra.mxu0 %v265
    %499 = vmatprep.subr.mxu0 %v264
    %500 = vmatpush1.msra.mxu0 %v263
    %501 = vmatprep.subr.mxu0 %v262
    %502 = vmatpush1.msra.mxu0 %v261
    %503 = vmatprep.subr.mxu0 %v260
    %504 = vmatpush1.msra.mxu0 %v259
    %505 = vmatprep.subr.mxu0 %v258
    %506 = vmatpush1.msra.mxu0 %v257
    %507 = vmatprep.subr.mxu0 0.0
    %508 = vmatpush2.msra.mxu0 0.0
    %509 = vmatprep.subr.mxu0 0.0
    %510 = vmatpush2.msra.mxu0 0.0
    %511 = vmatprep.subr.mxu0 0.0
    %512 = vmatpush2.msra.mxu0 0.0
    %513 = vmatprep.subr.mxu0 0.0
    %514 = vmatpush2.msra.mxu0 0.0
    %515 = vmatprep.subr.mxu0 0.0
    %516 = vmatpush2.msra.mxu0 0.0
    %517 = vmatprep.subr.mxu0 0.0
    %518 = vmatpush2.msra.mxu0 0.0
    %519 = vmatprep.subr.mxu0 0.0
    %520 = vmatpush2.msra.mxu0 0.0
    %521 = vmatprep.subr.mxu0 0.0
    %522 = vmatpush2.msra.mxu0 0.0
    %523 = vmatprep.subr.mxu0 0.0
    %524 = vmatpush2.msra.mxu0 0.0
    %525 = vmatprep.subr.mxu0 0.0
    %526 = vmatpush2.msra.mxu0 0.0
    %527 = vmatprep.subr.mxu0 0.0
    %528 = vmatpush2.msra.mxu0 0.0
    %529 = vmatprep.subr.mxu0 0.0
    %530 = vmatpush2.msra.mxu0 0.0
    %531 = vmatprep.subr.mxu0 0.0
    %532 = vmatpush2.msra.mxu0 0.0
    %533 = vmatprep.subr.mxu0 0.0
    %534 = vmatpush2.msra.mxu0 0.0
    %535 = vmatprep.subr.mxu0 0.0
    %536 = vmatpush2.msra.mxu0 0.0
    %537 = vmatprep.subr.mxu0 0.0
    %538 = vmatpush2.msra.mxu0 0.0
    %539 = vmatprep.mubr.f32.mxu0 0.0
    %540 = vmatmul.mubr.f32.gmra.mxu0 %v473
    %v541 = vpop.f32.mrf.mxu0
    %v542 = vadd.f32 %v364, %v541
    %v543 = vpop.f32.mrf.mxu0
    %v544 = vadd.f32 %v366, %v543
    %545 = vdwg.mxu0
    %v547 = vlaneseq
    %v548 = vshrl.u32 %v547, 7
    %v549 = vsub.s32 0, %v548
    %v550 = vrot.slane %v289, %v549
    %v551 = vlaneseq
    %v552 = vshrl.u32 %v551, 7
    %v553 = vsub.s32 1, %v552
    %v554 = vrot.slane %v289, %v553
    %v557 = vadd.f32 %v542, %v550
    %v558 = vadd.f32 %v544, %v554
    %v559 = vxor.u32 %v557, 2147483648
    %v560 = vmul.f32 %v559, 1.442695
    %v561 = vpow.pop %v560
    %v562 = vadd.f32 %v561, 1.0
    %v563 = vrcp.pop %v562
    %v564 = vmul.f32 1.0, %v563
    %v565 = vxor.u32 %v558, 2147483648
    %v566 = vmul.f32 %v565, 1.442695
    %v567 = vpow.pop %v566
    %v568 = vadd.f32 %v567, 1.0
    %v569 = vrcp.pop %v568
    %v570 = vmul.f32 1.0, %v569
    %v571 = vtanh.pop %v558
    %v572 = vsel %vm292, %v570, %v571
    %v573 = vmul.f32 %v564, 0.0
    %575 = vrot.lane.b32.xlu0 %v572, 64
    %v576 = vpop.permute.xlu0 %575
    %v578 = vmul.f32 %v564, %v576
    %580 = vrot.lane.b32.xlu0 %v578, 64
    %v581 = vpop.permute.xlu0 %580
    %v583 = vadd.f32 %v573, %v581
    %v584 = vtanh.pop %v583
    %586 = vrot.lane.b32.xlu0 %v584, 64
    %v587 = vpop.permute.xlu0 %586
    %v589 = vmul.f32 %v572, %v587
    %v591 = vsel %vm293, %v589, 0
    %593 = vmatprep.subr.mxu0 0.0
    %594 = vmatpush1.msra.mxu0 0.0
    %595 = vmatprep.subr.mxu0 0.0
    %596 = vmatpush1.msra.mxu0 0.0
    %597 = vmatprep.subr.mxu0 0.0
    %598 = vmatpush1.msra.mxu0 0.0
    %599 = vmatprep.subr.mxu0 0.0
    %600 = vmatpush1.msra.mxu0 0.0
    %601 = vmatprep.subr.mxu0 0.0
    %602 = vmatpush1.msra.mxu0 0.0
    %603 = vmatprep.subr.mxu0 0.0
    %604 = vmatpush1.msra.mxu0 0.0
    %605 = vmatprep.subr.mxu0 0.0
    %606 = vmatpush1.msra.mxu0 0.0
    %607 = vmatprep.subr.mxu0 0.0
    %608 = vmatpush1.msra.mxu0 0.0
    %609 = vmatprep.subr.mxu0 %v288
    %610 = vmatpush1.msra.mxu0 %v287
    %611 = vmatprep.subr.mxu0 %v286
    %612 = vmatpush1.msra.mxu0 %v285
    %613 = vmatprep.subr.mxu0 %v284
    %614 = vmatpush1.msra.mxu0 %v283
    %615 = vmatprep.subr.mxu0 %v282
    %616 = vmatpush1.msra.mxu0 %v281
    %617 = vmatprep.subr.mxu0 %v280
    %618 = vmatpush1.msra.mxu0 %v279
    %619 = vmatprep.subr.mxu0 %v278
    %620 = vmatpush1.msra.mxu0 %v277
    %621 = vmatprep.subr.mxu0 %v276
    %622 = vmatpush1.msra.mxu0 %v275
    %623 = vmatprep.subr.mxu0 %v274
    %624 = vmatpush1.msra.mxu0 %v273
    %625 = vmatprep.subr.mxu0 0.0
    %626 = vmatpush2.msra.mxu0 0.0
    %627 = vmatprep.subr.mxu0 0.0
    %628 = vmatpush2.msra.mxu0 0.0
    %629 = vmatprep.subr.mxu0 0.0
    %630 = vmatpush2.msra.mxu0 0.0
    %631 = vmatprep.subr.mxu0 0.0
    %632 = vmatpush2.msra.mxu0 0.0
    %633 = vmatprep.subr.mxu0 0.0
    %634 = vmatpush2.msra.mxu0 0.0
    %635 = vmatprep.subr.mxu0 0.0
    %636 = vmatpush2.msra.mxu0 0.0
    %637 = vmatprep.subr.mxu0 0.0
    %638 = vmatpush2.msra.mxu0 0.0
    %639 = vmatprep.subr.mxu0 0.0
    %640 = vmatpush2.msra.mxu0 0.0
    %641 = vmatprep.subr.mxu0 0.0
    %642 = vmatpush2.msra.mxu0 0.0
    %643 = vmatprep.subr.mxu0 0.0
    %644 = vmatpush2.msra.mxu0 0.0
    %645 = vmatprep.subr.mxu0 0.0
    %646 = vmatpush2.msra.mxu0 0.0
    %647 = vmatprep.subr.mxu0 0.0
    %648 = vmatpush2.msra.mxu0 0.0
    %649 = vmatprep.subr.mxu0 0.0
    %650 = vmatpush2.msra.mxu0 0.0
    %651 = vmatprep.subr.mxu0 0.0
    %652 = vmatpush2.msra.mxu0 0.0
    %653 = vmatprep.subr.mxu0 0.0
    %654 = vmatpush2.msra.mxu0 0.0
    %655 = vmatprep.subr.mxu0 0.0
    %656 = vmatpush2.msra.mxu0 0.0
    %657 = vmatprep.mubr.f32.mxu0 0.0
    %658 = vmatmul.mubr.f32.gmra.mxu0 %v591
    %v659 = vpop.f32.mrf.mxu0
    %v660 = vadd.f32 0.0, %v659
    %v661 = vpop.f32.mrf.mxu0
    %v662 = vadd.f32 0.0, %v661
    %663 = vdwg.mxu0
    %664 = vmatprep.subr.mxu0 0.0
    %665 = vmatpush1.msra.mxu0 0.0
    %666 = vmatprep.subr.mxu0 0.0
    %667 = vmatpush1.msra.mxu0 0.0
    %668 = vmatprep.subr.mxu0 0.0
    %669 = vmatpush1.msra.mxu0 0.0
    %670 = vmatprep.subr.mxu0 0.0
    %671 = vmatpush1.msra.mxu0 0.0
    %672 = vmatprep.subr.mxu0 0.0
    %673 = vmatpush1.msra.mxu0 0.0
    %674 = vmatprep.subr.mxu0 0.0
    %675 = vmatpush1.msra.mxu0 0.0
    %676 = vmatprep.subr.mxu0 0.0
    %677 = vmatpush1.msra.mxu0 0.0
    %678 = vmatprep.subr.mxu0 0.0
    %679 = vmatpush1.msra.mxu0 0.0
    %680 = vmatprep.subr.mxu0 %v256
    %681 = vmatpush1.msra.mxu0 %v255
    %682 = vmatprep.subr.mxu0 %v254
    %683 = vmatpush1.msra.mxu0 %v253
    %684 = vmatprep.subr.mxu0 %v252
    %685 = vmatpush1.msra.mxu0 %v251
    %686 = vmatprep.subr.mxu0 %v250
    %687 = vmatpush1.msra.mxu0 %v249
    %688 = vmatprep.subr.mxu0 %v248
    %689 = vmatpush1.msra.mxu0 %v247
    %690 = vmatprep.subr.mxu0 %v246
    %691 = vmatpush1.msra.mxu0 %v245
    %692 = vmatprep.subr.mxu0 %v244
    %693 = vmatpush1.msra.mxu0 %v243
    %694 = vmatprep.subr.mxu0 %v242
    %695 = vmatpush1.msra.mxu0 %v241
    %696 = vmatprep.subr.mxu0 0.0
    %697 = vmatpush2.msra.mxu0 0.0
    %698 = vmatprep.subr.mxu0 0.0
    %699 = vmatpush2.msra.mxu0 0.0
    %700 = vmatprep.subr.mxu0 0.0
    %701 = vmatpush2.msra.mxu0 0.0
    %702 = vmatprep.subr.mxu0 0.0
    %703 = vmatpush2.msra.mxu0 0.0
    %704 = vmatprep.subr.mxu0 0.0
    %705 = vmatpush2.msra.mxu0 0.0
    %706 = vmatprep.subr.mxu0 0.0
    %707 = vmatpush2.msra.mxu0 0.0
    %708 = vmatprep.subr.mxu0 0.0
    %709 = vmatpush2.msra.mxu0 0.0
    %710 = vmatprep.subr.mxu0 0.0
    %711 = vmatpush2.msra.mxu0 0.0
    %712 = vmatprep.subr.mxu0 0.0
    %713 = vmatpush2.msra.mxu0 0.0
    %714 = vmatprep.subr.mxu0 0.0
    %715 = vmatpush2.msra.mxu0 0.0
    %716 = vmatprep.subr.mxu0 0.0
    %717 = vmatpush2.msra.mxu0 0.0
    %718 = vmatprep.subr.mxu0 0.0
    %719 = vmatpush2.msra.mxu0 0.0
    %720 = vmatprep.subr.mxu0 0.0
    %721 = vmatpush2.msra.mxu0 0.0
    %722 = vmatprep.subr.mxu0 0.0
    %723 = vmatpush2.msra.mxu0 0.0
    %724 = vmatprep.subr.mxu0 0.0
    %725 = vmatpush2.msra.mxu0 0.0
    %726 = vmatprep.subr.mxu0 0.0
    %727 = vmatpush2.msra.mxu0 0.0
    %728 = vmatprep.mubr.f32.mxu0 0.0
    %729 = vmatmul.mubr.f32.gmra.mxu0 %v473
    %v730 = vpop.f32.mrf.mxu0
    %v731 = vadd.f32 0.0, %v730
    %v732 = vpop.f32.mrf.mxu0
    %v733 = vadd.f32 0.0, %v732
    %734 = vdwg.mxu0
    %v735 = vadd.f32 %v201, %v731
    %v736 = vadd.f32 %v203, %v733
    %v737 = vxor.u32 %v735, 2147483648
    %v738 = vmul.f32 %v737, 1.442695
    %v739 = vpow.pop %v738
    %v740 = vadd.f32 %v739, 1.0
    %v741 = vrcp.pop %v740
    %v742 = vmul.f32 1.0, %v741
    %v743 = vxor.u32 %v736, 2147483648
    %v744 = vmul.f32 %v743, 1.442695
    %v745 = vpow.pop %v744
    %v746 = vadd.f32 %v745, 1.0
    %v747 = vrcp.pop %v746
    %v748 = vmul.f32 1.0, %v747
    %v749 = vtanh.pop %v736
    %v750 = vsel %vm292, %v748, %v749
    %v751 = vmul.f32 %v742, %v465
    %753 = vrot.lane.b32.xlu0 %v750, 64
    %v754 = vpop.permute.xlu0 %753
    %v756 = vmul.f32 %v742, %v754
    %758 = vrot.lane.b32.xlu0 %v756, 64
    %v759 = vpop.permute.xlu0 %758
    %v761 = vadd.f32 %v751, %v759
    %v762 = vtanh.pop %v761
    %764 = vrot.lane.b32.xlu0 %v762, 64
    %v765 = vpop.permute.xlu0 %764
    %v767 = vmul.f32 %v750, %v765
    %v769 = vsel %vm293, %v767, 0
    %771 = vmatprep.subr.mxu0 0.0
    %772 = vmatpush1.msra.mxu0 0.0
    %773 = vmatprep.subr.mxu0 0.0
    %774 = vmatpush1.msra.mxu0 0.0
    %775 = vmatprep.subr.mxu0 0.0
    %776 = vmatpush1.msra.mxu0 0.0
    %777 = vmatprep.subr.mxu0 0.0
    %778 = vmatpush1.msra.mxu0 0.0
    %779 = vmatprep.subr.mxu0 0.0
    %780 = vmatpush1.msra.mxu0 0.0
    %781 = vmatprep.subr.mxu0 0.0
    %782 = vmatpush1.msra.mxu0 0.0
    %783 = vmatprep.subr.mxu0 0.0
    %784 = vmatpush1.msra.mxu0 0.0
    %785 = vmatprep.subr.mxu0 0.0
    %786 = vmatpush1.msra.mxu0 0.0
    %787 = vmatprep.subr.mxu0 %v272
    %788 = vmatpush1.msra.mxu0 %v271
    %789 = vmatprep.subr.mxu0 %v270
    %790 = vmatpush1.msra.mxu0 %v269
    %791 = vmatprep.subr.mxu0 %v268
    %792 = vmatpush1.msra.mxu0 %v267
    %793 = vmatprep.subr.mxu0 %v266
    %794 = vmatpush1.msra.mxu0 %v265
    %795 = vmatprep.subr.mxu0 %v264
    %796 = vmatpush1.msra.mxu0 %v263
    %797 = vmatprep.subr.mxu0 %v262
    %798 = vmatpush1.msra.mxu0 %v261
    %799 = vmatprep.subr.mxu0 %v260
    %800 = vmatpush1.msra.mxu0 %v259
    %801 = vmatprep.subr.mxu0 %v258
    %802 = vmatpush1.msra.mxu0 %v257
    %803 = vmatprep.subr.mxu0 0.0
    %804 = vmatpush2.msra.mxu0 0.0
    %805 = vmatprep.subr.mxu0 0.0
    %806 = vmatpush2.msra.mxu0 0.0
    %807 = vmatprep.subr.mxu0 0.0
    %808 = vmatpush2.msra.mxu0 0.0
    %809 = vmatprep.subr.mxu0 0.0
    %810 = vmatpush2.msra.mxu0 0.0
    %811 = vmatprep.subr.mxu0 0.0
    %812 = vmatpush2.msra.mxu0 0.0
    %813 = vmatprep.subr.mxu0 0.0
    %814 = vmatpush2.msra.mxu0 0.0
    %815 = vmatprep.subr.mxu0 0.0
    %816 = vmatpush2.msra.mxu0 0.0
    %817 = vmatprep.subr.mxu0 0.0
    %818 = vmatpush2.msra.mxu0 0.0
    %819 = vmatprep.subr.mxu0 0.0
    %820 = vmatpush2.msra.mxu0 0.0
    %821 = vmatprep.subr.mxu0 0.0
    %822 = vmatpush2.msra.mxu0 0.0
    %823 = vmatprep.subr.mxu0 0.0
    %824 = vmatpush2.msra.mxu0 0.0
    %825 = vmatprep.subr.mxu0 0.0
    %826 = vmatpush2.msra.mxu0 0.0
    %827 = vmatprep.subr.mxu0 0.0
    %828 = vmatpush2.msra.mxu0 0.0
    %829 = vmatprep.subr.mxu0 0.0
    %830 = vmatpush2.msra.mxu0 0.0
    %831 = vmatprep.subr.mxu0 0.0
    %832 = vmatpush2.msra.mxu0 0.0
    %833 = vmatprep.subr.mxu0 0.0
    %834 = vmatpush2.msra.mxu0 0.0
    %835 = vmatprep.mubr.f32.mxu0 0.0
    %836 = vmatmul.mubr.f32.gmra.mxu0 %v769
    %v837 = vpop.f32.mrf.mxu0
    %v838 = vadd.f32 %v660, %v837
    %v839 = vpop.f32.mrf.mxu0
    %v840 = vadd.f32 %v662, %v839
    %841 = vdwg.mxu0
    %v842 = vadd.f32 %v838, %v550
    %v843 = vadd.f32 %v840, %v554
    %v844 = vxor.u32 %v842, 2147483648
    %v845 = vmul.f32 %v844, 1.442695
    %v846 = vpow.pop %v845
    %v847 = vadd.f32 %v846, 1.0
    %v848 = vrcp.pop %v847
    %v849 = vmul.f32 1.0, %v848
    %v850 = vxor.u32 %v843, 2147483648
    %v851 = vmul.f32 %v850, 1.442695
    %v852 = vpow.pop %v851
    %v853 = vadd.f32 %v852, 1.0
    %v854 = vrcp.pop %v853
    %v855 = vmul.f32 1.0, %v854
    %v856 = vtanh.pop %v843
    %v857 = vsel %vm292, %v855, %v856
    %v858 = vmul.f32 %v849, %v583
    %860 = vrot.lane.b32.xlu0 %v857, 64
    %v861 = vpop.permute.xlu0 %860
    %v863 = vmul.f32 %v849, %v861
    %865 = vrot.lane.b32.xlu0 %v863, 64
    %v866 = vpop.permute.xlu0 %865
    %v868 = vadd.f32 %v858, %v866
    %v869 = vtanh.pop %v868
    %871 = vrot.lane.b32.xlu0 %v869, 64
    %v872 = vpop.permute.xlu0 %871
    %v874 = vmul.f32 %v857, %v872
    %v876 = vsel %vm293, %v874, 0
    %878 = vmatprep.subr.mxu0 0.0
    %879 = vmatpush1.msra.mxu0 0.0
    %880 = vmatprep.subr.mxu0 0.0
    %881 = vmatpush1.msra.mxu0 0.0
    %882 = vmatprep.subr.mxu0 0.0
    %883 = vmatpush1.msra.mxu0 0.0
    %884 = vmatprep.subr.mxu0 0.0
    %885 = vmatpush1.msra.mxu0 0.0
    %886 = vmatprep.subr.mxu0 0.0
    %887 = vmatpush1.msra.mxu0 0.0
    %888 = vmatprep.subr.mxu0 0.0
    %889 = vmatpush1.msra.mxu0 0.0
    %890 = vmatprep.subr.mxu0 0.0
    %891 = vmatpush1.msra.mxu0 0.0
    %892 = vmatprep.subr.mxu0 0.0
    %893 = vmatpush1.msra.mxu0 0.0
    %894 = vmatprep.subr.mxu0 %v288
    %895 = vmatpush1.msra.mxu0 %v287
    %896 = vmatprep.subr.mxu0 %v286
    %897 = vmatpush1.msra.mxu0 %v285
    %898 = vmatprep.subr.mxu0 %v284
    %899 = vmatpush1.msra.mxu0 %v283
    %900 = vmatprep.subr.mxu0 %v282
    %901 = vmatpush1.msra.mxu0 %v281
    %902 = vmatprep.subr.mxu0 %v280
    %903 = vmatpush1.msra.mxu0 %v279
    %904 = vmatprep.subr.mxu0 %v278
    %905 = vmatpush1.msra.mxu0 %v277
    %906 = vmatprep.subr.mxu0 %v276
    %907 = vmatpush1.msra.mxu0 %v275
    %908 = vmatprep.subr.mxu0 %v274
    %909 = vmatpush1.msra.mxu0 %v273
    %910 = vmatprep.subr.mxu0 0.0
    %911 = vmatpush2.msra.mxu0 0.0
    %912 = vmatprep.subr.mxu0 0.0
    %913 = vmatpush2.msra.mxu0 0.0
    %914 = vmatprep.subr.mxu0 0.0
    %915 = vmatpush2.msra.mxu0 0.0
    %916 = vmatprep.subr.mxu0 0.0
    %917 = vmatpush2.msra.mxu0 0.0
    %918 = vmatprep.subr.mxu0 0.0
    %919 = vmatpush2.msra.mxu0 0.0
    %920 = vmatprep.subr.mxu0 0.0
    %921 = vmatpush2.msra.mxu0 0.0
    %922 = vmatprep.subr.mxu0 0.0
    %923 = vmatpush2.msra.mxu0 0.0
    %924 = vmatprep.subr.mxu0 0.0
    %925 = vmatpush2.msra.mxu0 0.0
    %926 = vmatprep.subr.mxu0 0.0
    %927 = vmatpush2.msra.mxu0 0.0
    %928 = vmatprep.subr.mxu0 0.0
    %929 = vmatpush2.msra.mxu0 0.0
    %930 = vmatprep.subr.mxu0 0.0
    %931 = vmatpush2.msra.mxu0 0.0
    %932 = vmatprep.subr.mxu0 0.0
    %933 = vmatpush2.msra.mxu0 0.0
    %934 = vmatprep.subr.mxu0 0.0
    %935 = vmatpush2.msra.mxu0 0.0
    %936 = vmatprep.subr.mxu0 0.0
    %937 = vmatpush2.msra.mxu0 0.0
    %938 = vmatprep.subr.mxu0 0.0
    %939 = vmatpush2.msra.mxu0 0.0
    %940 = vmatprep.subr.mxu0 0.0
    %941 = vmatpush2.msra.mxu0 0.0
    %942 = vmatprep.mubr.f32.mxu0 0.0
    %943 = vmatmul.mubr.f32.gmra.mxu0 %v876
    %v944 = vpop.f32.mrf.mxu0
    %v945 = vadd.f32 0.0, %v944
    %v946 = vpop.f32.mrf.mxu0
    %v947 = vadd.f32 0.0, %v946
    %948 = vdwg.mxu0
    %949 = vmatprep.subr.mxu0 0.0
    %950 = vmatpush1.msra.mxu0 0.0
    %951 = vmatprep.subr.mxu0 0.0
    %952 = vmatpush1.msra.mxu0 0.0
    %953 = vmatprep.subr.mxu0 0.0
    %954 = vmatpush1.msra.mxu0 0.0
    %955 = vmatprep.subr.mxu0 0.0
    %956 = vmatpush1.msra.mxu0 0.0
    %957 = vmatprep.subr.mxu0 0.0
    %958 = vmatpush1.msra.mxu0 0.0
    %959 = vmatprep.subr.mxu0 0.0
    %960 = vmatpush1.msra.mxu0 0.0
    %961 = vmatprep.subr.mxu0 0.0
    %962 = vmatpush1.msra.mxu0 0.0
    %963 = vmatprep.subr.mxu0 0.0
    %964 = vmatpush1.msra.mxu0 0.0
    %965 = vmatprep.subr.mxu0 %v256
    %966 = vmatpush1.msra.mxu0 %v255
    %967 = vmatprep.subr.mxu0 %v254
    %968 = vmatpush1.msra.mxu0 %v253
    %969 = vmatprep.subr.mxu0 %v252
    %970 = vmatpush1.msra.mxu0 %v251
    %971 = vmatprep.subr.mxu0 %v250
    %972 = vmatpush1.msra.mxu0 %v249
    %973 = vmatprep.subr.mxu0 %v248
    %974 = vmatpush1.msra.mxu0 %v247
    %975 = vmatprep.subr.mxu0 %v246
    %976 = vmatpush1.msra.mxu0 %v245
    %977 = vmatprep.subr.mxu0 %v244
    %978 = vmatpush1.msra.mxu0 %v243
    %979 = vmatprep.subr.mxu0 %v242
    %980 = vmatpush1.msra.mxu0 %v241
    %981 = vmatprep.subr.mxu0 0.0
    %982 = vmatpush2.msra.mxu0 0.0
    %983 = vmatprep.subr.mxu0 0.0
    %984 = vmatpush2.msra.mxu0 0.0
    %985 = vmatprep.subr.mxu0 0.0
    %986 = vmatpush2.msra.mxu0 0.0
    %987 = vmatprep.subr.mxu0 0.0
    %988 = vmatpush2.msra.mxu0 0.0
    %989 = vmatprep.subr.mxu0 0.0
    %990 = vmatpush2.msra.mxu0 0.0
    %991 = vmatprep.subr.mxu0 0.0
    %992 = vmatpush2.msra.mxu0 0.0
    %993 = vmatprep.subr.mxu0 0.0
    %994 = vmatpush2.msra.mxu0 0.0
    %995 = vmatprep.subr.mxu0 0.0
    %996 = vmatpush2.msra.mxu0 0.0
    %997 = vmatprep.subr.mxu0 0.0
    %998 = vmatpush2.msra.mxu0 0.0
    %999 = vmatprep.subr.mxu0 0.0
    %1000 = vmatpush2.msra.mxu0 0.0
    %1001 = vmatprep.subr.mxu0 0.0
    %1002 = vmatpush2.msra.mxu0 0.0
    %1003 = vmatprep.subr.mxu0 0.0
    %1004 = vmatpush2.msra.mxu0 0.0
    %1005 = vmatprep.subr.mxu0 0.0
    %1006 = vmatpush2.msra.mxu0 0.0
    %1007 = vmatprep.subr.mxu0 0.0
    %1008 = vmatpush2.msra.mxu0 0.0
    %1009 = vmatprep.subr.mxu0 0.0
    %1010 = vmatpush2.msra.mxu0 0.0
    %1011 = vmatprep.subr.mxu0 0.0
    %1012 = vmatpush2.msra.mxu0 0.0
    %1013 = vmatprep.mubr.f32.mxu0 0.0
    %1014 = vmatmul.mubr.f32.gmra.mxu0 %v769
    %v1015 = vpop.f32.mrf.mxu0
    %v1016 = vadd.f32 0.0, %v1015
    %v1017 = vpop.f32.mrf.mxu0
    %v1018 = vadd.f32 0.0, %v1017
    %1019 = vdwg.mxu0
    %v1020 = vadd.f32 %v207, %v1016
    %v1021 = vadd.f32 %v209, %v1018
    %v1022 = vxor.u32 %v1020, 2147483648
    %v1023 = vmul.f32 %v1022, 1.442695
    %v1024 = vpow.pop %v1023
    %v1025 = vadd.f32 %v1024, 1.0
    %v1026 = vrcp.pop %v1025
    %v1027 = vmul.f32 1.0, %v1026
    %v1028 = vxor.u32 %v1021, 2147483648
    %v1029 = vmul.f32 %v1028, 1.442695
    %v1030 = vpow.pop %v1029
    %v1031 = vadd.f32 %v1030, 1.0
    %v1032 = vrcp.pop %v1031
    %v1033 = vmul.f32 1.0, %v1032
    %v1034 = vtanh.pop %v1021
    %v1035 = vsel %vm292, %v1033, %v1034
    %v1036 = vmul.f32 %v1027, %v761
    %1038 = vrot.lane.b32.xlu0 %v1035, 64
    %v1039 = vpop.permute.xlu0 %1038
    %v1041 = vmul.f32 %v1027, %v1039
    %1043 = vrot.lane.b32.xlu0 %v1041, 64
    %v1044 = vpop.permute.xlu0 %1043
    %v1046 = vadd.f32 %v1036, %v1044
    %v1047 = vtanh.pop %v1046
    %1049 = vrot.lane.b32.xlu0 %v1047, 64
    %v1050 = vpop.permute.xlu0 %1049
    %v1052 = vmul.f32 %v1035, %v1050
    %v1054 = vsel %vm293, %v1052, 0
    %1056 = vmatprep.subr.mxu0 0.0
    %1057 = vmatpush1.msra.mxu0 0.0
    %1058 = vmatprep.subr.mxu0 0.0
    %1059 = vmatpush1.msra.mxu0 0.0
    %1060 = vmatprep.subr.mxu0 0.0
    %1061 = vmatpush1.msra.mxu0 0.0
    %1062 = vmatprep.subr.mxu0 0.0
    %1063 = vmatpush1.msra.mxu0 0.0
    %1064 = vmatprep.subr.mxu0 0.0
    %1065 = vmatpush1.msra.mxu0 0.0
    %1066 = vmatprep.subr.mxu0 0.0
    %1067 = vmatpush1.msra.mxu0 0.0
    %1068 = vmatprep.subr.mxu0 0.0
    %1069 = vmatpush1.msra.mxu0 0.0
    %1070 = vmatprep.subr.mxu0 0.0
    %1071 = vmatpush1.msra.mxu0 0.0
    %1072 = vmatprep.subr.mxu0 %v272
    %1073 = vmatpush1.msra.mxu0 %v271
    %1074 = vmatprep.subr.mxu0 %v270
    %1075 = vmatpush1.msra.mxu0 %v269
    %1076 = vmatprep.subr.mxu0 %v268
    %1077 = vmatpush1.msra.mxu0 %v267
    %1078 = vmatprep.subr.mxu0 %v266
    %1079 = vmatpush1.msra.mxu0 %v265
    %1080 = vmatprep.subr.mxu0 %v264
    %1081 = vmatpush1.msra.mxu0 %v263
    %1082 = vmatprep.subr.mxu0 %v262
    %1083 = vmatpush1.msra.mxu0 %v261
    %1084 = vmatprep.subr.mxu0 %v260
    %1085 = vmatpush1.msra.mxu0 %v259
    %1086 = vmatprep.subr.mxu0 %v258
    %1087 = vmatpush1.msra.mxu0 %v257
    %1088 = vmatprep.subr.mxu0 0.0
    %1089 = vmatpush2.msra.mxu0 0.0
    %1090 = vmatprep.subr.mxu0 0.0
    %1091 = vmatpush2.msra.mxu0 0.0
    %1092 = vmatprep.subr.mxu0 0.0
    %1093 = vmatpush2.msra.mxu0 0.0
    %1094 = vmatprep.subr.mxu0 0.0
    %1095 = vmatpush2.msra.mxu0 0.0
    %1096 = vmatprep.subr.mxu0 0.0
    %1097 = vmatpush2.msra.mxu0 0.0
    %1098 = vmatprep.subr.mxu0 0.0
    %1099 = vmatpush2.msra.mxu0 0.0
    %1100 = vmatprep.subr.mxu0 0.0
    %1101 = vmatpush2.msra.mxu0 0.0
    %1102 = vmatprep.subr.mxu0 0.0
    %1103 = vmatpush2.msra.mxu0 0.0
    %1104 = vmatprep.subr.mxu0 0.0
    %1105 = vmatpush2.msra.mxu0 0.0
    %1106 = vmatprep.subr.mxu0 0.0
    %1107 = vmatpush2.msra.mxu0 0.0
    %1108 = vmatprep.subr.mxu0 0.0
    %1109 = vmatpush2.msra.mxu0 0.0
    %1110 = vmatprep.subr.mxu0 0.0
    %1111 = vmatpush2.msra.mxu0 0.0
    %1112 = vmatprep.subr.mxu0 0.0
    %1113 = vmatpush2.msra.mxu0 0.0
    %1114 = vmatprep.subr.mxu0 0.0
    %1115 = vmatpush2.msra.mxu0 0.0
    %1116 = vmatprep.subr.mxu0 0.0
    %1117 = vmatpush2.msra.mxu0 0.0
    %1118 = vmatprep.subr.mxu0 0.0
    %1119 = vmatpush2.msra.mxu0 0.0
    %1120 = vmatprep.mubr.f32.mxu0 0.0
    %1121 = vmatmul.mubr.f32.gmra.mxu0 %v1054
    %v1122 = vpop.f32.mrf.mxu0
    %v1123 = vadd.f32 %v945, %v1122
    %v1124 = vpop.f32.mrf.mxu0
    %v1125 = vadd.f32 %v947, %v1124
    %1126 = vdwg.mxu0
    %v1127 = vadd.f32 %v1123, %v550
    %v1128 = vadd.f32 %v1125, %v554
    %v1129 = vxor.u32 %v1127, 2147483648
    %v1130 = vmul.f32 %v1129, 1.442695
    %v1131 = vpow.pop %v1130
    %v1132 = vadd.f32 %v1131, 1.0
    %v1133 = vrcp.pop %v1132
    %v1134 = vmul.f32 1.0, %v1133
    %v1135 = vxor.u32 %v1128, 2147483648
    %v1136 = vmul.f32 %v1135, 1.442695
    %v1137 = vpow.pop %v1136
    %v1138 = vadd.f32 %v1137, 1.0
    %v1139 = vrcp.pop %v1138
    %v1140 = vmul.f32 1.0, %v1139
    %v1141 = vtanh.pop %v1128
    %v1142 = vsel %vm292, %v1140, %v1141
    %v1143 = vmul.f32 %v1134, %v868
    %1145 = vrot.lane.b32.xlu0 %v1142, 64
    %v1146 = vpop.permute.xlu0 %1145
    %v1148 = vmul.f32 %v1134, %v1146
    %1150 = vrot.lane.b32.xlu0 %v1148, 64
    %v1151 = vpop.permute.xlu0 %1150
    %v1153 = vadd.f32 %v1143, %v1151
    %v1154 = vtanh.pop %v1153
    %1156 = vrot.lane.b32.xlu0 %v1154, 64
    %v1157 = vpop.permute.xlu0 %1156
    %v1159 = vmul.f32 %v1142, %v1157
    %v1161 = vsel %vm293, %v1159, 0
    %1163 = vmatprep.subr.mxu0 0.0
    %1164 = vmatpush1.msra.mxu0 0.0
    %1165 = vmatprep.subr.mxu0 0.0
    %1166 = vmatpush1.msra.mxu0 0.0
    %1167 = vmatprep.subr.mxu0 0.0
    %1168 = vmatpush1.msra.mxu0 0.0
    %1169 = vmatprep.subr.mxu0 0.0
    %1170 = vmatpush1.msra.mxu0 0.0
    %1171 = vmatprep.subr.mxu0 0.0
    %1172 = vmatpush1.msra.mxu0 0.0
    %1173 = vmatprep.subr.mxu0 0.0
    %1174 = vmatpush1.msra.mxu0 0.0
    %1175 = vmatprep.subr.mxu0 0.0
    %1176 = vmatpush1.msra.mxu0 0.0
    %1177 = vmatprep.subr.mxu0 0.0
    %1178 = vmatpush1.msra.mxu0 0.0
    %1179 = vmatprep.subr.mxu0 %v288
    %1180 = vmatpush1.msra.mxu0 %v287
    %1181 = vmatprep.subr.mxu0 %v286
    %1182 = vmatpush1.msra.mxu0 %v285
    %1183 = vmatprep.subr.mxu0 %v284
    %1184 = vmatpush1.msra.mxu0 %v283
    %1185 = vmatprep.subr.mxu0 %v282
    %1186 = vmatpush1.msra.mxu0 %v281
    %1187 = vmatprep.subr.mxu0 %v280
    %1188 = vmatpush1.msra.mxu0 %v279
    %1189 = vmatprep.subr.mxu0 %v278
    %1190 = vmatpush1.msra.mxu0 %v277
    %1191 = vmatprep.subr.mxu0 %v276
    %1192 = vmatpush1.msra.mxu0 %v275
    %1193 = vmatprep.subr.mxu0 %v274
    %1194 = vmatpush1.msra.mxu0 %v273
    %1195 = vmatprep.subr.mxu0 0.0
    %1196 = vmatpush2.msra.mxu0 0.0
    %1197 = vmatprep.subr.mxu0 0.0
    %1198 = vmatpush2.msra.mxu0 0.0
    %1199 = vmatprep.subr.mxu0 0.0
    %1200 = vmatpush2.msra.mxu0 0.0
    %1201 = vmatprep.subr.mxu0 0.0
    %1202 = vmatpush2.msra.mxu0 0.0
    %1203 = vmatprep.subr.mxu0 0.0
    %1204 = vmatpush2.msra.mxu0 0.0
    %1205 = vmatprep.subr.mxu0 0.0
    %1206 = vmatpush2.msra.mxu0 0.0
    %1207 = vmatprep.subr.mxu0 0.0
    %1208 = vmatpush2.msra.mxu0 0.0
    %1209 = vmatprep.subr.mxu0 0.0
    %1210 = vmatpush2.msra.mxu0 0.0
    %1211 = vmatprep.subr.mxu0 0.0
    %1212 = vmatpush2.msra.mxu0 0.0
    %1213 = vmatprep.subr.mxu0 0.0
    %1214 = vmatpush2.msra.mxu0 0.0
    %1215 = vmatprep.subr.mxu0 0.0
    %1216 = vmatpush2.msra.mxu0 0.0
    %1217 = vmatprep.subr.mxu0 0.0
    %1218 = vmatpush2.msra.mxu0 0.0
    %1219 = vmatprep.subr.mxu0 0.0
    %1220 = vmatpush2.msra.mxu0 0.0
    %1221 = vmatprep.subr.mxu0 0.0
    %1222 = vmatpush2.msra.mxu0 0.0
    %1223 = vmatprep.subr.mxu0 0.0
    %1224 = vmatpush2.msra.mxu0 0.0
    %1225 = vmatprep.subr.mxu0 0.0
    %1226 = vmatpush2.msra.mxu0 0.0
    %1227 = vmatprep.mubr.f32.mxu0 0.0
    %1228 = vmatmul.mubr.f32.gmra.mxu0 %v1161
    %v1229 = vpop.f32.mrf.mxu0
    %v1230 = vadd.f32 0.0, %v1229
    %v1231 = vpop.f32.mrf.mxu0
    %v1232 = vadd.f32 0.0, %v1231
    %1233 = vdwg.mxu0
    %1234 = vmatprep.subr.mxu0 0.0
    %1235 = vmatpush1.msra.mxu0 0.0
    %1236 = vmatprep.subr.mxu0 0.0
    %1237 = vmatpush1.msra.mxu0 0.0
    %1238 = vmatprep.subr.mxu0 0.0
    %1239 = vmatpush1.msra.mxu0 0.0
    %1240 = vmatprep.subr.mxu0 0.0
    %1241 = vmatpush1.msra.mxu0 0.0
    %1242 = vmatprep.subr.mxu0 0.0
    %1243 = vmatpush1.msra.mxu0 0.0
    %1244 = vmatprep.subr.mxu0 0.0
    %1245 = vmatpush1.msra.mxu0 0.0
    %1246 = vmatprep.subr.mxu0 0.0
    %1247 = vmatpush1.msra.mxu0 0.0
    %1248 = vmatprep.subr.mxu0 0.0
    %1249 = vmatpush1.msra.mxu0 0.0
    %1250 = vmatprep.subr.mxu0 %v256
    %1251 = vmatpush1.msra.mxu0 %v255
    %1252 = vmatprep.subr.mxu0 %v254
    %1253 = vmatpush1.msra.mxu0 %v253
    %1254 = vmatprep.subr.mxu0 %v252
    %1255 = vmatpush1.msra.mxu0 %v251
    %1256 = vmatprep.subr.mxu0 %v250
    %1257 = vmatpush1.msra.mxu0 %v249
    %1258 = vmatprep.subr.mxu0 %v248
    %1259 = vmatpush1.msra.mxu0 %v247
    %1260 = vmatprep.subr.mxu0 %v246
    %1261 = vmatpush1.msra.mxu0 %v245
    %1262 = vmatprep.subr.mxu0 %v244
    %1263 = vmatpush1.msra.mxu0 %v243
    %1264 = vmatprep.subr.mxu0 %v242
    %1265 = vmatpush1.msra.mxu0 %v241
    %1266 = vmatprep.subr.mxu0 0.0
    %1267 = vmatpush2.msra.mxu0 0.0
    %1268 = vmatprep.subr.mxu0 0.0
    %1269 = vmatpush2.msra.mxu0 0.0
    %1270 = vmatprep.subr.mxu0 0.0
    %1271 = vmatpush2.msra.mxu0 0.0
    %1272 = vmatprep.subr.mxu0 0.0
    %1273 = vmatpush2.msra.mxu0 0.0
    %1274 = vmatprep.subr.mxu0 0.0
    %1275 = vmatpush2.msra.mxu0 0.0
    %1276 = vmatprep.subr.mxu0 0.0
    %1277 = vmatpush2.msra.mxu0 0.0
    %1278 = vmatprep.subr.mxu0 0.0
    %1279 = vmatpush2.msra.mxu0 0.0
    %1280 = vmatprep.subr.mxu0 0.0
    %1281 = vmatpush2.msra.mxu0 0.0
    %1282 = vmatprep.subr.mxu0 0.0
    %1283 = vmatpush2.msra.mxu0 0.0
    %1284 = vmatprep.subr.mxu0 0.0
    %1285 = vmatpush2.msra.mxu0 0.0
    %1286 = vmatprep.subr.mxu0 0.0
    %1287 = vmatpush2.msra.mxu0 0.0
    %1288 = vmatprep.subr.mxu0 0.0
    %1289 = vmatpush2.msra.mxu0 0.0
    %1290 = vmatprep.subr.mxu0 0.0
    %1291 = vmatpush2.msra.mxu0 0.0
    %1292 = vmatprep.subr.mxu0 0.0
    %1293 = vmatpush2.msra.mxu0 0.0
    %1294 = vmatprep.subr.mxu0 0.0
    %1295 = vmatpush2.msra.mxu0 0.0
    %1296 = vmatprep.subr.mxu0 0.0
    %1297 = vmatpush2.msra.mxu0 0.0
    %1298 = vmatprep.mubr.f32.mxu0 0.0
    %1299 = vmatmul.mubr.f32.gmra.mxu0 %v1054
    %v1300 = vpop.f32.mrf.mxu0
    %v1301 = vadd.f32 0.0, %v1300
    %v1302 = vpop.f32.mrf.mxu0
    %v1303 = vadd.f32 0.0, %v1302
    %1304 = vdwg.mxu0
    %v1305 = vadd.f32 %v213, %v1301
    %v1306 = vadd.f32 %v215, %v1303
    %v1307 = vxor.u32 %v1305, 2147483648
    %v1308 = vmul.f32 %v1307, 1.442695
    %v1309 = vpow.pop %v1308
    %v1310 = vadd.f32 %v1309, 1.0
    %v1311 = vrcp.pop %v1310
    %v1312 = vmul.f32 1.0, %v1311
    %v1313 = vxor.u32 %v1306, 2147483648
    %v1314 = vmul.f32 %v1313, 1.442695
    %v1315 = vpow.pop %v1314
    %v1316 = vadd.f32 %v1315, 1.0
    %v1317 = vrcp.pop %v1316
    %v1318 = vmul.f32 1.0, %v1317
    %v1319 = vtanh.pop %v1306
    %v1320 = vsel %vm292, %v1318, %v1319
    %v1321 = vmul.f32 %v1312, %v1046
    %1323 = vrot.lane.b32.xlu0 %v1320, 64
    %v1324 = vpop.permute.xlu0 %1323
    %v1326 = vmul.f32 %v1312, %v1324
    %1328 = vrot.lane.b32.xlu0 %v1326, 64
    %v1329 = vpop.permute.xlu0 %1328
    %v1331 = vadd.f32 %v1321, %v1329
    %v1332 = vtanh.pop %v1331
    %1334 = vrot.lane.b32.xlu0 %v1332, 64
    %v1335 = vpop.permute.xlu0 %1334
    %v1337 = vmul.f32 %v1320, %v1335
    %v1339 = vsel %vm293, %v1337, 0
    %1341 = vmatprep.subr.mxu0 0.0
    %1342 = vmatpush1.msra.mxu0 0.0
    %1343 = vmatprep.subr.mxu0 0.0
    %1344 = vmatpush1.msra.mxu0 0.0
    %1345 = vmatprep.subr.mxu0 0.0
    %1346 = vmatpush1.msra.mxu0 0.0
    %1347 = vmatprep.subr.mxu0 0.0
    %1348 = vmatpush1.msra.mxu0 0.0
    %1349 = vmatprep.subr.mxu0 0.0
    %1350 = vmatpush1.msra.mxu0 0.0
    %1351 = vmatprep.subr.mxu0 0.0
    %1352 = vmatpush1.msra.mxu0 0.0
    %1353 = vmatprep.subr.mxu0 0.0
    %1354 = vmatpush1.msra.mxu0 0.0
    %1355 = vmatprep.subr.mxu0 0.0
    %1356 = vmatpush1.msra.mxu0 0.0
    %1357 = vmatprep.subr.mxu0 %v272
    %1358 = vmatpush1.msra.mxu0 %v271
    %1359 = vmatprep.subr.mxu0 %v270
    %1360 = vmatpush1.msra.mxu0 %v269
    %1361 = vmatprep.subr.mxu0 %v268
    %1362 = vmatpush1.msra.mxu0 %v267
    %1363 = vmatprep.subr.mxu0 %v266
    %1364 = vmatpush1.msra.mxu0 %v265
    %1365 = vmatprep.subr.mxu0 %v264
    %1366 = vmatpush1.msra.mxu0 %v263
    %1367 = vmatprep.subr.mxu0 %v262
    %1368 = vmatpush1.msra.mxu0 %v261
    %1369 = vmatprep.subr.mxu0 %v260
    %1370 = vmatpush1.msra.mxu0 %v259
    %1371 = vmatprep.subr.mxu0 %v258
    %1372 = vmatpush1.msra.mxu0 %v257
    %1373 = vmatprep.subr.mxu0 0.0
    %1374 = vmatpush2.msra.mxu0 0.0
    %1375 = vmatprep.subr.mxu0 0.0
    %1376 = vmatpush2.msra.mxu0 0.0
    %1377 = vmatprep.subr.mxu0 0.0
    %1378 = vmatpush2.msra.mxu0 0.0
    %1379 = vmatprep.subr.mxu0 0.0
    %1380 = vmatpush2.msra.mxu0 0.0
    %1381 = vmatprep.subr.mxu0 0.0
    %1382 = vmatpush2.msra.mxu0 0.0
    %1383 = vmatprep.subr.mxu0 0.0
    %1384 = vmatpush2.msra.mxu0 0.0
    %1385 = vmatprep.subr.mxu0 0.0
    %1386 = vmatpush2.msra.mxu0 0.0
    %1387 = vmatprep.subr.mxu0 0.0
    %1388 = vmatpush2.msra.mxu0 0.0
    %1389 = vmatprep.subr.mxu0 0.0
    %1390 = vmatpush2.msra.mxu0 0.0
    %1391 = vmatprep.subr.mxu0 0.0
    %1392 = vmatpush2.msra.mxu0 0.0
    %1393 = vmatprep.subr.mxu0 0.0
    %1394 = vmatpush2.msra.mxu0 0.0
    %1395 = vmatprep.subr.mxu0 0.0
    %1396 = vmatpush2.msra.mxu0 0.0
    %1397 = vmatprep.subr.mxu0 0.0
    %1398 = vmatpush2.msra.mxu0 0.0
    %1399 = vmatprep.subr.mxu0 0.0
    %1400 = vmatpush2.msra.mxu0 0.0
    %1401 = vmatprep.subr.mxu0 0.0
    %1402 = vmatpush2.msra.mxu0 0.0
    %1403 = vmatprep.subr.mxu0 0.0
    %1404 = vmatpush2.msra.mxu0 0.0
    %1405 = vmatprep.mubr.f32.mxu0 0.0
    %1406 = vmatmul.mubr.f32.gmra.mxu0 %v1339
    %v1407 = vpop.f32.mrf.mxu0
    %v1408 = vadd.f32 %v1230, %v1407
    %v1409 = vpop.f32.mrf.mxu0
    %v1410 = vadd.f32 %v1232, %v1409
    %1411 = vdwg.mxu0
    %v1412 = vadd.f32 %v1408, %v550
    %v1413 = vadd.f32 %v1410, %v554
    %v1414 = vxor.u32 %v1412, 2147483648
    %v1415 = vmul.f32 %v1414, 1.442695
    %v1416 = vpow.pop %v1415
    %v1417 = vadd.f32 %v1416, 1.0
    %v1418 = vrcp.pop %v1417
    %v1419 = vmul.f32 1.0, %v1418
    %v1420 = vxor.u32 %v1413, 2147483648
    %v1421 = vmul.f32 %v1420, 1.442695
    %v1422 = vpow.pop %v1421
    %v1423 = vadd.f32 %v1422, 1.0
    %v1424 = vrcp.pop %v1423
    %v1425 = vmul.f32 1.0, %v1424
    %v1426 = vtanh.pop %v1413
    %v1427 = vsel %vm292, %v1425, %v1426
    %v1428 = vmul.f32 %v1419, %v1153
    %1430 = vrot.lane.b32.xlu0 %v1427, 64
    %v1431 = vpop.permute.xlu0 %1430
    %v1433 = vmul.f32 %v1419, %v1431
    %1435 = vrot.lane.b32.xlu0 %v1433, 64
    %v1436 = vpop.permute.xlu0 %1435
    %v1438 = vadd.f32 %v1428, %v1436
    %v1439 = vtanh.pop %v1438
    %1441 = vrot.lane.b32.xlu0 %v1439, 64
    %v1442 = vpop.permute.xlu0 %1441
    %v1444 = vmul.f32 %v1427, %v1442
    %v1446 = vsel %vm293, %v1444, 0
    %1448 = vmatprep.subr.mxu0 0.0
    %1449 = vmatpush1.msra.mxu0 0.0
    %1450 = vmatprep.subr.mxu0 0.0
    %1451 = vmatpush1.msra.mxu0 0.0
    %1452 = vmatprep.subr.mxu0 0.0
    %1453 = vmatpush1.msra.mxu0 0.0
    %1454 = vmatprep.subr.mxu0 0.0
    %1455 = vmatpush1.msra.mxu0 0.0
    %1456 = vmatprep.subr.mxu0 0.0
    %1457 = vmatpush1.msra.mxu0 0.0
    %1458 = vmatprep.subr.mxu0 0.0
    %1459 = vmatpush1.msra.mxu0 0.0
    %1460 = vmatprep.subr.mxu0 0.0
    %1461 = vmatpush1.msra.mxu0 0.0
    %1462 = vmatprep.subr.mxu0 0.0
    %1463 = vmatpush1.msra.mxu0 0.0
    %1464 = vmatprep.subr.mxu0 %v288
    %1465 = vmatpush1.msra.mxu0 %v287
    %1466 = vmatprep.subr.mxu0 %v286
    %1467 = vmatpush1.msra.mxu0 %v285
    %1468 = vmatprep.subr.mxu0 %v284
    %1469 = vmatpush1.msra.mxu0 %v283
    %1470 = vmatprep.subr.mxu0 %v282
    %1471 = vmatpush1.msra.mxu0 %v281
    %1472 = vmatprep.subr.mxu0 %v280
    %1473 = vmatpush1.msra.mxu0 %v279
    %1474 = vmatprep.subr.mxu0 %v278
    %1475 = vmatpush1.msra.mxu0 %v277
    %1476 = vmatprep.subr.mxu0 %v276
    %1477 = vmatpush1.msra.mxu0 %v275
    %1478 = vmatprep.subr.mxu0 %v274
    %1479 = vmatpush1.msra.mxu0 %v273
    %1480 = vmatprep.subr.mxu0 0.0
    %1481 = vmatpush2.msra.mxu0 0.0
    %1482 = vmatprep.subr.mxu0 0.0
    %1483 = vmatpush2.msra.mxu0 0.0
    %1484 = vmatprep.subr.mxu0 0.0
    %1485 = vmatpush2.msra.mxu0 0.0
    %1486 = vmatprep.subr.mxu0 0.0
    %1487 = vmatpush2.msra.mxu0 0.0
    %1488 = vmatprep.subr.mxu0 0.0
    %1489 = vmatpush2.msra.mxu0 0.0
    %1490 = vmatprep.subr.mxu0 0.0
    %1491 = vmatpush2.msra.mxu0 0.0
    %1492 = vmatprep.subr.mxu0 0.0
    %1493 = vmatpush2.msra.mxu0 0.0
    %1494 = vmatprep.subr.mxu0 0.0
    %1495 = vmatpush2.msra.mxu0 0.0
    %1496 = vmatprep.subr.mxu0 0.0
    %1497 = vmatpush2.msra.mxu0 0.0
    %1498 = vmatprep.subr.mxu0 0.0
    %1499 = vmatpush2.msra.mxu0 0.0
    %1500 = vmatprep.subr.mxu0 0.0
    %1501 = vmatpush2.msra.mxu0 0.0
    %1502 = vmatprep.subr.mxu0 0.0
    %1503 = vmatpush2.msra.mxu0 0.0
    %1504 = vmatprep.subr.mxu0 0.0
    %1505 = vmatpush2.msra.mxu0 0.0
    %1506 = vmatprep.subr.mxu0 0.0
    %1507 = vmatpush2.msra.mxu0 0.0
    %1508 = vmatprep.subr.mxu0 0.0
    %1509 = vmatpush2.msra.mxu0 0.0
    %1510 = vmatprep.subr.mxu0 0.0
    %1511 = vmatpush2.msra.mxu0 0.0
    %1512 = vmatprep.mubr.f32.mxu0 0.0
    %1513 = vmatmul.mubr.f32.gmra.mxu0 %v1446
    %v1514 = vpop.f32.mrf.mxu0
    %v1515 = vadd.f32 0.0, %v1514
    %v1516 = vpop.f32.mrf.mxu0
    %v1517 = vadd.f32 0.0, %v1516
    %1518 = vdwg.mxu0
    %1519 = vmatprep.subr.mxu0 0.0
    %1520 = vmatpush1.msra.mxu0 0.0
    %1521 = vmatprep.subr.mxu0 0.0
    %1522 = vmatpush1.msra.mxu0 0.0
    %1523 = vmatprep.subr.mxu0 0.0
    %1524 = vmatpush1.msra.mxu0 0.0
    %1525 = vmatprep.subr.mxu0 0.0
    %1526 = vmatpush1.msra.mxu0 0.0
    %1527 = vmatprep.subr.mxu0 0.0
    %1528 = vmatpush1.msra.mxu0 0.0
    %1529 = vmatprep.subr.mxu0 0.0
    %1530 = vmatpush1.msra.mxu0 0.0
    %1531 = vmatprep.subr.mxu0 0.0
    %1532 = vmatpush1.msra.mxu0 0.0
    %1533 = vmatprep.subr.mxu0 0.0
    %1534 = vmatpush1.msra.mxu0 0.0
    %1535 = vmatprep.subr.mxu0 %v256
    %1536 = vmatpush1.msra.mxu0 %v255
    %1537 = vmatprep.subr.mxu0 %v254
    %1538 = vmatpush1.msra.mxu0 %v253
    %1539 = vmatprep.subr.mxu0 %v252
    %1540 = vmatpush1.msra.mxu0 %v251
    %1541 = vmatprep.subr.mxu0 %v250
    %1542 = vmatpush1.msra.mxu0 %v249
    %1543 = vmatprep.subr.mxu0 %v248
    %1544 = vmatpush1.msra.mxu0 %v247
    %1545 = vmatprep.subr.mxu0 %v246
    %1546 = vmatpush1.msra.mxu0 %v245
    %1547 = vmatprep.subr.mxu0 %v244
    %1548 = vmatpush1.msra.mxu0 %v243
    %1549 = vmatprep.subr.mxu0 %v242
    %1550 = vmatpush1.msra.mxu0 %v241
    %1551 = vmatprep.subr.mxu0 0.0
    %1552 = vmatpush2.msra.mxu0 0.0
    %1553 = vmatprep.subr.mxu0 0.0
    %1554 = vmatpush2.msra.mxu0 0.0
    %1555 = vmatprep.subr.mxu0 0.0
    %1556 = vmatpush2.msra.mxu0 0.0
    %1557 = vmatprep.subr.mxu0 0.0
    %1558 = vmatpush2.msra.mxu0 0.0
    %1559 = vmatprep.subr.mxu0 0.0
    %1560 = vmatpush2.msra.mxu0 0.0
    %1561 = vmatprep.subr.mxu0 0.0
    %1562 = vmatpush2.msra.mxu0 0.0
    %1563 = vmatprep.subr.mxu0 0.0
    %1564 = vmatpush2.msra.mxu0 0.0
    %1565 = vmatprep.subr.mxu0 0.0
    %1566 = vmatpush2.msra.mxu0 0.0
    %1567 = vmatprep.subr.mxu0 0.0
    %1568 = vmatpush2.msra.mxu0 0.0
    %1569 = vmatprep.subr.mxu0 0.0
    %1570 = vmatpush2.msra.mxu0 0.0
    %1571 = vmatprep.subr.mxu0 0.0
    %1572 = vmatpush2.msra.mxu0 0.0
    %1573 = vmatprep.subr.mxu0 0.0
    %1574 = vmatpush2.msra.mxu0 0.0
    %1575 = vmatprep.subr.mxu0 0.0
    %1576 = vmatpush2.msra.mxu0 0.0
    %1577 = vmatprep.subr.mxu0 0.0
    %1578 = vmatpush2.msra.mxu0 0.0
    %1579 = vmatprep.subr.mxu0 0.0
    %1580 = vmatpush2.msra.mxu0 0.0
    %1581 = vmatprep.subr.mxu0 0.0
    %1582 = vmatpush2.msra.mxu0 0.0
    %1583 = vmatprep.mubr.f32.mxu0 0.0
    %1584 = vmatmul.mubr.f32.gmra.mxu0 %v1339
    %v1585 = vpop.f32.mrf.mxu0
    %v1586 = vadd.f32 0.0, %v1585
    %v1587 = vpop.f32.mrf.mxu0
    %v1588 = vadd.f32 0.0, %v1587
    %1589 = vdwg.mxu0
    %v1590 = vadd.f32 %v219, %v1586
    %v1591 = vadd.f32 %v221, %v1588
    %v1592 = vxor.u32 %v1590, 2147483648
    %v1593 = vmul.f32 %v1592, 1.442695
    %v1594 = vpow.pop %v1593
    %v1595 = vadd.f32 %v1594, 1.0
    %v1596 = vrcp.pop %v1595
    %v1597 = vmul.f32 1.0, %v1596
    %v1598 = vxor.u32 %v1591, 2147483648
    %v1599 = vmul.f32 %v1598, 1.442695
    %v1600 = vpow.pop %v1599
    %v1601 = vadd.f32 %v1600, 1.0
    %v1602 = vrcp.pop %v1601
    %v1603 = vmul.f32 1.0, %v1602
    %v1604 = vtanh.pop %v1591
    %v1605 = vsel %vm292, %v1603, %v1604
    %v1606 = vmul.f32 %v1597, %v1331
    %1608 = vrot.lane.b32.xlu0 %v1605, 64
    %v1609 = vpop.permute.xlu0 %1608
    %v1611 = vmul.f32 %v1597, %v1609
    %1613 = vrot.lane.b32.xlu0 %v1611, 64
    %v1614 = vpop.permute.xlu0 %1613
    %v1616 = vadd.f32 %v1606, %v1614
    %v1617 = vtanh.pop %v1616
    %1619 = vrot.lane.b32.xlu0 %v1617, 64
    %v1620 = vpop.permute.xlu0 %1619
    %v1622 = vmul.f32 %v1605, %v1620
    %v1624 = vsel %vm293, %v1622, 0
    %1626 = vmatprep.subr.mxu0 0.0
    %1627 = vmatpush1.msra.mxu0 0.0
    %1628 = vmatprep.subr.mxu0 0.0
    %1629 = vmatpush1.msra.mxu0 0.0
    %1630 = vmatprep.subr.mxu0 0.0
    %1631 = vmatpush1.msra.mxu0 0.0
    %1632 = vmatprep.subr.mxu0 0.0
    %1633 = vmatpush1.msra.mxu0 0.0
    %1634 = vmatprep.subr.mxu0 0.0
    %1635 = vmatpush1.msra.mxu0 0.0
    %1636 = vmatprep.subr.mxu0 0.0
    %1637 = vmatpush1.msra.mxu0 0.0
    %1638 = vmatprep.subr.mxu0 0.0
    %1639 = vmatpush1.msra.mxu0 0.0
    %1640 = vmatprep.subr.mxu0 0.0
    %1641 = vmatpush1.msra.mxu0 0.0
    %1642 = vmatprep.subr.mxu0 %v272
    %1643 = vmatpush1.msra.mxu0 %v271
    %1644 = vmatprep.subr.mxu0 %v270
    %1645 = vmatpush1.msra.mxu0 %v269
    %1646 = vmatprep.subr.mxu0 %v268
    %1647 = vmatpush1.msra.mxu0 %v267
    %1648 = vmatprep.subr.mxu0 %v266
    %1649 = vmatpush1.msra.mxu0 %v265
    %1650 = vmatprep.subr.mxu0 %v264
    %1651 = vmatpush1.msra.mxu0 %v263
    %1652 = vmatprep.subr.mxu0 %v262
    %1653 = vmatpush1.msra.mxu0 %v261
    %1654 = vmatprep.subr.mxu0 %v260
    %1655 = vmatpush1.msra.mxu0 %v259
    %1656 = vmatprep.subr.mxu0 %v258
    %1657 = vmatpush1.msra.mxu0 %v257
    %1658 = vmatprep.subr.mxu0 0.0
    %1659 = vmatpush2.msra.mxu0 0.0
    %1660 = vmatprep.subr.mxu0 0.0
    %1661 = vmatpush2.msra.mxu0 0.0
    %1662 = vmatprep.subr.mxu0 0.0
    %1663 = vmatpush2.msra.mxu0 0.0
    %1664 = vmatprep.subr.mxu0 0.0
    %1665 = vmatpush2.msra.mxu0 0.0
    %1666 = vmatprep.subr.mxu0 0.0
    %1667 = vmatpush2.msra.mxu0 0.0
    %1668 = vmatprep.subr.mxu0 0.0
    %1669 = vmatpush2.msra.mxu0 0.0
    %1670 = vmatprep.subr.mxu0 0.0
    %1671 = vmatpush2.msra.mxu0 0.0
    %1672 = vmatprep.subr.mxu0 0.0
    %1673 = vmatpush2.msra.mxu0 0.0
    %1674 = vmatprep.subr.mxu0 0.0
    %1675 = vmatpush2.msra.mxu0 0.0
    %1676 = vmatprep.subr.mxu0 0.0
    %1677 = vmatpush2.msra.mxu0 0.0
    %1678 = vmatprep.subr.mxu0 0.0
    %1679 = vmatpush2.msra.mxu0 0.0
    %1680 = vmatprep.subr.mxu0 0.0
    %1681 = vmatpush2.msra.mxu0 0.0
    %1682 = vmatprep.subr.mxu0 0.0
    %1683 = vmatpush2.msra.mxu0 0.0
    %1684 = vmatprep.subr.mxu0 0.0
    %1685 = vmatpush2.msra.mxu0 0.0
    %1686 = vmatprep.subr.mxu0 0.0
    %1687 = vmatpush2.msra.mxu0 0.0
    %1688 = vmatprep.subr.mxu0 0.0
    %1689 = vmatpush2.msra.mxu0 0.0
    %1690 = vmatprep.mubr.f32.mxu0 0.0
    %1691 = vmatmul.mubr.f32.gmra.mxu0 %v1624
    %v1692 = vpop.f32.mrf.mxu0
    %v1693 = vadd.f32 %v1515, %v1692
    %v1694 = vpop.f32.mrf.mxu0
    %v1695 = vadd.f32 %v1517, %v1694
    %1696 = vdwg.mxu0
    %v1697 = vadd.f32 %v1693, %v550
    %v1698 = vadd.f32 %v1695, %v554
    %v1699 = vxor.u32 %v1697, 2147483648
    %v1700 = vmul.f32 %v1699, 1.442695
    %v1701 = vpow.pop %v1700
    %v1702 = vadd.f32 %v1701, 1.0
    %v1703 = vrcp.pop %v1702
    %v1704 = vmul.f32 1.0, %v1703
    %v1705 = vxor.u32 %v1698, 2147483648
    %v1706 = vmul.f32 %v1705, 1.442695
    %v1707 = vpow.pop %v1706
    %v1708 = vadd.f32 %v1707, 1.0
    %v1709 = vrcp.pop %v1708
    %v1710 = vmul.f32 1.0, %v1709
    %v1711 = vtanh.pop %v1698
    %v1712 = vsel %vm292, %v1710, %v1711
    %v1713 = vmul.f32 %v1704, %v1438
    %1715 = vrot.lane.b32.xlu0 %v1712, 64
    %v1716 = vpop.permute.xlu0 %1715
    %v1718 = vmul.f32 %v1704, %v1716
    %1720 = vrot.lane.b32.xlu0 %v1718, 64
    %v1721 = vpop.permute.xlu0 %1720
    %v1723 = vadd.f32 %v1713, %v1721
    %v1724 = vtanh.pop %v1723
    %1726 = vrot.lane.b32.xlu0 %v1724, 64
    %v1727 = vpop.permute.xlu0 %1726
    %v1729 = vmul.f32 %v1712, %v1727
    %v1731 = vsel %vm293, %v1729, 0
    %1733 = vmatprep.subr.mxu0 0.0
    %1734 = vmatpush1.msra.mxu0 0.0
    %1735 = vmatprep.subr.mxu0 0.0
    %1736 = vmatpush1.msra.mxu0 0.0
    %1737 = vmatprep.subr.mxu0 0.0
    %1738 = vmatpush1.msra.mxu0 0.0
    %1739 = vmatprep.subr.mxu0 0.0
    %1740 = vmatpush1.msra.mxu0 0.0
    %1741 = vmatprep.subr.mxu0 0.0
    %1742 = vmatpush1.msra.mxu0 0.0
    %1743 = vmatprep.subr.mxu0 0.0
    %1744 = vmatpush1.msra.mxu0 0.0
    %1745 = vmatprep.subr.mxu0 0.0
    %1746 = vmatpush1.msra.mxu0 0.0
    %1747 = vmatprep.subr.mxu0 0.0
    %1748 = vmatpush1.msra.mxu0 0.0
    %1749 = vmatprep.subr.mxu0 %v288
    %1750 = vmatpush1.msra.mxu0 %v287
    %1751 = vmatprep.subr.mxu0 %v286
    %1752 = vmatpush1.msra.mxu0 %v285
    %1753 = vmatprep.subr.mxu0 %v284
    %1754 = vmatpush1.msra.mxu0 %v283
    %1755 = vmatprep.subr.mxu0 %v282
    %1756 = vmatpush1.msra.mxu0 %v281
    %1757 = vmatprep.subr.mxu0 %v280
    %1758 = vmatpush1.msra.mxu0 %v279
    %1759 = vmatprep.subr.mxu0 %v278
    %1760 = vmatpush1.msra.mxu0 %v277
    %1761 = vmatprep.subr.mxu0 %v276
    %1762 = vmatpush1.msra.mxu0 %v275
    %1763 = vmatprep.subr.mxu0 %v274
    %1764 = vmatpush1.msra.mxu0 %v273
    %1765 = vmatprep.subr.mxu0 0.0
    %1766 = vmatpush2.msra.mxu0 0.0
    %1767 = vmatprep.subr.mxu0 0.0
    %1768 = vmatpush2.msra.mxu0 0.0
    %1769 = vmatprep.subr.mxu0 0.0
    %1770 = vmatpush2.msra.mxu0 0.0
    %1771 = vmatprep.subr.mxu0 0.0
    %1772 = vmatpush2.msra.mxu0 0.0
    %1773 = vmatprep.subr.mxu0 0.0
    %1774 = vmatpush2.msra.mxu0 0.0
    %1775 = vmatprep.subr.mxu0 0.0
    %1776 = vmatpush2.msra.mxu0 0.0
    %1777 = vmatprep.subr.mxu0 0.0
    %1778 = vmatpush2.msra.mxu0 0.0
    %1779 = vmatprep.subr.mxu0 0.0
    %1780 = vmatpush2.msra.mxu0 0.0
    %1781 = vmatprep.subr.mxu0 0.0
    %1782 = vmatpush2.msra.mxu0 0.0
    %1783 = vmatprep.subr.mxu0 0.0
    %1784 = vmatpush2.msra.mxu0 0.0
    %1785 = vmatprep.subr.mxu0 0.0
    %1786 = vmatpush2.msra.mxu0 0.0
    %1787 = vmatprep.subr.mxu0 0.0
    %1788 = vmatpush2.msra.mxu0 0.0
    %1789 = vmatprep.subr.mxu0 0.0
    %1790 = vmatpush2.msra.mxu0 0.0
    %1791 = vmatprep.subr.mxu0 0.0
    %1792 = vmatpush2.msra.mxu0 0.0
    %1793 = vmatprep.subr.mxu0 0.0
    %1794 = vmatpush2.msra.mxu0 0.0
    %1795 = vmatprep.subr.mxu0 0.0
    %1796 = vmatpush2.msra.mxu0 0.0
    %1797 = vmatprep.mubr.f32.mxu0 0.0
    %1798 = vmatmul.mubr.f32.gmra.mxu0 %v1731
    %v1799 = vpop.f32.mrf.mxu0
    %v1800 = vadd.f32 0.0, %v1799
    %v1801 = vpop.f32.mrf.mxu0
    %v1802 = vadd.f32 0.0, %v1801
    %1803 = vdwg.mxu0
    %1804 = vmatprep.subr.mxu0 0.0
    %1805 = vmatpush1.msra.mxu0 0.0
    %1806 = vmatprep.subr.mxu0 0.0
    %1807 = vmatpush1.msra.mxu0 0.0
    %1808 = vmatprep.subr.mxu0 0.0
    %1809 = vmatpush1.msra.mxu0 0.0
    %1810 = vmatprep.subr.mxu0 0.0
    %1811 = vmatpush1.msra.mxu0 0.0
    %1812 = vmatprep.subr.mxu0 0.0
    %1813 = vmatpush1.msra.mxu0 0.0
    %1814 = vmatprep.subr.mxu0 0.0
    %1815 = vmatpush1.msra.mxu0 0.0
    %1816 = vmatprep.subr.mxu0 0.0
    %1817 = vmatpush1.msra.mxu0 0.0
    %1818 = vmatprep.subr.mxu0 0.0
    %1819 = vmatpush1.msra.mxu0 0.0
    %1820 = vmatprep.subr.mxu0 %v256
    %1821 = vmatpush1.msra.mxu0 %v255
    %1822 = vmatprep.subr.mxu0 %v254
    %1823 = vmatpush1.msra.mxu0 %v253
    %1824 = vmatprep.subr.mxu0 %v252
    %1825 = vmatpush1.msra.mxu0 %v251
    %1826 = vmatprep.subr.mxu0 %v250
    %1827 = vmatpush1.msra.mxu0 %v249
    %1828 = vmatprep.subr.mxu0 %v248
    %1829 = vmatpush1.msra.mxu0 %v247
    %1830 = vmatprep.subr.mxu0 %v246
    %1831 = vmatpush1.msra.mxu0 %v245
    %1832 = vmatprep.subr.mxu0 %v244
    %1833 = vmatpush1.msra.mxu0 %v243
    %1834 = vmatprep.subr.mxu0 %v242
    %1835 = vmatpush1.msra.mxu0 %v241
    %1836 = vmatprep.subr.mxu0 0.0
    %1837 = vmatpush2.msra.mxu0 0.0
    %1838 = vmatprep.subr.mxu0 0.0
    %1839 = vmatpush2.msra.mxu0 0.0
    %1840 = vmatprep.subr.mxu0 0.0
    %1841 = vmatpush2.msra.mxu0 0.0
    %1842 = vmatprep.subr.mxu0 0.0
    %1843 = vmatpush2.msra.mxu0 0.0
    %1844 = vmatprep.subr.mxu0 0.0
    %1845 = vmatpush2.msra.mxu0 0.0
    %1846 = vmatprep.subr.mxu0 0.0
    %1847 = vmatpush2.msra.mxu0 0.0
    %1848 = vmatprep.subr.mxu0 0.0
    %1849 = vmatpush2.msra.mxu0 0.0
    %1850 = vmatprep.subr.mxu0 0.0
    %1851 = vmatpush2.msra.mxu0 0.0
    %1852 = vmatprep.subr.mxu0 0.0
    %1853 = vmatpush2.msra.mxu0 0.0
    %1854 = vmatprep.subr.mxu0 0.0
    %1855 = vmatpush2.msra.mxu0 0.0
    %1856 = vmatprep.subr.mxu0 0.0
    %1857 = vmatpush2.msra.mxu0 0.0
    %1858 = vmatprep.subr.mxu0 0.0
    %1859 = vmatpush2.msra.mxu0 0.0
    %1860 = vmatprep.subr.mxu0 0.0
    %1861 = vmatpush2.msra.mxu0 0.0
    %1862 = vmatprep.subr.mxu0 0.0
    %1863 = vmatpush2.msra.mxu0 0.0
    %1864 = vmatprep.subr.mxu0 0.0
    %1865 = vmatpush2.msra.mxu0 0.0
    %1866 = vmatprep.subr.mxu0 0.0
    %1867 = vmatpush2.msra.mxu0 0.0
    %1868 = vmatprep.mubr.f32.mxu0 0.0
    %1869 = vmatmul.mubr.f32.gmra.mxu0 %v1624
    %v1870 = vpop.f32.mrf.mxu0
    %v1871 = vadd.f32 0.0, %v1870
    %v1872 = vpop.f32.mrf.mxu0
    %v1873 = vadd.f32 0.0, %v1872
    %1874 = vdwg.mxu0
    %v1875 = vadd.f32 %v225, %v1871
    %v1876 = vadd.f32 %v227, %v1873
    %v1877 = vxor.u32 %v1875, 2147483648
    %v1878 = vmul.f32 %v1877, 1.442695
    %v1879 = vpow.pop %v1878
    %v1880 = vadd.f32 %v1879, 1.0
    %v1881 = vrcp.pop %v1880
    %v1882 = vmul.f32 1.0, %v1881
    %v1883 = vxor.u32 %v1876, 2147483648
    %v1884 = vmul.f32 %v1883, 1.442695
    %v1885 = vpow.pop %v1884
    %v1886 = vadd.f32 %v1885, 1.0
    %v1887 = vrcp.pop %v1886
    %v1888 = vmul.f32 1.0, %v1887
    %v1889 = vtanh.pop %v1876
    %v1890 = vsel %vm292, %v1888, %v1889
    %v1891 = vmul.f32 %v1882, %v1616
    %1893 = vrot.lane.b32.xlu0 %v1890, 64
    %v1894 = vpop.permute.xlu0 %1893
    %v1896 = vmul.f32 %v1882, %v1894
    %1898 = vrot.lane.b32.xlu0 %v1896, 64
    %v1899 = vpop.permute.xlu0 %1898
    %v1901 = vadd.f32 %v1891, %v1899
    %v1902 = vtanh.pop %v1901
    %1904 = vrot.lane.b32.xlu0 %v1902, 64
    %v1905 = vpop.permute.xlu0 %1904
    %v1907 = vmul.f32 %v1890, %v1905
    %v1909 = vsel %vm293, %v1907, 0
    %1911 = vmatprep.subr.mxu0 0.0
    %1912 = vmatpush1.msra.mxu0 0.0
    %1913 = vmatprep.subr.mxu0 0.0
    %1914 = vmatpush1.msra.mxu0 0.0
    %1915 = vmatprep.subr.mxu0 0.0
    %1916 = vmatpush1.msra.mxu0 0.0
    %1917 = vmatprep.subr.mxu0 0.0
    %1918 = vmatpush1.msra.mxu0 0.0
    %1919 = vmatprep.subr.mxu0 0.0
    %1920 = vmatpush1.msra.mxu0 0.0
    %1921 = vmatprep.subr.mxu0 0.0
    %1922 = vmatpush1.msra.mxu0 0.0
    %1923 = vmatprep.subr.mxu0 0.0
    %1924 = vmatpush1.msra.mxu0 0.0
    %1925 = vmatprep.subr.mxu0 0.0
    %1926 = vmatpush1.msra.mxu0 0.0
    %1927 = vmatprep.subr.mxu0 %v272
    %1928 = vmatpush1.msra.mxu0 %v271
    %1929 = vmatprep.subr.mxu0 %v270
    %1930 = vmatpush1.msra.mxu0 %v269
    %1931 = vmatprep.subr.mxu0 %v268
    %1932 = vmatpush1.msra.mxu0 %v267
    %1933 = vmatprep.subr.mxu0 %v266
    %1934 = vmatpush1.msra.mxu0 %v265
    %1935 = vmatprep.subr.mxu0 %v264
    %1936 = vmatpush1.msra.mxu0 %v263
    %1937 = vmatprep.subr.mxu0 %v262
    %1938 = vmatpush1.msra.mxu0 %v261
    %1939 = vmatprep.subr.mxu0 %v260
    %1940 = vmatpush1.msra.mxu0 %v259
    %1941 = vmatprep.subr.mxu0 %v258
    %1942 = vmatpush1.msra.mxu0 %v257
    %1943 = vmatprep.subr.mxu0 0.0
    %1944 = vmatpush2.msra.mxu0 0.0
    %1945 = vmatprep.subr.mxu0 0.0
    %1946 = vmatpush2.msra.mxu0 0.0
    %1947 = vmatprep.subr.mxu0 0.0
    %1948 = vmatpush2.msra.mxu0 0.0
    %1949 = vmatprep.subr.mxu0 0.0
    %1950 = vmatpush2.msra.mxu0 0.0
    %1951 = vmatprep.subr.mxu0 0.0
    %1952 = vmatpush2.msra.mxu0 0.0
    %1953 = vmatprep.subr.mxu0 0.0
    %1954 = vmatpush2.msra.mxu0 0.0
    %1955 = vmatprep.subr.mxu0 0.0
    %1956 = vmatpush2.msra.mxu0 0.0
    %1957 = vmatprep.subr.mxu0 0.0
    %1958 = vmatpush2.msra.mxu0 0.0
    %1959 = vmatprep.subr.mxu0 0.0
    %1960 = vmatpush2.msra.mxu0 0.0
    %1961 = vmatprep.subr.mxu0 0.0
    %1962 = vmatpush2.msra.mxu0 0.0
    %1963 = vmatprep.subr.mxu0 0.0
    %1964 = vmatpush2.msra.mxu0 0.0
    %1965 = vmatprep.subr.mxu0 0.0
    %1966 = vmatpush2.msra.mxu0 0.0
    %1967 = vmatprep.subr.mxu0 0.0
    %1968 = vmatpush2.msra.mxu0 0.0
    %1969 = vmatprep.subr.mxu0 0.0
    %1970 = vmatpush2.msra.mxu0 0.0
    %1971 = vmatprep.subr.mxu0 0.0
    %1972 = vmatpush2.msra.mxu0 0.0
    %1973 = vmatprep.subr.mxu0 0.0
    %1974 = vmatpush2.msra.mxu0 0.0
    %1975 = vmatprep.mubr.f32.mxu0 0.0
    %1976 = vmatmul.mubr.f32.gmra.mxu0 %v1909
    %v1977 = vpop.f32.mrf.mxu0
    %v1978 = vadd.f32 %v1800, %v1977
    %v1979 = vpop.f32.mrf.mxu0
    %v1980 = vadd.f32 %v1802, %v1979
    %1981 = vdwg.mxu0
    %v1982 = vadd.f32 %v1978, %v550
    %v1983 = vadd.f32 %v1980, %v554
    %v1984 = vxor.u32 %v1982, 2147483648
    %v1985 = vmul.f32 %v1984, 1.442695
    %v1986 = vpow.pop %v1985
    %v1987 = vadd.f32 %v1986, 1.0
    %v1988 = vrcp.pop %v1987
    %v1989 = vmul.f32 1.0, %v1988
    %v1990 = vxor.u32 %v1983, 2147483648
    %v1991 = vmul.f32 %v1990, 1.442695
    %v1992 = vpow.pop %v1991
    %v1993 = vadd.f32 %v1992, 1.0
    %v1994 = vrcp.pop %v1993
    %v1995 = vmul.f32 1.0, %v1994
    %v1996 = vtanh.pop %v1983
    %v1997 = vsel %vm292, %v1995, %v1996
    %v1998 = vmul.f32 %v1989, %v1723
    %2000 = vrot.lane.b32.xlu0 %v1997, 64
    %v2001 = vpop.permute.xlu0 %2000
    %v2003 = vmul.f32 %v1989, %v2001
    %2005 = vrot.lane.b32.xlu0 %v2003, 64
    %v2006 = vpop.permute.xlu0 %2005
    %v2008 = vadd.f32 %v1998, %v2006
    %v2009 = vtanh.pop %v2008
    %2011 = vrot.lane.b32.xlu0 %v2009, 64
    %v2012 = vpop.permute.xlu0 %2011
    %v2014 = vmul.f32 %v1997, %v2012
    %v2016 = vsel %vm293, %v2014, 0
    %2018 = vmatprep.subr.mxu0 0.0
    %2019 = vmatpush1.msra.mxu0 0.0
    %2020 = vmatprep.subr.mxu0 0.0
    %2021 = vmatpush1.msra.mxu0 0.0
    %2022 = vmatprep.subr.mxu0 0.0
    %2023 = vmatpush1.msra.mxu0 0.0
    %2024 = vmatprep.subr.mxu0 0.0
    %2025 = vmatpush1.msra.mxu0 0.0
    %2026 = vmatprep.subr.mxu0 0.0
    %2027 = vmatpush1.msra.mxu0 0.0
    %2028 = vmatprep.subr.mxu0 0.0
    %2029 = vmatpush1.msra.mxu0 0.0
    %2030 = vmatprep.subr.mxu0 0.0
    %2031 = vmatpush1.msra.mxu0 0.0
    %2032 = vmatprep.subr.mxu0 0.0
    %2033 = vmatpush1.msra.mxu0 0.0
    %2034 = vmatprep.subr.mxu0 %v288
    %2035 = vmatpush1.msra.mxu0 %v287
    %2036 = vmatprep.subr.mxu0 %v286
    %2037 = vmatpush1.msra.mxu0 %v285
    %2038 = vmatprep.subr.mxu0 %v284
    %2039 = vmatpush1.msra.mxu0 %v283
    %2040 = vmatprep.subr.mxu0 %v282
    %2041 = vmatpush1.msra.mxu0 %v281
    %2042 = vmatprep.subr.mxu0 %v280
    %2043 = vmatpush1.msra.mxu0 %v279
    %2044 = vmatprep.subr.mxu0 %v278
    %2045 = vmatpush1.msra.mxu0 %v277
    %2046 = vmatprep.subr.mxu0 %v276
    %2047 = vmatpush1.msra.mxu0 %v275
    %2048 = vmatprep.subr.mxu0 %v274
    %2049 = vmatpush1.msra.mxu0 %v273
    %2050 = vmatprep.subr.mxu0 0.0
    %2051 = vmatpush2.msra.mxu0 0.0
    %2052 = vmatprep.subr.mxu0 0.0
    %2053 = vmatpush2.msra.mxu0 0.0
    %2054 = vmatprep.subr.mxu0 0.0
    %2055 = vmatpush2.msra.mxu0 0.0
    %2056 = vmatprep.subr.mxu0 0.0
    %2057 = vmatpush2.msra.mxu0 0.0
    %2058 = vmatprep.subr.mxu0 0.0
    %2059 = vmatpush2.msra.mxu0 0.0
    %2060 = vmatprep.subr.mxu0 0.0
    %2061 = vmatpush2.msra.mxu0 0.0
    %2062 = vmatprep.subr.mxu0 0.0
    %2063 = vmatpush2.msra.mxu0 0.0
    %2064 = vmatprep.subr.mxu0 0.0
    %2065 = vmatpush2.msra.mxu0 0.0
    %2066 = vmatprep.subr.mxu0 0.0
    %2067 = vmatpush2.msra.mxu0 0.0
    %2068 = vmatprep.subr.mxu0 0.0
    %2069 = vmatpush2.msra.mxu0 0.0
    %2070 = vmatprep.subr.mxu0 0.0
    %2071 = vmatpush2.msra.mxu0 0.0
    %2072 = vmatprep.subr.mxu0 0.0
    %2073 = vmatpush2.msra.mxu0 0.0
    %2074 = vmatprep.subr.mxu0 0.0
    %2075 = vmatpush2.msra.mxu0 0.0
    %2076 = vmatprep.subr.mxu0 0.0
    %2077 = vmatpush2.msra.mxu0 0.0
    %2078 = vmatprep.subr.mxu0 0.0
    %2079 = vmatpush2.msra.mxu0 0.0
    %2080 = vmatprep.subr.mxu0 0.0
    %2081 = vmatpush2.msra.mxu0 0.0
    %2082 = vmatprep.mubr.f32.mxu0 0.0
    %2083 = vmatmul.mubr.f32.gmra.mxu0 %v2016
    %v2084 = vpop.f32.mrf.mxu0
    %v2085 = vadd.f32 0.0, %v2084
    %v2086 = vpop.f32.mrf.mxu0
    %v2087 = vadd.f32 0.0, %v2086
    %2088 = vdwg.mxu0
    %2089 = vmatprep.subr.mxu0 0.0
    %2090 = vmatpush1.msra.mxu0 0.0
    %2091 = vmatprep.subr.mxu0 0.0
    %2092 = vmatpush1.msra.mxu0 0.0
    %2093 = vmatprep.subr.mxu0 0.0
    %2094 = vmatpush1.msra.mxu0 0.0
    %2095 = vmatprep.subr.mxu0 0.0
    %2096 = vmatpush1.msra.mxu0 0.0
    %2097 = vmatprep.subr.mxu0 0.0
    %2098 = vmatpush1.msra.mxu0 0.0
    %2099 = vmatprep.subr.mxu0 0.0
    %2100 = vmatpush1.msra.mxu0 0.0
    %2101 = vmatprep.subr.mxu0 0.0
    %2102 = vmatpush1.msra.mxu0 0.0
    %2103 = vmatprep.subr.mxu0 0.0
    %2104 = vmatpush1.msra.mxu0 0.0
    %2105 = vmatprep.subr.mxu0 %v256
    %2106 = vmatpush1.msra.mxu0 %v255
    %2107 = vmatprep.subr.mxu0 %v254
    %2108 = vmatpush1.msra.mxu0 %v253
    %2109 = vmatprep.subr.mxu0 %v252
    %2110 = vmatpush1.msra.mxu0 %v251
    %2111 = vmatprep.subr.mxu0 %v250
    %2112 = vmatpush1.msra.mxu0 %v249
    %2113 = vmatprep.subr.mxu0 %v248
    %2114 = vmatpush1.msra.mxu0 %v247
    %2115 = vmatprep.subr.mxu0 %v246
    %2116 = vmatpush1.msra.mxu0 %v245
    %2117 = vmatprep.subr.mxu0 %v244
    %2118 = vmatpush1.msra.mxu0 %v243
    %2119 = vmatprep.subr.mxu0 %v242
    %2120 = vmatpush1.msra.mxu0 %v241
    %2121 = vmatprep.subr.mxu0 0.0
    %2122 = vmatpush2.msra.mxu0 0.0
    %2123 = vmatprep.subr.mxu0 0.0
    %2124 = vmatpush2.msra.mxu0 0.0
    %2125 = vmatprep.subr.mxu0 0.0
    %2126 = vmatpush2.msra.mxu0 0.0
    %2127 = vmatprep.subr.mxu0 0.0
    %2128 = vmatpush2.msra.mxu0 0.0
    %2129 = vmatprep.subr.mxu0 0.0
    %2130 = vmatpush2.msra.mxu0 0.0
    %2131 = vmatprep.subr.mxu0 0.0
    %2132 = vmatpush2.msra.mxu0 0.0
    %2133 = vmatprep.subr.mxu0 0.0
    %2134 = vmatpush2.msra.mxu0 0.0
    %2135 = vmatprep.subr.mxu0 0.0
    %2136 = vmatpush2.msra.mxu0 0.0
    %2137 = vmatprep.subr.mxu0 0.0
    %2138 = vmatpush2.msra.mxu0 0.0
    %2139 = vmatprep.subr.mxu0 0.0
    %2140 = vmatpush2.msra.mxu0 0.0
    %2141 = vmatprep.subr.mxu0 0.0
    %2142 = vmatpush2.msra.mxu0 0.0
    %2143 = vmatprep.subr.mxu0 0.0
    %2144 = vmatpush2.msra.mxu0 0.0
    %2145 = vmatprep.subr.mxu0 0.0
    %2146 = vmatpush2.msra.mxu0 0.0
    %2147 = vmatprep.subr.mxu0 0.0
    %2148 = vmatpush2.msra.mxu0 0.0
    %2149 = vmatprep.subr.mxu0 0.0
    %2150 = vmatpush2.msra.mxu0 0.0
    %2151 = vmatprep.subr.mxu0 0.0
    %2152 = vmatpush2.msra.mxu0 0.0
    %2153 = vmatprep.mubr.f32.mxu0 0.0
    %2154 = vmatmul.mubr.f32.gmra.mxu0 %v1909
    %v2155 = vpop.f32.mrf.mxu0
    %v2156 = vadd.f32 0.0, %v2155
    %v2157 = vpop.f32.mrf.mxu0
    %v2158 = vadd.f32 0.0, %v2157
    %2159 = vdwg.mxu0
    %v2160 = vadd.f32 %v231, %v2156
    %v2161 = vadd.f32 %v233, %v2158
    %v2162 = vxor.u32 %v2160, 2147483648
    %v2163 = vmul.f32 %v2162, 1.442695
    %v2164 = vpow.pop %v2163
    %v2165 = vadd.f32 %v2164, 1.0
    %v2166 = vrcp.pop %v2165
    %v2167 = vmul.f32 1.0, %v2166
    %v2168 = vxor.u32 %v2161, 2147483648
    %v2169 = vmul.f32 %v2168, 1.442695
    %v2170 = vpow.pop %v2169
    %v2171 = vadd.f32 %v2170, 1.0
    %v2172 = vrcp.pop %v2171
    %v2173 = vmul.f32 1.0, %v2172
    %v2174 = vtanh.pop %v2161
    %v2175 = vsel %vm292, %v2173, %v2174
    %v2176 = vmul.f32 %v2167, %v1901
    %2178 = vrot.lane.b32.xlu0 %v2175, 64
    %v2179 = vpop.permute.xlu0 %2178
    %v2181 = vmul.f32 %v2167, %v2179
    %2183 = vrot.lane.b32.xlu0 %v2181, 64
    %v2184 = vpop.permute.xlu0 %2183
    %v2186 = vadd.f32 %v2176, %v2184
    %v2187 = vtanh.pop %v2186
    %2189 = vrot.lane.b32.xlu0 %v2187, 64
    %v2190 = vpop.permute.xlu0 %2189
    %v2192 = vmul.f32 %v2175, %v2190
    %v2194 = vsel %vm293, %v2192, 0
    %2196 = vmatprep.subr.mxu0 0.0
    %2197 = vmatpush1.msra.mxu0 0.0
    %2198 = vmatprep.subr.mxu0 0.0
    %2199 = vmatpush1.msra.mxu0 0.0
    %2200 = vmatprep.subr.mxu0 0.0
    %2201 = vmatpush1.msra.mxu0 0.0
    %2202 = vmatprep.subr.mxu0 0.0
    %2203 = vmatpush1.msra.mxu0 0.0
    %2204 = vmatprep.subr.mxu0 0.0
    %2205 = vmatpush1.msra.mxu0 0.0
    %2206 = vmatprep.subr.mxu0 0.0
    %2207 = vmatpush1.msra.mxu0 0.0
    %2208 = vmatprep.subr.mxu0 0.0
    %2209 = vmatpush1.msra.mxu0 0.0
    %2210 = vmatprep.subr.mxu0 0.0
    %2211 = vmatpush1.msra.mxu0 0.0
    %2212 = vmatprep.subr.mxu0 %v272
    %2213 = vmatpush1.msra.mxu0 %v271
    %2214 = vmatprep.subr.mxu0 %v270
    %2215 = vmatpush1.msra.mxu0 %v269
    %2216 = vmatprep.subr.mxu0 %v268
    %2217 = vmatpush1.msra.mxu0 %v267
    %2218 = vmatprep.subr.mxu0 %v266
    %2219 = vmatpush1.msra.mxu0 %v265
    %2220 = vmatprep.subr.mxu0 %v264
    %2221 = vmatpush1.msra.mxu0 %v263
    %2222 = vmatprep.subr.mxu0 %v262
    %2223 = vmatpush1.msra.mxu0 %v261
    %2224 = vmatprep.subr.mxu0 %v260
    %2225 = vmatpush1.msra.mxu0 %v259
    %2226 = vmatprep.subr.mxu0 %v258
    %2227 = vmatpush1.msra.mxu0 %v257
    %2228 = vmatprep.subr.mxu0 0.0
    %2229 = vmatpush2.msra.mxu0 0.0
    %2230 = vmatprep.subr.mxu0 0.0
    %2231 = vmatpush2.msra.mxu0 0.0
    %2232 = vmatprep.subr.mxu0 0.0
    %2233 = vmatpush2.msra.mxu0 0.0
    %2234 = vmatprep.subr.mxu0 0.0
    %2235 = vmatpush2.msra.mxu0 0.0
    %2236 = vmatprep.subr.mxu0 0.0
    %2237 = vmatpush2.msra.mxu0 0.0
    %2238 = vmatprep.subr.mxu0 0.0
    %2239 = vmatpush2.msra.mxu0 0.0
    %2240 = vmatprep.subr.mxu0 0.0
    %2241 = vmatpush2.msra.mxu0 0.0
    %2242 = vmatprep.subr.mxu0 0.0
    %2243 = vmatpush2.msra.mxu0 0.0
    %2244 = vmatprep.subr.mxu0 0.0
    %2245 = vmatpush2.msra.mxu0 0.0
    %2246 = vmatprep.subr.mxu0 0.0
    %2247 = vmatpush2.msra.mxu0 0.0
    %2248 = vmatprep.subr.mxu0 0.0
    %2249 = vmatpush2.msra.mxu0 0.0
    %2250 = vmatprep.subr.mxu0 0.0
    %2251 = vmatpush2.msra.mxu0 0.0
    %2252 = vmatprep.subr.mxu0 0.0
    %2253 = vmatpush2.msra.mxu0 0.0
    %2254 = vmatprep.subr.mxu0 0.0
    %2255 = vmatpush2.msra.mxu0 0.0
    %2256 = vmatprep.subr.mxu0 0.0
    %2257 = vmatpush2.msra.mxu0 0.0
    %2258 = vmatprep.subr.mxu0 0.0
    %2259 = vmatpush2.msra.mxu0 0.0
    %2260 = vmatprep.mubr.f32.mxu0 0.0
    %2261 = vmatmul.mubr.f32.gmra.mxu0 %v2194
    %v2262 = vpop.f32.mrf.mxu0
    %v2263 = vadd.f32 %v2085, %v2262
    %v2264 = vpop.f32.mrf.mxu0
    %v2265 = vadd.f32 %v2087, %v2264
    %2266 = vdwg.mxu0
    %v2267 = vadd.f32 %v2263, %v550
    %v2268 = vadd.f32 %v2265, %v554
    %v2269 = vxor.u32 %v2267, 2147483648
    %v2270 = vmul.f32 %v2269, 1.442695
    %v2271 = vpow.pop %v2270
    %v2272 = vadd.f32 %v2271, 1.0
    %v2273 = vrcp.pop %v2272
    %v2274 = vmul.f32 1.0, %v2273
    %v2275 = vxor.u32 %v2268, 2147483648
    %v2276 = vmul.f32 %v2275, 1.442695
    %v2277 = vpow.pop %v2276
    %v2278 = vadd.f32 %v2277, 1.0
    %v2279 = vrcp.pop %v2278
    %v2280 = vmul.f32 1.0, %v2279
    %v2281 = vtanh.pop %v2268
    %v2282 = vsel %vm292, %v2280, %v2281
    %v2283 = vmul.f32 %v2274, %v2008
    %2285 = vrot.lane.b32.xlu0 %v2282, 64
    %v2286 = vpop.permute.xlu0 %2285
    %v2288 = vmul.f32 %v2274, %v2286
    %2290 = vrot.lane.b32.xlu0 %v2288, 64
    %v2291 = vpop.permute.xlu0 %2290
    %v2293 = vadd.f32 %v2283, %v2291
    %v2294 = vtanh.pop %v2293
    %2296 = vrot.lane.b32.xlu0 %v2294, 64
    %v2297 = vpop.permute.xlu0 %2296
    %v2299 = vmul.f32 %v2282, %v2297
    %v2301 = vsel %vm293, %v2299, 0
    %2303 = vmatprep.subr.mxu0 0.0
    %2304 = vmatpush1.msra.mxu0 0.0
    %2305 = vmatprep.subr.mxu0 0.0
    %2306 = vmatpush1.msra.mxu0 0.0
    %2307 = vmatprep.subr.mxu0 0.0
    %2308 = vmatpush1.msra.mxu0 0.0
    %2309 = vmatprep.subr.mxu0 0.0
    %2310 = vmatpush1.msra.mxu0 0.0
    %2311 = vmatprep.subr.mxu0 0.0
    %2312 = vmatpush1.msra.mxu0 0.0
    %2313 = vmatprep.subr.mxu0 0.0
    %2314 = vmatpush1.msra.mxu0 0.0
    %2315 = vmatprep.subr.mxu0 0.0
    %2316 = vmatpush1.msra.mxu0 0.0
    %2317 = vmatprep.subr.mxu0 0.0
    %2318 = vmatpush1.msra.mxu0 0.0
    %2319 = vmatprep.subr.mxu0 %v288
    %2320 = vmatpush1.msra.mxu0 %v287
    %2321 = vmatprep.subr.mxu0 %v286
    %2322 = vmatpush1.msra.mxu0 %v285
    %2323 = vmatprep.subr.mxu0 %v284
    %2324 = vmatpush1.msra.mxu0 %v283
    %2325 = vmatprep.subr.mxu0 %v282
    %2326 = vmatpush1.msra.mxu0 %v281
    %2327 = vmatprep.subr.mxu0 %v280
    %2328 = vmatpush1.msra.mxu0 %v279
    %2329 = vmatprep.subr.mxu0 %v278
    %2330 = vmatpush1.msra.mxu0 %v277
    %2331 = vmatprep.subr.mxu0 %v276
    %2332 = vmatpush1.msra.mxu0 %v275
    %2333 = vmatprep.subr.mxu0 %v274
    %2334 = vmatpush1.msra.mxu0 %v273
    %2335 = vmatprep.subr.mxu0 0.0
    %2336 = vmatpush2.msra.mxu0 0.0
    %2337 = vmatprep.subr.mxu0 0.0
    %2338 = vmatpush2.msra.mxu0 0.0
    %2339 = vmatprep.subr.mxu0 0.0
    %2340 = vmatpush2.msra.mxu0 0.0
    %2341 = vmatprep.subr.mxu0 0.0
    %2342 = vmatpush2.msra.mxu0 0.0
    %2343 = vmatprep.subr.mxu0 0.0
    %2344 = vmatpush2.msra.mxu0 0.0
    %2345 = vmatprep.subr.mxu0 0.0
    %2346 = vmatpush2.msra.mxu0 0.0
    %2347 = vmatprep.subr.mxu0 0.0
    %2348 = vmatpush2.msra.mxu0 0.0
    %2349 = vmatprep.subr.mxu0 0.0
    %2350 = vmatpush2.msra.mxu0 0.0
    %2351 = vmatprep.subr.mxu0 0.0
    %2352 = vmatpush2.msra.mxu0 0.0
    %2353 = vmatprep.subr.mxu0 0.0
    %2354 = vmatpush2.msra.mxu0 0.0
    %2355 = vmatprep.subr.mxu0 0.0
    %2356 = vmatpush2.msra.mxu0 0.0
    %2357 = vmatprep.subr.mxu0 0.0
    %2358 = vmatpush2.msra.mxu0 0.0
    %2359 = vmatprep.subr.mxu0 0.0
    %2360 = vmatpush2.msra.mxu0 0.0
    %2361 = vmatprep.subr.mxu0 0.0
    %2362 = vmatpush2.msra.mxu0 0.0
    %2363 = vmatprep.subr.mxu0 0.0
    %2364 = vmatpush2.msra.mxu0 0.0
    %2365 = vmatprep.subr.mxu0 0.0
    %2366 = vmatpush2.msra.mxu0 0.0
    %2367 = vmatprep.mubr.f32.mxu0 0.0
    %2368 = vmatmul.mubr.f32.gmra.mxu0 %v2301
    %v2369 = vpop.f32.mrf.mxu0
    %v2370 = vadd.f32 0.0, %v2369
    %v2371 = vpop.f32.mrf.mxu0
    %v2372 = vadd.f32 0.0, %v2371
    %2373 = vdwg.mxu0
    %2374 = vmatprep.subr.mxu0 0.0
    %2375 = vmatpush1.msra.mxu0 0.0
    %2376 = vmatprep.subr.mxu0 0.0
    %2377 = vmatpush1.msra.mxu0 0.0
    %2378 = vmatprep.subr.mxu0 0.0
    %2379 = vmatpush1.msra.mxu0 0.0
    %2380 = vmatprep.subr.mxu0 0.0
    %2381 = vmatpush1.msra.mxu0 0.0
    %2382 = vmatprep.subr.mxu0 0.0
    %2383 = vmatpush1.msra.mxu0 0.0
    %2384 = vmatprep.subr.mxu0 0.0
    %2385 = vmatpush1.msra.mxu0 0.0
    %2386 = vmatprep.subr.mxu0 0.0
    %2387 = vmatpush1.msra.mxu0 0.0
    %2388 = vmatprep.subr.mxu0 0.0
    %2389 = vmatpush1.msra.mxu0 0.0
    %2390 = vmatprep.subr.mxu0 %v256
    %2391 = vmatpush1.msra.mxu0 %v255
    %2392 = vmatprep.subr.mxu0 %v254
    %2393 = vmatpush1.msra.mxu0 %v253
    %2394 = vmatprep.subr.mxu0 %v252
    %2395 = vmatpush1.msra.mxu0 %v251
    %2396 = vmatprep.subr.mxu0 %v250
    %2397 = vmatpush1.msra.mxu0 %v249
    %2398 = vmatprep.subr.mxu0 %v248
    %2399 = vmatpush1.msra.mxu0 %v247
    %2400 = vmatprep.subr.mxu0 %v246
    %2401 = vmatpush1.msra.mxu0 %v245
    %2402 = vmatprep.subr.mxu0 %v244
    %2403 = vmatpush1.msra.mxu0 %v243
    %2404 = vmatprep.subr.mxu0 %v242
    %2405 = vmatpush1.msra.mxu0 %v241
    %2406 = vmatprep.subr.mxu0 0.0
    %2407 = vmatpush2.msra.mxu0 0.0
    %2408 = vmatprep.subr.mxu0 0.0
    %2409 = vmatpush2.msra.mxu0 0.0
    %2410 = vmatprep.subr.mxu0 0.0
    %2411 = vmatpush2.msra.mxu0 0.0
    %2412 = vmatprep.subr.mxu0 0.0
    %2413 = vmatpush2.msra.mxu0 0.0
    %2414 = vmatprep.subr.mxu0 0.0
    %2415 = vmatpush2.msra.mxu0 0.0
    %2416 = vmatprep.subr.mxu0 0.0
    %2417 = vmatpush2.msra.mxu0 0.0
    %2418 = vmatprep.subr.mxu0 0.0
    %2419 = vmatpush2.msra.mxu0 0.0
    %2420 = vmatprep.subr.mxu0 0.0
    %2421 = vmatpush2.msra.mxu0 0.0
    %2422 = vmatprep.subr.mxu0 0.0
    %2423 = vmatpush2.msra.mxu0 0.0
    %2424 = vmatprep.subr.mxu0 0.0
    %2425 = vmatpush2.msra.mxu0 0.0
    %2426 = vmatprep.subr.mxu0 0.0
    %2427 = vmatpush2.msra.mxu0 0.0
    %2428 = vmatprep.subr.mxu0 0.0
    %2429 = vmatpush2.msra.mxu0 0.0
    %2430 = vmatprep.subr.mxu0 0.0
    %2431 = vmatpush2.msra.mxu0 0.0
    %2432 = vmatprep.subr.mxu0 0.0
    %2433 = vmatpush2.msra.mxu0 0.0
    %2434 = vmatprep.subr.mxu0 0.0
    %2435 = vmatpush2.msra.mxu0 0.0
    %2436 = vmatprep.subr.mxu0 0.0
    %2437 = vmatpush2.msra.mxu0 0.0
    %2438 = vmatprep.mubr.f32.mxu0 0.0
    %2439 = vmatmul.mubr.f32.gmra.mxu0 %v2194
    %v2440 = vpop.f32.mrf.mxu0
    %v2441 = vadd.f32 0.0, %v2440
    %v2442 = vpop.f32.mrf.mxu0
    %v2443 = vadd.f32 0.0, %v2442
    %2444 = vdwg.mxu0
    %v2445 = vadd.f32 %v237, %v2441
    %v2446 = vadd.f32 %v239, %v2443
    %v2447 = vxor.u32 %v2445, 2147483648
    %v2448 = vmul.f32 %v2447, 1.442695
    %v2449 = vpow.pop %v2448
    %v2450 = vadd.f32 %v2449, 1.0
    %v2451 = vrcp.pop %v2450
    %v2452 = vmul.f32 1.0, %v2451
    %v2453 = vxor.u32 %v2446, 2147483648
    %v2454 = vmul.f32 %v2453, 1.442695
    %v2455 = vpow.pop %v2454
    %v2456 = vadd.f32 %v2455, 1.0
    %v2457 = vrcp.pop %v2456
    %v2458 = vmul.f32 1.0, %v2457
    %v2459 = vtanh.pop %v2446
    %v2460 = vsel %vm292, %v2458, %v2459
    %v2461 = vmul.f32 %v2452, %v2186
    %2463 = vrot.lane.b32.xlu0 %v2460, 64
    %v2464 = vpop.permute.xlu0 %2463
    %v2466 = vmul.f32 %v2452, %v2464
    %2468 = vrot.lane.b32.xlu0 %v2466, 64
    %v2469 = vpop.permute.xlu0 %2468
    %v2471 = vadd.f32 %v2461, %v2469
    %v2472 = vtanh.pop %v2471
    %2474 = vrot.lane.b32.xlu0 %v2472, 64
    %v2475 = vpop.permute.xlu0 %2474
    %v2477 = vmul.f32 %v2460, %v2475
    %v2479 = vsel %vm293, %v2477, 0
    %2481 = vmatprep.subr.mxu0 0.0
    %2482 = vmatpush1.msra.mxu0 0.0
    %2483 = vmatprep.subr.mxu0 0.0
    %2484 = vmatpush1.msra.mxu0 0.0
    %2485 = vmatprep.subr.mxu0 0.0
    %2486 = vmatpush1.msra.mxu0 0.0
    %2487 = vmatprep.subr.mxu0 0.0
    %2488 = vmatpush1.msra.mxu0 0.0
    %2489 = vmatprep.subr.mxu0 0.0
    %2490 = vmatpush1.msra.mxu0 0.0
    %2491 = vmatprep.subr.mxu0 0.0
    %2492 = vmatpush1.msra.mxu0 0.0
    %2493 = vmatprep.subr.mxu0 0.0
    %2494 = vmatpush1.msra.mxu0 0.0
    %2495 = vmatprep.subr.mxu0 0.0
    %2496 = vmatpush1.msra.mxu0 0.0
    %2497 = vmatprep.subr.mxu0 %v272
    %2498 = vmatpush1.msra.mxu0 %v271
    %2499 = vmatprep.subr.mxu0 %v270
    %2500 = vmatpush1.msra.mxu0 %v269
    %2501 = vmatprep.subr.mxu0 %v268
    %2502 = vmatpush1.msra.mxu0 %v267
    %2503 = vmatprep.subr.mxu0 %v266
    %2504 = vmatpush1.msra.mxu0 %v265
    %2505 = vmatprep.subr.mxu0 %v264
    %2506 = vmatpush1.msra.mxu0 %v263
    %2507 = vmatprep.subr.mxu0 %v262
    %2508 = vmatpush1.msra.mxu0 %v261
    %2509 = vmatprep.subr.mxu0 %v260
    %2510 = vmatpush1.msra.mxu0 %v259
    %2511 = vmatprep.subr.mxu0 %v258
    %2512 = vmatpush1.msra.mxu0 %v257
    %2513 = vmatprep.subr.mxu0 0.0
    %2514 = vmatpush2.msra.mxu0 0.0
    %2515 = vmatprep.subr.mxu0 0.0
    %2516 = vmatpush2.msra.mxu0 0.0
    %2517 = vmatprep.subr.mxu0 0.0
    %2518 = vmatpush2.msra.mxu0 0.0
    %2519 = vmatprep.subr.mxu0 0.0
    %2520 = vmatpush2.msra.mxu0 0.0
    %2521 = vmatprep.subr.mxu0 0.0
    %2522 = vmatpush2.msra.mxu0 0.0
    %2523 = vmatprep.subr.mxu0 0.0
    %2524 = vmatpush2.msra.mxu0 0.0
    %2525 = vmatprep.subr.mxu0 0.0
    %2526 = vmatpush2.msra.mxu0 0.0
    %2527 = vmatprep.subr.mxu0 0.0
    %2528 = vmatpush2.msra.mxu0 0.0
    %2529 = vmatprep.subr.mxu0 0.0
    %2530 = vmatpush2.msra.mxu0 0.0
    %2531 = vmatprep.subr.mxu0 0.0
    %2532 = vmatpush2.msra.mxu0 0.0
    %2533 = vmatprep.subr.mxu0 0.0
    %2534 = vmatpush2.msra.mxu0 0.0
    %2535 = vmatprep.subr.mxu0 0.0
    %2536 = vmatpush2.msra.mxu0 0.0
    %2537 = vmatprep.subr.mxu0 0.0
    %2538 = vmatpush2.msra.mxu0 0.0
    %2539 = vmatprep.subr.mxu0 0.0
    %2540 = vmatpush2.msra.mxu0 0.0
    %2541 = vmatprep.subr.mxu0 0.0
    %2542 = vmatpush2.msra.mxu0 0.0
    %2543 = vmatprep.subr.mxu0 0.0
    %2544 = vmatpush2.msra.mxu0 0.0
    %2545 = vmatprep.mubr.f32.mxu0 0.0
    %2546 = vmatmul.mubr.f32.gmra.mxu0 %v2479
    %v2547 = vpop.f32.mrf.mxu0
    %v2548 = vadd.f32 %v2370, %v2547
    %v2549 = vpop.f32.mrf.mxu0
    %v2550 = vadd.f32 %v2372, %v2549
    %2551 = vdwg.mxu0
    %v2552 = vadd.f32 %v2548, %v550
    %v2553 = vadd.f32 %v2550, %v554
    %v2554 = vxor.u32 %v2552, 2147483648
    %v2555 = vmul.f32 %v2554, 1.442695
    %v2556 = vpow.pop %v2555
    %v2557 = vadd.f32 %v2556, 1.0
    %v2558 = vrcp.pop %v2557
    %v2559 = vmul.f32 1.0, %v2558
    %v2560 = vxor.u32 %v2553, 2147483648
    %v2561 = vmul.f32 %v2560, 1.442695
    %v2562 = vpow.pop %v2561
    %v2563 = vadd.f32 %v2562, 1.0
    %v2564 = vrcp.pop %v2563
    %v2565 = vmul.f32 1.0, %v2564
    %v2566 = vtanh.pop %v2553
    %v2567 = vsel %vm292, %v2565, %v2566
    %v2568 = vmul.f32 %v2559, %v2293
    %2570 = vrot.lane.b32.xlu0 %v2567, 64
    %v2571 = vpop.permute.xlu0 %2570
    %v2573 = vmul.f32 %v2559, %v2571
    %2575 = vrot.lane.b32.xlu0 %v2573, 64
    %v2576 = vpop.permute.xlu0 %2575
    %v2578 = vadd.f32 %v2568, %v2576
    %v2579 = vtanh.pop %v2578
    %2581 = vrot.lane.b32.xlu0 %v2579, 64
    %v2582 = vpop.permute.xlu0 %2581
    %v2584 = vmul.f32 %v2567, %v2582
    %v2585 = vld [vmem:[%s7] sm:$0x1]
    %v2587 = vlaneseq
    %v2588 = vshrl.u32 %v2587, 7
    %v2589 = vsub.s32 0, %v2588
    %v2590 = vrot.slane %v2585, %v2589
    %v2592 = vmul.f32 %v2584, %v2590
    %v2593 = vsel %vm293, %v2592, 0.0
    %2594 = vadd.xlane.f32.xlu0 %v2593
    %v2595 = vpop.xlane.xlu0 %2594
    %v2596 = vld [vmem:[#allocation2] sm:$0x1]
    %v2598 = vlaneseq
    %v2599 = vshrl.u32 %v2598, 7
    %v2600 = vsub.s32 0, %v2599
    %v2601 = vrot.slane %v2596, %v2600
    %v2603 = vadd.f32 %v2595, %v2601
    %vm2604 = vcmask 7168
    %2605 = vst.msk [vmem:[%s9] sm:$0xff] %vm2604, %v2603
    // Predicated region
    $region50: #{weather_lstm_forward.1} parent=1 // pred_check
      _
    $region51: #{weather_lstm_forward.1} parent=1 // pred_check_branch
      %2607 = sbr.rel (0) target = $region53
    $region52: #{weather_lstm_forward.1} parent=1 // pred_region
      _
    $region53: #{weather_lstm_forward.1} parent=1 // pred_fallthru
      _
    // Predicated region
    $region54: #{weather_lstm_forward.1} parent=1 // pred_check
      _
    $region55: #{weather_lstm_forward.1} parent=1 // pred_check_branch
      %2609 = sbr.rel (0) target = $region57
    $region56: #{weather_lstm_forward.1} parent=1 // pred_region
      _
    $region57: #{weather_lstm_forward.1} parent=1 // pred_fallthru
      _
    %2610 = vsyncpa [#allocation4], 1
    %2611 = vsyncpa [#allocation6], 1

</llo_original>
